<compile_context>
chip_gen: v7x
topology: tpu7x:2x2x1
jax: 0.10.0
libtpu: 0.0.40
codegen_flags: <defaults>
</compile_context>

<pallas_src>
import functools
import math

import jax
import jax.numpy as jnp
from jax import lax
from jax.experimental import pallas as pl
from jax.experimental.pallas import tpu as pltpu


_NEG_INF = -1e30   # finite "minus infinity": no NaNs even on fully-masked rows


# ----------------------------- in-kernel helpers ----------------------------

def _mm(a, b):
    """MXU matmul: bf16 operands, f32 accumulation."""
    return jnp.dot(a.astype(jnp.bfloat16), b.astype(jnp.bfloat16),
                   preferred_element_type=jnp.float32)


def _ln(x, g, b, eps):
    """LayerNorm over the last axis, f32 VPU math."""
    mean = jnp.mean(x, axis=-1, keepdims=True)
    xc = x - mean
    var = jnp.mean(xc * xc, axis=-1, keepdims=True)
    return xc * lax.rsqrt(var + eps) * g + b


def _multi_head_attention(q, k, v, bias, wo, B, nq, nk, h, d_k, d_v):
    """All-heads scaled-dot-product attention + output projection (no bias).

    q: (B*nq, h*d_k)  -- the 1/sqrt(d_k) scale is already folded into W_q.
    k: (B*nk, h*d_k), v: (B*nk, h*d_v)
    bias: additive mask bias (B, 1, nk) or None (computed once by the caller).
    wo: (h*d_v, d_model) bf16 value.
    Returns (B*nq, d_model) f32 with the output projection already applied.
    """
    q3 = q.reshape(B, nq, h * d_k)          # leading-dim split: free
    k3 = k.reshape(B, nk, h * d_k)
    v3 = v.reshape(B, nk, h * d_v)
    out = None
    for i in range(h):                      # static unroll, h is small
        qh = q3[:, :, i * d_k:(i + 1) * d_k]
        kh = k3[:, :, i * d_k:(i + 1) * d_k]
        vh = v3[:, :, i * d_v:(i + 1) * d_v]
        s = jnp.einsum("bqc,bkc->bqk",
                       qh.astype(jnp.bfloat16), kh.astype(jnp.bfloat16),
                       preferred_element_type=jnp.float32)
        if bias is not None:
            s = s + bias                    # one add per head, bias hoisted
        m = jnp.max(s, axis=-1, keepdims=True)
        p = jnp.exp(s - m)                  # f32 softmax math (EUP exp)
        denom = jnp.sum(p, axis=-1, keepdims=True)
        p = p * pl.reciprocal(denom, approx=True)   # EUP reciprocal (documented)
        oh = jnp.einsum("bqk,bkc->bqc",
                        p.astype(jnp.bfloat16), vh.astype(jnp.bfloat16),
                        preferred_element_type=jnp.float32)
        # Accumulate through this head's rows of W_o instead of a lane concat.
        contrib = jnp.dot(oh.reshape(B * nq, d_v).astype(jnp.bfloat16),
                          wo[i * d_v:(i + 1) * d_v, :],
                          preferred_element_type=jnp.float32)
        out = contrib if out is None else out + contrib
    return out


# ----------------------------- fused decoder-layer kernel -------------------

def _decoder_layer_kernel(
        x_ref, enc_ref, mask_ref,
        sa_wqkv_ref, sa_bqkv_ref, sa_wo_ref, sa_bo_ref, sa_g_ref, sa_b_ref,
        ln1_g_ref, ln1_b_ref,
        ca_wq_ref, ca_bq_ref, ca_wkv_ref, ca_bkv_ref, ca_wo_ref, ca_bo_ref,
        ca_g_ref, ca_b_ref, ln2_g_ref, ln2_b_ref,
        ff_w1_ref, ff_b1_ref, ff_w2_ref, ff_b2_ref, ff_g_ref, ff_b_ref,
        out_ref, *, B, nq, nk, h, d_k, d_v, eps):
    hdk = h * d_k
    hdv = h * d_v

    x = x_ref[...]                                           # (B*nq, d) f32

    # ---------------- self-attention sublayer (no self-attn mask) -----------
    qkv = _mm(x, sa_wqkv_ref[...]) + sa_bqkv_ref[...]        # fused QKV matmul
    q = qkv[:, :hdk]                                         # 128-lane aligned
    k = qkv[:, hdk:2 * hdk]
    v = qkv[:, 2 * hdk:]
    attn = _multi_head_attention(q, k, v, None, sa_wo_ref[...],
                                 B, nq, nq, h, d_k, d_v)
    y = attn + sa_bo_ref[...]
    y = _ln(x + y, sa_g_ref[...], sa_b_ref[...], eps)        # MHA layer_norm
    sa = _ln(x + y, ln1_g_ref[...], ln1_b_ref[...], eps)     # decoder lnorm1

    # ---------------- cross-attention sublayer -------------------------------
    enc = enc_ref[...]                                       # (B*nk, d) f32
    q = _mm(sa, ca_wq_ref[...]) + ca_bq_ref[...]
    kv = _mm(enc, ca_wkv_ref[...]) + ca_bkv_ref[...]         # fused K|V matmul
    k = kv[:, :hdk]
    v = kv[:, hdk:]
    # Additive mask bias, computed once (0 for visible, -1e30 for masked key).
    bias = (mask_ref[...] * jnp.float32(_NEG_INF))[:, None, :]   # (B, 1, nk)
    attn = _multi_head_attention(q, k, v, bias, ca_wo_ref[...],
                                 B, nq, nk, h, d_k, d_v)
    y = attn + ca_bo_ref[...]
    y = _ln(sa + y, ca_g_ref[...], ca_b_ref[...], eps)       # MHA layer_norm
    ea = _ln(sa + y, ln2_g_ref[...], ln2_b_ref[...], eps)    # decoder lnorm2

    # ---------------- position-wise feed-forward -----------------------------
    ff1 = jnp.maximum(_mm(ea, ff_w1_ref[...]) + ff_b1_ref[...], 0.0)
    ff2 = _mm(ff1, ff_w2_ref[...]) + ff_b2_ref[...]
    out_ref[...] = _ln(ea + ff2, ff_g_ref[...], ff_b_ref[...], eps)


# ----------------------------- wrapper ---------------------------------------

def _full_spec(a):
    n = a.ndim
    return pl.BlockSpec(a.shape, lambda i: (0,) * n)


def decoder_layer_forward(kernel_params, x, enc_output, mask_cross, cfg):
    """x: (B, nq, d) f32; enc_output: (B, nk, d) f32;
    mask_cross: bool, broadcastable as (B, 1, 1, nk), True = masked key."""
    B, nq, d = x.shape
    nk = enc_output.shape[1]

    # Flatten activations wrapper-side (free layout plumbing).
    x2 = x.reshape(B * nq, d)
    enc2 = enc_output.reshape(B * nk, d)
    if mask_cross is None:
        m = jnp.zeros((B, nk), jnp.float32)
    else:
        # TODO(synk): only key-broadcast masks (B,1,1,nk) are supported here;
        # the general (B,h,nq,nk) mask / attention_weights of
        # ScaledDotProductAttention are not implemented.
        m = mask_cross.reshape(B, nk).astype(jnp.float32)

    kernel = functools.partial(
        _decoder_layer_kernel, B=B, nq=nq, nk=nk,
        h=cfg["h"], d_k=cfg["d_k"], d_v=cfg["d_v"], eps=1e-5)

    args = [x2, enc2, m] + list(kernel_params)
    out = pl.pallas_call(
        kernel,
        out_shape=jax.ShapeDtypeStruct((B * nq, d), jnp.float32),
        grid=(1,),                       # single fused step; see header notes
        in_specs=[_full_spec(a) for a in args],
        out_specs=pl.BlockSpec((B * nq, d), lambda i: (0, 0)),
        compiler_params=pltpu.CompilerParams(
            dimension_semantics=("arbitrary",)),
    )(*args)
    return out.reshape(B, nq, d)


# ----------------------------- parameters ------------------------------------

def xavier_uniform(key, shape):
    fan_in, fan_out = shape
    limit = math.sqrt(6.0 / (fan_in + fan_out))
    return jax.random.uniform(key, shape, jnp.float32, -limit, limit)


def init_mha(key, cfg):
    ks = jax.random.split(key, 4)
    d, h, dk, dv = cfg["d_model"], cfg["h"], cfg["d_k"], cfg["d_v"]
    return {
        "w_q": xavier_uniform(ks[0], (d, h * dk)),
        "w_k": xavier_uniform(ks[1], (d, h * dk)),
        "w_v": xavier_uniform(ks[2], (d, h * dv)),
        "b_q": jnp.zeros((h * dk,), jnp.float32),
        "b_k": jnp.zeros((h * dk,), jnp.float32),
        "b_v": jnp.zeros((h * dv,), jnp.float32),
        "w_o": xavier_uniform(ks[3], (h * dv, d)),
        "b_o": jnp.zeros((d,), jnp.float32),
        "ln_g": jnp.ones((d,), jnp.float32),
        "ln_b": jnp.zeros((d,), jnp.float32),
    }


def init_pwff(key, cfg):
    ks = jax.random.split(key, 2)
    d, dff = cfg["d_model"], cfg["d_ff"]
    return {
        "w1": xavier_uniform(ks[0], (d, dff)),
        "b1": jnp.zeros((dff,), jnp.float32),
        "w2": xavier_uniform(ks[1], (dff, d)),
        "b2": jnp.zeros((d,), jnp.float32),
        "ln_g": jnp.ones((d,), jnp.float32),
        "ln_b": jnp.zeros((d,), jnp.float32),
    }


def init_decoder_layer(key, cfg):
    ks = jax.random.split(key, 3)
    d = cfg["d_model"]
    return {
        "self_att": init_mha(ks[0], cfg),
        "enc_att": init_mha(ks[1], cfg),
        "lnorm1": {"g": jnp.ones((d,), jnp.float32),
                   "b": jnp.zeros((d,), jnp.float32)},
        "lnorm2": {"g": jnp.ones((d,), jnp.float32),
                   "b": jnp.zeros((d,), jnp.float32)},
        "pwff": init_pwff(ks[2], cfg),
    }


def prepare_params(params, cfg):
    """Logical (torch-like, f32) params -> ordered kernel operand list.

    * matmul weights -> bf16 in HBM (halved DMA; MXU operands were bf16 already)
    * 1/sqrt(d_k) folded into the Q projection weight & bias (exact algebra)
    * self-attn Wq|Wk|Wv and cross-attn Wk|Wv pre-concatenated so projections
      are single wide MXU matmuls whose output slices land on 128-lane tiles.
    """
    inv = 1.0 / math.sqrt(cfg["d_k"])
    row = lambda a: a.reshape(1, -1)
    bf = lambda a: a.astype(jnp.bfloat16)

    sa, ca, ff = params["self_att"], params["enc_att"], params["pwff"]
    return [
        # --- self-attention sublayer ---
        bf(jnp.concatenate([sa["w_q"] * inv, sa["w_k"], sa["w_v"]], axis=1)),
        row(jnp.concatenate([sa["b_q"] * inv, sa["b_k"], sa["b_v"]])),
        bf(sa["w_o"]), row(sa["b_o"]), row(sa["ln_g"]), row(sa["ln_b"]),
        row(params["lnorm1"]["g"]), row(params["lnorm1"]["b"]),
        # --- cross-attention sublayer ---
        bf(ca["w_q"] * inv), row(ca["b_q"] * inv),
        bf(jnp.concatenate([ca["w_k"], ca["w_v"]], axis=1)),
        row(jnp.concatenate([ca["b_k"], ca["b_v"]])),
        bf(ca["w_o"]), row(ca["b_o"]), row(ca["ln_g"]), row(ca["ln_b"]),
        row(params["lnorm2"]["g"]), row(params["lnorm2"]["b"]),
        # --- position-wise feed-forward ---
        bf(ff["w1"]), row(ff["b1"]), bf(ff["w2"]), row(ff["b2"]),
        row(ff["ln_g"]), row(ff["ln_b"]),
    ]


# ----------------------------- pure-JAX reference ----------------------------

def _ref_mm(a, b):
    return jnp.dot(a.astype(jnp.bfloat16), b.astype(jnp.bfloat16),
                   preferred_element_type=jnp.float32)


def _ref_ln(x, g, b, eps=1e-5):
    mean = x.mean(-1, keepdims=True)
    xc = x - mean
    var = (xc * xc).mean(-1, keepdims=True)
    return xc * lax.rsqrt(var + eps) * g + b


def _ref_mha(p, ln_outer, xq, xkv, mask, cfg):
    h, dk, dv = cfg["h"], cfg["d_k"], cfg["d_v"]
    B, nq, d = xq.shape
    nk = xkv.shape[1]
    inv = 1.0 / math.sqrt(dk)
    xq2 = xq.reshape(-1, d)
    xkv2 = xkv.reshape(-1, d)
    # Mirror the kernel's 1/sqrt(d_k) fold (exact algebraic identity) so the
    # bf16 weight rounding is identical on both sides and the comparison
    # isolates kernel-lowering differences.
    q = _ref_mm(xq2, p["w_q"] * inv) + p["b_q"] * inv
    k = _ref_mm(xkv2, p["w_k"]) + p["b_k"]
    v = _ref_mm(xkv2, p["w_v"]) + p["b_v"]
    q = q.reshape(B, nq, h, dk).transpose(0, 2, 1, 3)
    k = k.reshape(B, nk, h, dk).transpose(0, 2, 1, 3)
    v = v.reshape(B, nk, h, dv).transpose(0, 2, 1, 3)
    s = jnp.einsum("bhqc,bhkc->bhqk", q.astype(jnp.bfloat16),
                   k.astype(jnp.bfloat16), preferred_element_type=jnp.float32)
    if mask is not None:
        s = jnp.where(mask, jnp.float32(_NEG_INF), s)
    att = jax.nn.softmax(s, axis=-1)
    o = jnp.einsum("bhqk,bhkc->bhqc", att.astype(jnp.bfloat16),
                   v.astype(jnp.bfloat16), preferred_element_type=jnp.float32)
    o = o.transpose(0, 2, 1, 3).reshape(B * nq, h * dv)
    o = _ref_mm(o, p["w_o"]) + p["b_o"]
    y = _ref_ln(xq2 + o, p["ln_g"], p["ln_b"])
    y = _ref_ln(xq2 + y, ln_outer["g"], ln_outer["b"])
    return y.reshape(B, nq, d)


def ref_decoder_layer(params, x, enc_output, mask_cross, cfg):
    sa = _ref_mha(params["self_att"], params["lnorm1"], x, x, None, cfg)
    ea = _ref_mha(params["enc_att"], params["lnorm2"], sa, enc_output,
                  mask_cross, cfg)
    p = params["pwff"]
    d = cfg["d_model"]
    x2 = ea.reshape(-1, d)
    h1 = jnp.maximum(_ref_mm(x2, p["w1"]) + p["b1"], 0.0)
    h2 = _ref_mm(h1, p["w2"]) + p["b2"]
    return _ref_ln(x2 + h2, p["ln_g"], p["ln_b"]).reshape(ea.shape)


# ----------------------------------- main -------------------------------------

if __name__ == "__main__":
    # Small shapes; d_model = h*d_k = h*d_v = 128 and d_ff = 256 keep every
    # lane slice / store in the kernel 128-lane-tile aligned.
    cfg = dict(d_model=128, d_k=32, d_v=32, h=4, d_ff=256)

    key = jax.random.PRNGKey(0)
    kp, kx, ke = jax.random.split(key, 3)
    params = init_decoder_layer(kp, cfg)          # logical (torch-like) f32
    kernel_params = prepare_params(params, cfg)   # bf16 / fused / scale-folded

    B, nq, nk = 2, 8, 16
    x = jax.random.normal(kx, (B, nq, cfg["d_model"]), jnp.float32)
    enc_output = jax.random.normal(ke, (B, nk, cfg["d_model"]), jnp.float32)
    # True = masked key position (torch masked_fill convention), broadcastable
    # over heads and query positions.
    mask_cross = jnp.zeros((B, 1, 1, nk), bool).at[1, :, :, -3:].set(True)

    fwd = jax.jit(functools.partial(decoder_layer_forward, cfg=cfg))
    out = fwd(kernel_params, x, enc_output, mask_cross)
    jax.block_until_ready(out)

    ref = ref_decoder_layer(params, x, enc_output, mask_cross, cfg)

    assert out.shape == (B, nq, cfg["d_model"])
    assert bool(jnp.all(jnp.isfinite(out)))
    err = float(jnp.max(jnp.abs(out - ref)))
    assert err < 3e-2, f"max |err| = {err}"
    print("KERNEL_OK")
</pallas_src>

<mosaic_0001>
module attributes {stable_mosaic.version = 11 : i64} {
  func.func @_decoder_layer_kernel(%arg0: i32, %arg1: memref<16x128xf32, #tpu.memory_space<vmem>>, %arg2: memref<32x128xf32, #tpu.memory_space<vmem>>, %arg3: memref<2x16xf32, #tpu.memory_space<vmem>>, %arg4: memref<128x384xbf16, #tpu.memory_space<vmem>>, %arg5: memref<1x384xf32, #tpu.memory_space<vmem>>, %arg6: memref<128x128xbf16, #tpu.memory_space<vmem>>, %arg7: memref<1x128xf32, #tpu.memory_space<vmem>>, %arg8: memref<1x128xf32, #tpu.memory_space<vmem>>, %arg9: memref<1x128xf32, #tpu.memory_space<vmem>>, %arg10: memref<1x128xf32, #tpu.memory_space<vmem>>, %arg11: memref<1x128xf32, #tpu.memory_space<vmem>>, %arg12: memref<128x128xbf16, #tpu.memory_space<vmem>>, %arg13: memref<1x128xf32, #tpu.memory_space<vmem>>, %arg14: memref<128x256xbf16, #tpu.memory_space<vmem>>, %arg15: memref<1x256xf32, #tpu.memory_space<vmem>>, %arg16: memref<128x128xbf16, #tpu.memory_space<vmem>>, %arg17: memref<1x128xf32, #tpu.memory_space<vmem>>, %arg18: memref<1x128xf32, #tpu.memory_space<vmem>>, %arg19: memref<1x128xf32, #tpu.memory_space<vmem>>, %arg20: memref<1x128xf32, #tpu.memory_space<vmem>>, %arg21: memref<1x128xf32, #tpu.memory_space<vmem>>, %arg22: memref<128x256xbf16, #tpu.memory_space<vmem>>, %arg23: memref<1x256xf32, #tpu.memory_space<vmem>>, %arg24: memref<256x128xbf16, #tpu.memory_space<vmem>>, %arg25: memref<1x128xf32, #tpu.memory_space<vmem>>, %arg26: memref<1x128xf32, #tpu.memory_space<vmem>>, %arg27: memref<1x128xf32, #tpu.memory_space<vmem>>, %arg28: memref<16x128xf32, #tpu.memory_space<vmem>>) attributes {dimension_semantics = [#tpu.dimension_semantics<arbitrary>], iteration_bounds = array<i64: 1>, scalar_prefetch = 0 : i64, scratch_operands = 0 : i64, tpu.core_type = #tpu.core_type<tc>, window_params = [{pipeline_mode = #tpu.pipeline_mode<synchronous>, transform_indices = @transform_0, window_bounds = array<i64: 16, 128>}, {pipeline_mode = #tpu.pipeline_mode<synchronous>, transform_indices = @transform_1, window_bounds = array<i64: 32, 128>}, {pipeline_mode = #tpu.pipeline_mode<synchronous>, transform_indices = @transform_2, window_bounds = array<i64: 2, 16>}, {pipeline_mode = #tpu.pipeline_mode<synchronous>, transform_indices = @transform_3, window_bounds = array<i64: 128, 384>}, {pipeline_mode = #tpu.pipeline_mode<synchronous>, transform_indices = @transform_4, window_bounds = array<i64: 1, 384>}, {pipeline_mode = #tpu.pipeline_mode<synchronous>, transform_indices = @transform_5, window_bounds = array<i64: 128, 128>}, {pipeline_mode = #tpu.pipeline_mode<synchronous>, transform_indices = @transform_6, window_bounds = array<i64: 1, 128>}, {pipeline_mode = #tpu.pipeline_mode<synchronous>, transform_indices = @transform_7, window_bounds = array<i64: 1, 128>}, {pipeline_mode = #tpu.pipeline_mode<synchronous>, transform_indices = @transform_8, window_bounds = array<i64: 1, 128>}, {pipeline_mode = #tpu.pipeline_mode<synchronous>, transform_indices = @transform_9, window_bounds = array<i64: 1, 128>}, {pipeline_mode = #tpu.pipeline_mode<synchronous>, transform_indices = @transform_10, window_bounds = array<i64: 1, 128>}, {pipeline_mode = #tpu.pipeline_mode<synchronous>, transform_indices = @transform_11, window_bounds = array<i64: 128, 128>}, {pipeline_mode = #tpu.pipeline_mode<synchronous>, transform_indices = @transform_12, window_bounds = array<i64: 1, 128>}, {pipeline_mode = #tpu.pipeline_mode<synchronous>, transform_indices = @transform_13, window_bounds = array<i64: 128, 256>}, {pipeline_mode = #tpu.pipeline_mode<synchronous>, transform_indices = @transform_14, window_bounds = array<i64: 1, 256>}, {pipeline_mode = #tpu.pipeline_mode<synchronous>, transform_indices = @transform_15, window_bounds = array<i64: 128, 128>}, {pipeline_mode = #tpu.pipeline_mode<synchronous>, transform_indices = @transform_16, window_bounds = array<i64: 1, 128>}, {pipeline_mode = #tpu.pipeline_mode<synchronous>, transform_indices = @transform_17, window_bounds = array<i64: 1, 128>}, {pipeline_mode = #tpu.pipeline_mode<synchronous>, transform_indices = @transform_18, window_bounds = array<i64: 1, 128>}, {pipeline_mode = #tpu.pipeline_mode<synchronous>, transform_indices = @transform_19, window_bounds = array<i64: 1, 128>}, {pipeline_mode = #tpu.pipeline_mode<synchronous>, transform_indices = @transform_20, window_bounds = array<i64: 1, 128>}, {pipeline_mode = #tpu.pipeline_mode<synchronous>, transform_indices = @transform_21, window_bounds = array<i64: 128, 256>}, {pipeline_mode = #tpu.pipeline_mode<synchronous>, transform_indices = @transform_22, window_bounds = array<i64: 1, 256>}, {pipeline_mode = #tpu.pipeline_mode<synchronous>, transform_indices = @transform_23, window_bounds = array<i64: 256, 128>}, {pipeline_mode = #tpu.pipeline_mode<synchronous>, transform_indices = @transform_24, window_bounds = array<i64: 1, 128>}, {pipeline_mode = #tpu.pipeline_mode<synchronous>, transform_indices = @transform_25, window_bounds = array<i64: 1, 128>}, {pipeline_mode = #tpu.pipeline_mode<synchronous>, transform_indices = @transform_26, window_bounds = array<i64: 1, 128>}, {pipeline_mode = #tpu.pipeline_mode<synchronous>, transform_indices = @transform_27, window_bounds = array<i64: 16, 128>}]} {
    %c0 = arith.constant 0 : index
    %c0_0 = arith.constant 0 : index
    %0 = vector.load %arg1[%c0, %c0_0] : memref<16x128xf32, #tpu.memory_space<vmem>>, vector<16x128xf32>
    %c0_1 = arith.constant 0 : index
    %c0_2 = arith.constant 0 : index
    %1 = vector.load %arg4[%c0_1, %c0_2] : memref<128x384xbf16, #tpu.memory_space<vmem>>, vector<128x384xbf16>
    %2 = arith.truncf %0 : vector<16x128xf32> to vector<16x128xbf16>
    %cst = arith.constant dense<0.000000e+00> : vector<16x384xf32>
    %3 = tpu.matmul %2, %1, %cst {dimension_numbers = #tpu.dot_dimension_numbers<[1], [0], [0], [1], [0, 0, 1, 1], [], []>} : vector<16x128xbf16>, vector<128x384xbf16>, vector<16x384xf32> -> vector<16x384xf32>
    %c0_3 = arith.constant 0 : index
    %c0_4 = arith.constant 0 : index
    %4 = vector.load %arg5[%c0_3, %c0_4] : memref<1x384xf32, #tpu.memory_space<vmem>>, vector<1x384xf32>
    %5 = vector.broadcast %4 : vector<1x384xf32> to vector<16x384xf32>
    %6 = arith.addf %3, %5 : vector<16x384xf32>
    %7 = vector.extract_strided_slice %6 {offsets = [0, 0], sizes = [16, 128], strides = [1, 1]} : vector<16x384xf32> to vector<16x128xf32>
    %8 = vector.extract_strided_slice %6 {offsets = [0, 128], sizes = [16, 128], strides = [1, 1]} : vector<16x384xf32> to vector<16x128xf32>
    %9 = vector.extract_strided_slice %6 {offsets = [0, 256], sizes = [16, 128], strides = [1, 1]} : vector<16x384xf32> to vector<16x128xf32>
    %c0_5 = arith.constant 0 : index
    %c0_6 = arith.constant 0 : index
    %10 = vector.load %arg6[%c0_5, %c0_6] : memref<128x128xbf16, #tpu.memory_space<vmem>>, vector<128x128xbf16>
    %11 = vector.shape_cast %7 : vector<16x128xf32> to vector<2x8x128xf32>
    %12 = vector.shape_cast %8 : vector<16x128xf32> to vector<2x8x128xf32>
    %13 = vector.shape_cast %9 : vector<16x128xf32> to vector<2x8x128xf32>
    %14 = vector.extract_strided_slice %11 {offsets = [0, 0, 0], sizes = [2, 8, 32], strides = [1, 1, 1]} : vector<2x8x128xf32> to vector<2x8x32xf32>
    %15 = vector.extract_strided_slice %12 {offsets = [0, 0, 0], sizes = [2, 8, 32], strides = [1, 1, 1]} : vector<2x8x128xf32> to vector<2x8x32xf32>
    %16 = vector.extract_strided_slice %13 {offsets = [0, 0, 0], sizes = [2, 8, 32], strides = [1, 1, 1]} : vector<2x8x128xf32> to vector<2x8x32xf32>
    %17 = arith.truncf %14 : vector<2x8x32xf32> to vector<2x8x32xbf16>
    %18 = arith.truncf %15 : vector<2x8x32xf32> to vector<2x8x32xbf16>
    "tpu.trace_start"() <{level = 10 : i32, message = "bqc,bkc->bqk"}> : () -> ()
    %cst_7 = arith.constant dense<0.000000e+00> : vector<2x8x8xf32>
    %19 = tpu.matmul %17, %18, %cst_7 {dimension_numbers = #tpu.dot_dimension_numbers<[2], [2], [1], [1], [0, 0, 0, 1, 1, 1], [0], [0]>} : vector<2x8x32xbf16>, vector<2x8x32xbf16>, vector<2x8x8xf32> -> vector<2x8x8xf32>
    "tpu.trace_stop"() : () -> ()
    %cst_8 = arith.constant dense<0xFF800000> : vector<2x8xf32>
    %20 = vector.multi_reduction <maximumf>, %19, %cst_8 [2] : vector<2x8x8xf32> to vector<2x8xf32>
    %21 = vector.shape_cast %20 : vector<2x8xf32> to vector<2x8x1xf32>
    %22 = vector.broadcast %21 : vector<2x8x1xf32> to vector<2x8x8xf32>
    %23 = arith.subf %19, %22 : vector<2x8x8xf32>
    %24 = math.exp %23 : vector<2x8x8xf32>
    %cst_9 = arith.constant dense<0.000000e+00> : vector<2x8xf32>
    %25 = vector.multi_reduction <add>, %24, %cst_9 [2] : vector<2x8x8xf32> to vector<2x8xf32>
    %26 = vector.shape_cast %25 : vector<2x8xf32> to vector<2x8x1xf32>
    %27 = tpu.reciprocal %26 {approx = true} : vector<2x8x1xf32> -> vector<2x8x1xf32>
    %28 = vector.broadcast %27 : vector<2x8x1xf32> to vector<2x8x8xf32>
    %29 = arith.mulf %24, %28 : vector<2x8x8xf32>
    %30 = arith.truncf %29 : vector<2x8x8xf32> to vector<2x8x8xbf16>
    %31 = arith.truncf %16 : vector<2x8x32xf32> to vector<2x8x32xbf16>
    "tpu.trace_start"() <{level = 10 : i32, message = "bqk,bkc->bqc"}> : () -> ()
    %cst_10 = arith.constant dense<0.000000e+00> : vector<2x8x32xf32>
    %32 = tpu.matmul %30, %31, %cst_10 {dimension_numbers = #tpu.dot_dimension_numbers<[2], [1], [1], [2], [0, 0, 0, 1, 1, 2], [0], [0]>} : vector<2x8x8xbf16>, vector<2x8x32xbf16>, vector<2x8x32xf32> -> vector<2x8x32xf32>
    "tpu.trace_stop"() : () -> ()
    %33 = vector.shape_cast %32 : vector<2x8x32xf32> to vector<16x32xf32>
    %34 = arith.truncf %33 : vector<16x32xf32> to vector<16x32xbf16>
    %35 = vector.extract_strided_slice %10 {offsets = [0, 0], sizes = [32, 128], strides = [1, 1]} : vector<128x128xbf16> to vector<32x128xbf16>
    %cst_11 = arith.constant dense<0.000000e+00> : vector<16x128xf32>
    %36 = tpu.matmul %34, %35, %cst_11 {dimension_numbers = #tpu.dot_dimension_numbers<[1], [0], [0], [1], [0, 0, 1, 1], [], []>} : vector<16x32xbf16>, vector<32x128xbf16>, vector<16x128xf32> -> vector<16x128xf32>
    %37 = vector.extract_strided_slice %11 {offsets = [0, 0, 32], sizes = [2, 8, 32], strides = [1, 1, 1]} : vector<2x8x128xf32> to vector<2x8x32xf32>
    %38 = vector.extract_strided_slice %12 {offsets = [0, 0, 32], sizes = [2, 8, 32], strides = [1, 1, 1]} : vector<2x8x128xf32> to vector<2x8x32xf32>
    %39 = vector.extract_strided_slice %13 {offsets = [0, 0, 32], sizes = [2, 8, 32], strides = [1, 1, 1]} : vector<2x8x128xf32> to vector<2x8x32xf32>
    %40 = arith.truncf %37 : vector<2x8x32xf32> to vector<2x8x32xbf16>
    %41 = arith.truncf %38 : vector<2x8x32xf32> to vector<2x8x32xbf16>
    "tpu.trace_start"() <{level = 10 : i32, message = "bqc,bkc->bqk"}> : () -> ()
    %cst_12 = arith.constant dense<0.000000e+00> : vector<2x8x8xf32>
    %42 = tpu.matmul %40, %41, %cst_12 {dimension_numbers = #tpu.dot_dimension_numbers<[2], [2], [1], [1], [0, 0, 0, 1, 1, 1], [0], [0]>} : vector<2x8x32xbf16>, vector<2x8x32xbf16>, vector<2x8x8xf32> -> vector<2x8x8xf32>
    "tpu.trace_stop"() : () -> ()
    %cst_13 = arith.constant dense<0xFF800000> : vector<2x8xf32>
    %43 = vector.multi_reduction <maximumf>, %42, %cst_13 [2] : vector<2x8x8xf32> to vector<2x8xf32>
    %44 = vector.shape_cast %43 : vector<2x8xf32> to vector<2x8x1xf32>
    %45 = vector.broadcast %44 : vector<2x8x1xf32> to vector<2x8x8xf32>
    %46 = arith.subf %42, %45 : vector<2x8x8xf32>
    %47 = math.exp %46 : vector<2x8x8xf32>
    %cst_14 = arith.constant dense<0.000000e+00> : vector<2x8xf32>
    %48 = vector.multi_reduction <add>, %47, %cst_14 [2] : vector<2x8x8xf32> to vector<2x8xf32>
    %49 = vector.shape_cast %48 : vector<2x8xf32> to vector<2x8x1xf32>
    %50 = tpu.reciprocal %49 {approx = true} : vector<2x8x1xf32> -> vector<2x8x1xf32>
    %51 = vector.broadcast %50 : vector<2x8x1xf32> to vector<2x8x8xf32>
    %52 = arith.mulf %47, %51 : vector<2x8x8xf32>
    %53 = arith.truncf %52 : vector<2x8x8xf32> to vector<2x8x8xbf16>
    %54 = arith.truncf %39 : vector<2x8x32xf32> to vector<2x8x32xbf16>
    "tpu.trace_start"() <{level = 10 : i32, message = "bqk,bkc->bqc"}> : () -> ()
    %cst_15 = arith.constant dense<0.000000e+00> : vector<2x8x32xf32>
    %55 = tpu.matmul %53, %54, %cst_15 {dimension_numbers = #tpu.dot_dimension_numbers<[2], [1], [1], [2], [0, 0, 0, 1, 1, 2], [0], [0]>} : vector<2x8x8xbf16>, vector<2x8x32xbf16>, vector<2x8x32xf32> -> vector<2x8x32xf32>
    "tpu.trace_stop"() : () -> ()
    %56 = vector.shape_cast %55 : vector<2x8x32xf32> to vector<16x32xf32>
    %57 = arith.truncf %56 : vector<16x32xf32> to vector<16x32xbf16>
    %58 = vector.extract_strided_slice %10 {offsets = [32, 0], sizes = [32, 128], strides = [1, 1]} : vector<128x128xbf16> to vector<32x128xbf16>
    %cst_16 = arith.constant dense<0.000000e+00> : vector<16x128xf32>
    %59 = tpu.matmul %57, %58, %cst_16 {dimension_numbers = #tpu.dot_dimension_numbers<[1], [0], [0], [1], [0, 0, 1, 1], [], []>} : vector<16x32xbf16>, vector<32x128xbf16>, vector<16x128xf32> -> vector<16x128xf32>
    %60 = arith.addf %36, %59 : vector<16x128xf32>
    %61 = vector.extract_strided_slice %11 {offsets = [0, 0, 64], sizes = [2, 8, 32], strides = [1, 1, 1]} : vector<2x8x128xf32> to vector<2x8x32xf32>
    %62 = vector.extract_strided_slice %12 {offsets = [0, 0, 64], sizes = [2, 8, 32], strides = [1, 1, 1]} : vector<2x8x128xf32> to vector<2x8x32xf32>
    %63 = vector.extract_strided_slice %13 {offsets = [0, 0, 64], sizes = [2, 8, 32], strides = [1, 1, 1]} : vector<2x8x128xf32> to vector<2x8x32xf32>
    %64 = arith.truncf %61 : vector<2x8x32xf32> to vector<2x8x32xbf16>
    %65 = arith.truncf %62 : vector<2x8x32xf32> to vector<2x8x32xbf16>
    "tpu.trace_start"() <{level = 10 : i32, message = "bqc,bkc->bqk"}> : () -> ()
    %cst_17 = arith.constant dense<0.000000e+00> : vector<2x8x8xf32>
    %66 = tpu.matmul %64, %65, %cst_17 {dimension_numbers = #tpu.dot_dimension_numbers<[2], [2], [1], [1], [0, 0, 0, 1, 1, 1], [0], [0]>} : vector<2x8x32xbf16>, vector<2x8x32xbf16>, vector<2x8x8xf32> -> vector<2x8x8xf32>
    "tpu.trace_stop"() : () -> ()
    %cst_18 = arith.constant dense<0xFF800000> : vector<2x8xf32>
    %67 = vector.multi_reduction <maximumf>, %66, %cst_18 [2] : vector<2x8x8xf32> to vector<2x8xf32>
    %68 = vector.shape_cast %67 : vector<2x8xf32> to vector<2x8x1xf32>
    %69 = vector.broadcast %68 : vector<2x8x1xf32> to vector<2x8x8xf32>
    %70 = arith.subf %66, %69 : vector<2x8x8xf32>
    %71 = math.exp %70 : vector<2x8x8xf32>
    %cst_19 = arith.constant dense<0.000000e+00> : vector<2x8xf32>
    %72 = vector.multi_reduction <add>, %71, %cst_19 [2] : vector<2x8x8xf32> to vector<2x8xf32>
    %73 = vector.shape_cast %72 : vector<2x8xf32> to vector<2x8x1xf32>
    %74 = tpu.reciprocal %73 {approx = true} : vector<2x8x1xf32> -> vector<2x8x1xf32>
    %75 = vector.broadcast %74 : vector<2x8x1xf32> to vector<2x8x8xf32>
    %76 = arith.mulf %71, %75 : vector<2x8x8xf32>
    %77 = arith.truncf %76 : vector<2x8x8xf32> to vector<2x8x8xbf16>
    %78 = arith.truncf %63 : vector<2x8x32xf32> to vector<2x8x32xbf16>
    "tpu.trace_start"() <{level = 10 : i32, message = "bqk,bkc->bqc"}> : () -> ()
    %cst_20 = arith.constant dense<0.000000e+00> : vector<2x8x32xf32>
    %79 = tpu.matmul %77, %78, %cst_20 {dimension_numbers = #tpu.dot_dimension_numbers<[2], [1], [1], [2], [0, 0, 0, 1, 1, 2], [0], [0]>} : vector<2x8x8xbf16>, vector<2x8x32xbf16>, vector<2x8x32xf32> -> vector<2x8x32xf32>
    "tpu.trace_stop"() : () -> ()
    %80 = vector.shape_cast %79 : vector<2x8x32xf32> to vector<16x32xf32>
    %81 = arith.truncf %80 : vector<16x32xf32> to vector<16x32xbf16>
    %82 = vector.extract_strided_slice %10 {offsets = [64, 0], sizes = [32, 128], strides = [1, 1]} : vector<128x128xbf16> to vector<32x128xbf16>
    %cst_21 = arith.constant dense<0.000000e+00> : vector<16x128xf32>
    %83 = tpu.matmul %81, %82, %cst_21 {dimension_numbers = #tpu.dot_dimension_numbers<[1], [0], [0], [1], [0, 0, 1, 1], [], []>} : vector<16x32xbf16>, vector<32x128xbf16>, vector<16x128xf32> -> vector<16x128xf32>
    %84 = arith.addf %60, %83 : vector<16x128xf32>
    %85 = vector.extract_strided_slice %11 {offsets = [0, 0, 96], sizes = [2, 8, 32], strides = [1, 1, 1]} : vector<2x8x128xf32> to vector<2x8x32xf32>
    %86 = vector.extract_strided_slice %12 {offsets = [0, 0, 96], sizes = [2, 8, 32], strides = [1, 1, 1]} : vector<2x8x128xf32> to vector<2x8x32xf32>
    %87 = vector.extract_strided_slice %13 {offsets = [0, 0, 96], sizes = [2, 8, 32], strides = [1, 1, 1]} : vector<2x8x128xf32> to vector<2x8x32xf32>
    %88 = arith.truncf %85 : vector<2x8x32xf32> to vector<2x8x32xbf16>
    %89 = arith.truncf %86 : vector<2x8x32xf32> to vector<2x8x32xbf16>
    "tpu.trace_start"() <{level = 10 : i32, message = "bqc,bkc->bqk"}> : () -> ()
    %cst_22 = arith.constant dense<0.000000e+00> : vector<2x8x8xf32>
    %90 = tpu.matmul %88, %89, %cst_22 {dimension_numbers = #tpu.dot_dimension_numbers<[2], [2], [1], [1], [0, 0, 0, 1, 1, 1], [0], [0]>} : vector<2x8x32xbf16>, vector<2x8x32xbf16>, vector<2x8x8xf32> -> vector<2x8x8xf32>
    "tpu.trace_stop"() : () -> ()
    %cst_23 = arith.constant dense<0xFF800000> : vector<2x8xf32>
    %91 = vector.multi_reduction <maximumf>, %90, %cst_23 [2] : vector<2x8x8xf32> to vector<2x8xf32>
    %92 = vector.shape_cast %91 : vector<2x8xf32> to vector<2x8x1xf32>
    %93 = vector.broadcast %92 : vector<2x8x1xf32> to vector<2x8x8xf32>
    %94 = arith.subf %90, %93 : vector<2x8x8xf32>
    %95 = math.exp %94 : vector<2x8x8xf32>
    %cst_24 = arith.constant dense<0.000000e+00> : vector<2x8xf32>
    %96 = vector.multi_reduction <add>, %95, %cst_24 [2] : vector<2x8x8xf32> to vector<2x8xf32>
    %97 = vector.shape_cast %96 : vector<2x8xf32> to vector<2x8x1xf32>
    %98 = tpu.reciprocal %97 {approx = true} : vector<2x8x1xf32> -> vector<2x8x1xf32>
    %99 = vector.broadcast %98 : vector<2x8x1xf32> to vector<2x8x8xf32>
    %100 = arith.mulf %95, %99 : vector<2x8x8xf32>
    %101 = arith.truncf %100 : vector<2x8x8xf32> to vector<2x8x8xbf16>
    %102 = arith.truncf %87 : vector<2x8x32xf32> to vector<2x8x32xbf16>
    "tpu.trace_start"() <{level = 10 : i32, message = "bqk,bkc->bqc"}> : () -> ()
    %cst_25 = arith.constant dense<0.000000e+00> : vector<2x8x32xf32>
    %103 = tpu.matmul %101, %102, %cst_25 {dimension_numbers = #tpu.dot_dimension_numbers<[2], [1], [1], [2], [0, 0, 0, 1, 1, 2], [0], [0]>} : vector<2x8x8xbf16>, vector<2x8x32xbf16>, vector<2x8x32xf32> -> vector<2x8x32xf32>
    "tpu.trace_stop"() : () -> ()
    %104 = vector.shape_cast %103 : vector<2x8x32xf32> to vector<16x32xf32>
    %105 = arith.truncf %104 : vector<16x32xf32> to vector<16x32xbf16>
    %106 = vector.extract_strided_slice %10 {offsets = [96, 0], sizes = [32, 128], strides = [1, 1]} : vector<128x128xbf16> to vector<32x128xbf16>
    %cst_26 = arith.constant dense<0.000000e+00> : vector<16x128xf32>
    %107 = tpu.matmul %105, %106, %cst_26 {dimension_numbers = #tpu.dot_dimension_numbers<[1], [0], [0], [1], [0, 0, 1, 1], [], []>} : vector<16x32xbf16>, vector<32x128xbf16>, vector<16x128xf32> -> vector<16x128xf32>
    %108 = arith.addf %84, %107 : vector<16x128xf32>
    %c0_27 = arith.constant 0 : index
    %c0_28 = arith.constant 0 : index
    %109 = vector.load %arg7[%c0_27, %c0_28] : memref<1x128xf32, #tpu.memory_space<vmem>>, vector<1x128xf32>
    %110 = vector.broadcast %109 : vector<1x128xf32> to vector<16x128xf32>
    %111 = arith.addf %108, %110 : vector<16x128xf32>
    %112 = arith.addf %0, %111 : vector<16x128xf32>
    %c0_29 = arith.constant 0 : index
    %c0_30 = arith.constant 0 : index
    %113 = vector.load %arg8[%c0_29, %c0_30] : memref<1x128xf32, #tpu.memory_space<vmem>>, vector<1x128xf32>
    %c0_31 = arith.constant 0 : index
    %c0_32 = arith.constant 0 : index
    %114 = vector.load %arg9[%c0_31, %c0_32] : memref<1x128xf32, #tpu.memory_space<vmem>>, vector<1x128xf32>
    %cst_33 = arith.constant dense<0.000000e+00> : vector<16xf32>
    %115 = vector.multi_reduction <add>, %112, %cst_33 [1] : vector<16x128xf32> to vector<16xf32>
    %116 = vector.shape_cast %115 : vector<16xf32> to vector<16x1xf32>
    %cst_34 = arith.constant 1.280000e+02 : f32
    %117 = vector.broadcast %cst_34 : f32 to vector<16x1xf32>
    %118 = arith.divf %116, %117 : vector<16x1xf32>
    %119 = vector.broadcast %118 : vector<16x1xf32> to vector<16x128xf32>
    %120 = arith.subf %112, %119 : vector<16x128xf32>
    %121 = arith.mulf %120, %120 : vector<16x128xf32>
    %cst_35 = arith.constant dense<0.000000e+00> : vector<16xf32>
    %122 = vector.multi_reduction <add>, %121, %cst_35 [1] : vector<16x128xf32> to vector<16xf32>
    %123 = vector.shape_cast %122 : vector<16xf32> to vector<16x1xf32>
    %cst_36 = arith.constant 1.280000e+02 : f32
    %124 = vector.broadcast %cst_36 : f32 to vector<16x1xf32>
    %125 = arith.divf %123, %124 : vector<16x1xf32>
    %cst_37 = arith.constant 9.99999974E-6 : f32
    %126 = vector.broadcast %cst_37 : f32 to vector<16x1xf32>
    %127 = arith.addf %125, %126 : vector<16x1xf32>
    %128 = math.rsqrt %127 : vector<16x1xf32>
    %129 = vector.broadcast %128 : vector<16x1xf32> to vector<16x128xf32>
    %130 = arith.mulf %120, %129 : vector<16x128xf32>
    %131 = vector.broadcast %113 : vector<1x128xf32> to vector<16x128xf32>
    %132 = arith.mulf %130, %131 : vector<16x128xf32>
    %133 = vector.broadcast %114 : vector<1x128xf32> to vector<16x128xf32>
    %134 = arith.addf %132, %133 : vector<16x128xf32>
    %135 = arith.addf %0, %134 : vector<16x128xf32>
    %c0_38 = arith.constant 0 : index
    %c0_39 = arith.constant 0 : index
    %136 = vector.load %arg10[%c0_38, %c0_39] : memref<1x128xf32, #tpu.memory_space<vmem>>, vector<1x128xf32>
    %c0_40 = arith.constant 0 : index
    %c0_41 = arith.constant 0 : index
    %137 = vector.load %arg11[%c0_40, %c0_41] : memref<1x128xf32, #tpu.memory_space<vmem>>, vector<1x128xf32>
    %cst_42 = arith.constant dense<0.000000e+00> : vector<16xf32>
    %138 = vector.multi_reduction <add>, %135, %cst_42 [1] : vector<16x128xf32> to vector<16xf32>
    %139 = vector.shape_cast %138 : vector<16xf32> to vector<16x1xf32>
    %cst_43 = arith.constant 1.280000e+02 : f32
    %140 = vector.broadcast %cst_43 : f32 to vector<16x1xf32>
    %141 = arith.divf %139, %140 : vector<16x1xf32>
    %142 = vector.broadcast %141 : vector<16x1xf32> to vector<16x128xf32>
    %143 = arith.subf %135, %142 : vector<16x128xf32>
    %144 = arith.mulf %143, %143 : vector<16x128xf32>
    %cst_44 = arith.constant dense<0.000000e+00> : vector<16xf32>
    %145 = vector.multi_reduction <add>, %144, %cst_44 [1] : vector<16x128xf32> to vector<16xf32>
    %146 = vector.shape_cast %145 : vector<16xf32> to vector<16x1xf32>
    %cst_45 = arith.constant 1.280000e+02 : f32
    %147 = vector.broadcast %cst_45 : f32 to vector<16x1xf32>
    %148 = arith.divf %146, %147 : vector<16x1xf32>
    %cst_46 = arith.constant 9.99999974E-6 : f32
    %149 = vector.broadcast %cst_46 : f32 to vector<16x1xf32>
    %150 = arith.addf %148, %149 : vector<16x1xf32>
    %151 = math.rsqrt %150 : vector<16x1xf32>
    %152 = vector.broadcast %151 : vector<16x1xf32> to vector<16x128xf32>
    %153 = arith.mulf %143, %152 : vector<16x128xf32>
    %154 = vector.broadcast %136 : vector<1x128xf32> to vector<16x128xf32>
    %155 = arith.mulf %153, %154 : vector<16x128xf32>
    %156 = vector.broadcast %137 : vector<1x128xf32> to vector<16x128xf32>
    %157 = arith.addf %155, %156 : vector<16x128xf32>
    %c0_47 = arith.constant 0 : index
    %c0_48 = arith.constant 0 : index
    %158 = vector.load %arg2[%c0_47, %c0_48] : memref<32x128xf32, #tpu.memory_space<vmem>>, vector<32x128xf32>
    %c0_49 = arith.constant 0 : index
    %c0_50 = arith.constant 0 : index
    %159 = vector.load %arg12[%c0_49, %c0_50] : memref<128x128xbf16, #tpu.memory_space<vmem>>, vector<128x128xbf16>
    %160 = arith.truncf %157 : vector<16x128xf32> to vector<16x128xbf16>
    %cst_51 = arith.constant dense<0.000000e+00> : vector<16x128xf32>
    %161 = tpu.matmul %160, %159, %cst_51 {dimension_numbers = #tpu.dot_dimension_numbers<[1], [0], [0], [1], [0, 0, 1, 1], [], []>} : vector<16x128xbf16>, vector<128x128xbf16>, vector<16x128xf32> -> vector<16x128xf32>
    %c0_52 = arith.constant 0 : index
    %c0_53 = arith.constant 0 : index
    %162 = vector.load %arg13[%c0_52, %c0_53] : memref<1x128xf32, #tpu.memory_space<vmem>>, vector<1x128xf32>
    %163 = vector.broadcast %162 : vector<1x128xf32> to vector<16x128xf32>
    %164 = arith.addf %161, %163 : vector<16x128xf32>
    %c0_54 = arith.constant 0 : index
    %c0_55 = arith.constant 0 : index
    %165 = vector.load %arg14[%c0_54, %c0_55] : memref<128x256xbf16, #tpu.memory_space<vmem>>, vector<128x256xbf16>
    %166 = arith.truncf %158 : vector<32x128xf32> to vector<32x128xbf16>
    %cst_56 = arith.constant dense<0.000000e+00> : vector<32x256xf32>
    %167 = tpu.matmul %166, %165, %cst_56 {dimension_numbers = #tpu.dot_dimension_numbers<[1], [0], [0], [1], [0, 0, 1, 1], [], []>} : vector<32x128xbf16>, vector<128x256xbf16>, vector<32x256xf32> -> vector<32x256xf32>
    %c0_57 = arith.constant 0 : index
    %c0_58 = arith.constant 0 : index
    %168 = vector.load %arg15[%c0_57, %c0_58] : memref<1x256xf32, #tpu.memory_space<vmem>>, vector<1x256xf32>
    %169 = vector.broadcast %168 : vector<1x256xf32> to vector<32x256xf32>
    %170 = arith.addf %167, %169 : vector<32x256xf32>
    %171 = vector.extract_strided_slice %170 {offsets = [0, 0], sizes = [32, 128], strides = [1, 1]} : vector<32x256xf32> to vector<32x128xf32>
    %172 = vector.extract_strided_slice %170 {offsets = [0, 128], sizes = [32, 128], strides = [1, 1]} : vector<32x256xf32> to vector<32x128xf32>
    %c0_59 = arith.constant 0 : index
    %c0_60 = arith.constant 0 : index
    %173 = vector.load %arg3[%c0_59, %c0_60] : memref<2x16xf32, #tpu.memory_space<vmem>>, vector<2x16xf32>
    %cst_61 = arith.constant -1.000000e+30 : f32
    %174 = vector.broadcast %cst_61 : f32 to vector<2x16xf32>
    %175 = arith.mulf %173, %174 : vector<2x16xf32>
    %176 = vector.shape_cast %175 : vector<2x16xf32> to vector<2x1x16xf32>
    %c0_62 = arith.constant 0 : index
    %c0_63 = arith.constant 0 : index
    %177 = vector.load %arg16[%c0_62, %c0_63] : memref<128x128xbf16, #tpu.memory_space<vmem>>, vector<128x128xbf16>
    %178 = vector.shape_cast %164 : vector<16x128xf32> to vector<2x8x128xf32>
    %179 = vector.shape_cast %171 : vector<32x128xf32> to vector<2x16x128xf32>
    %180 = vector.shape_cast %172 : vector<32x128xf32> to vector<2x16x128xf32>
    %181 = vector.extract_strided_slice %178 {offsets = [0, 0, 0], sizes = [2, 8, 32], strides = [1, 1, 1]} : vector<2x8x128xf32> to vector<2x8x32xf32>
    %182 = vector.extract_strided_slice %179 {offsets = [0, 0, 0], sizes = [2, 16, 32], strides = [1, 1, 1]} : vector<2x16x128xf32> to vector<2x16x32xf32>
    %183 = vector.extract_strided_slice %180 {offsets = [0, 0, 0], sizes = [2, 16, 32], strides = [1, 1, 1]} : vector<2x16x128xf32> to vector<2x16x32xf32>
    %184 = arith.truncf %181 : vector<2x8x32xf32> to vector<2x8x32xbf16>
    %185 = arith.truncf %182 : vector<2x16x32xf32> to vector<2x16x32xbf16>
    "tpu.trace_start"() <{level = 10 : i32, message = "bqc,bkc->bqk"}> : () -> ()
    %cst_64 = arith.constant dense<0.000000e+00> : vector<2x8x16xf32>
    %186 = tpu.matmul %184, %185, %cst_64 {dimension_numbers = #tpu.dot_dimension_numbers<[2], [2], [1], [1], [0, 0, 0, 1, 1, 1], [0], [0]>} : vector<2x8x32xbf16>, vector<2x16x32xbf16>, vector<2x8x16xf32> -> vector<2x8x16xf32>
    "tpu.trace_stop"() : () -> ()
    %187 = vector.broadcast %176 : vector<2x1x16xf32> to vector<2x8x16xf32>
    %188 = arith.addf %186, %187 : vector<2x8x16xf32>
    %cst_65 = arith.constant dense<0xFF800000> : vector<2x8xf32>
    %189 = vector.multi_reduction <maximumf>, %188, %cst_65 [2] : vector<2x8x16xf32> to vector<2x8xf32>
    %190 = vector.shape_cast %189 : vector<2x8xf32> to vector<2x8x1xf32>
    %191 = vector.broadcast %190 : vector<2x8x1xf32> to vector<2x8x16xf32>
    %192 = arith.subf %188, %191 : vector<2x8x16xf32>
    %193 = math.exp %192 : vector<2x8x16xf32>
    %cst_66 = arith.constant dense<0.000000e+00> : vector<2x8xf32>
    %194 = vector.multi_reduction <add>, %193, %cst_66 [2] : vector<2x8x16xf32> to vector<2x8xf32>
    %195 = vector.shape_cast %194 : vector<2x8xf32> to vector<2x8x1xf32>
    %196 = tpu.reciprocal %195 {approx = true} : vector<2x8x1xf32> -> vector<2x8x1xf32>
    %197 = vector.broadcast %196 : vector<2x8x1xf32> to vector<2x8x16xf32>
    %198 = arith.mulf %193, %197 : vector<2x8x16xf32>
    %199 = arith.truncf %198 : vector<2x8x16xf32> to vector<2x8x16xbf16>
    %200 = arith.truncf %183 : vector<2x16x32xf32> to vector<2x16x32xbf16>
    "tpu.trace_start"() <{level = 10 : i32, message = "bqk,bkc->bqc"}> : () -> ()
    %cst_67 = arith.constant dense<0.000000e+00> : vector<2x8x32xf32>
    %201 = tpu.matmul %199, %200, %cst_67 {dimension_numbers = #tpu.dot_dimension_numbers<[2], [1], [1], [2], [0, 0, 0, 1, 1, 2], [0], [0]>} : vector<2x8x16xbf16>, vector<2x16x32xbf16>, vector<2x8x32xf32> -> vector<2x8x32xf32>
    "tpu.trace_stop"() : () -> ()
    %202 = vector.shape_cast %201 : vector<2x8x32xf32> to vector<16x32xf32>
    %203 = arith.truncf %202 : vector<16x32xf32> to vector<16x32xbf16>
    %204 = vector.extract_strided_slice %177 {offsets = [0, 0], sizes = [32, 128], strides = [1, 1]} : vector<128x128xbf16> to vector<32x128xbf16>
    %cst_68 = arith.constant dense<0.000000e+00> : vector<16x128xf32>
    %205 = tpu.matmul %203, %204, %cst_68 {dimension_numbers = #tpu.dot_dimension_numbers<[1], [0], [0], [1], [0, 0, 1, 1], [], []>} : vector<16x32xbf16>, vector<32x128xbf16>, vector<16x128xf32> -> vector<16x128xf32>
    %206 = vector.extract_strided_slice %178 {offsets = [0, 0, 32], sizes = [2, 8, 32], strides = [1, 1, 1]} : vector<2x8x128xf32> to vector<2x8x32xf32>
    %207 = vector.extract_strided_slice %179 {offsets = [0, 0, 32], sizes = [2, 16, 32], strides = [1, 1, 1]} : vector<2x16x128xf32> to vector<2x16x32xf32>
    %208 = vector.extract_strided_slice %180 {offsets = [0, 0, 32], sizes = [2, 16, 32], strides = [1, 1, 1]} : vector<2x16x128xf32> to vector<2x16x32xf32>
    %209 = arith.truncf %206 : vector<2x8x32xf32> to vector<2x8x32xbf16>
    %210 = arith.truncf %207 : vector<2x16x32xf32> to vector<2x16x32xbf16>
    "tpu.trace_start"() <{level = 10 : i32, message = "bqc,bkc->bqk"}> : () -> ()
    %cst_69 = arith.constant dense<0.000000e+00> : vector<2x8x16xf32>
    %211 = tpu.matmul %209, %210, %cst_69 {dimension_numbers = #tpu.dot_dimension_numbers<[2], [2], [1], [1], [0, 0, 0, 1, 1, 1], [0], [0]>} : vector<2x8x32xbf16>, vector<2x16x32xbf16>, vector<2x8x16xf32> -> vector<2x8x16xf32>
    "tpu.trace_stop"() : () -> ()
    %212 = vector.broadcast %176 : vector<2x1x16xf32> to vector<2x8x16xf32>
    %213 = arith.addf %211, %212 : vector<2x8x16xf32>
    %cst_70 = arith.constant dense<0xFF800000> : vector<2x8xf32>
    %214 = vector.multi_reduction <maximumf>, %213, %cst_70 [2] : vector<2x8x16xf32> to vector<2x8xf32>
    %215 = vector.shape_cast %214 : vector<2x8xf32> to vector<2x8x1xf32>
    %216 = vector.broadcast %215 : vector<2x8x1xf32> to vector<2x8x16xf32>
    %217 = arith.subf %213, %216 : vector<2x8x16xf32>
    %218 = math.exp %217 : vector<2x8x16xf32>
    %cst_71 = arith.constant dense<0.000000e+00> : vector<2x8xf32>
    %219 = vector.multi_reduction <add>, %218, %cst_71 [2] : vector<2x8x16xf32> to vector<2x8xf32>
    %220 = vector.shape_cast %219 : vector<2x8xf32> to vector<2x8x1xf32>
    %221 = tpu.reciprocal %220 {approx = true} : vector<2x8x1xf32> -> vector<2x8x1xf32>
    %222 = vector.broadcast %221 : vector<2x8x1xf32> to vector<2x8x16xf32>
    %223 = arith.mulf %218, %222 : vector<2x8x16xf32>
    %224 = arith.truncf %223 : vector<2x8x16xf32> to vector<2x8x16xbf16>
    %225 = arith.truncf %208 : vector<2x16x32xf32> to vector<2x16x32xbf16>
    "tpu.trace_start"() <{level = 10 : i32, message = "bqk,bkc->bqc"}> : () -> ()
    %cst_72 = arith.constant dense<0.000000e+00> : vector<2x8x32xf32>
    %226 = tpu.matmul %224, %225, %cst_72 {dimension_numbers = #tpu.dot_dimension_numbers<[2], [1], [1], [2], [0, 0, 0, 1, 1, 2], [0], [0]>} : vector<2x8x16xbf16>, vector<2x16x32xbf16>, vector<2x8x32xf32> -> vector<2x8x32xf32>
    "tpu.trace_stop"() : () -> ()
    %227 = vector.shape_cast %226 : vector<2x8x32xf32> to vector<16x32xf32>
    %228 = arith.truncf %227 : vector<16x32xf32> to vector<16x32xbf16>
    %229 = vector.extract_strided_slice %177 {offsets = [32, 0], sizes = [32, 128], strides = [1, 1]} : vector<128x128xbf16> to vector<32x128xbf16>
    %cst_73 = arith.constant dense<0.000000e+00> : vector<16x128xf32>
    %230 = tpu.matmul %228, %229, %cst_73 {dimension_numbers = #tpu.dot_dimension_numbers<[1], [0], [0], [1], [0, 0, 1, 1], [], []>} : vector<16x32xbf16>, vector<32x128xbf16>, vector<16x128xf32> -> vector<16x128xf32>
    %231 = arith.addf %205, %230 : vector<16x128xf32>
    %232 = vector.extract_strided_slice %178 {offsets = [0, 0, 64], sizes = [2, 8, 32], strides = [1, 1, 1]} : vector<2x8x128xf32> to vector<2x8x32xf32>
    %233 = vector.extract_strided_slice %179 {offsets = [0, 0, 64], sizes = [2, 16, 32], strides = [1, 1, 1]} : vector<2x16x128xf32> to vector<2x16x32xf32>
    %234 = vector.extract_strided_slice %180 {offsets = [0, 0, 64], sizes = [2, 16, 32], strides = [1, 1, 1]} : vector<2x16x128xf32> to vector<2x16x32xf32>
    %235 = arith.truncf %232 : vector<2x8x32xf32> to vector<2x8x32xbf16>
    %236 = arith.truncf %233 : vector<2x16x32xf32> to vector<2x16x32xbf16>
    "tpu.trace_start"() <{level = 10 : i32, message = "bqc,bkc->bqk"}> : () -> ()
    %cst_74 = arith.constant dense<0.000000e+00> : vector<2x8x16xf32>
    %237 = tpu.matmul %235, %236, %cst_74 {dimension_numbers = #tpu.dot_dimension_numbers<[2], [2], [1], [1], [0, 0, 0, 1, 1, 1], [0], [0]>} : vector<2x8x32xbf16>, vector<2x16x32xbf16>, vector<2x8x16xf32> -> vector<2x8x16xf32>
    "tpu.trace_stop"() : () -> ()
    %238 = vector.broadcast %176 : vector<2x1x16xf32> to vector<2x8x16xf32>
    %239 = arith.addf %237, %238 : vector<2x8x16xf32>
    %cst_75 = arith.constant dense<0xFF800000> : vector<2x8xf32>
    %240 = vector.multi_reduction <maximumf>, %239, %cst_75 [2] : vector<2x8x16xf32> to vector<2x8xf32>
    %241 = vector.shape_cast %240 : vector<2x8xf32> to vector<2x8x1xf32>
    %242 = vector.broadcast %241 : vector<2x8x1xf32> to vector<2x8x16xf32>
    %243 = arith.subf %239, %242 : vector<2x8x16xf32>
    %244 = math.exp %243 : vector<2x8x16xf32>
    %cst_76 = arith.constant dense<0.000000e+00> : vector<2x8xf32>
    %245 = vector.multi_reduction <add>, %244, %cst_76 [2] : vector<2x8x16xf32> to vector<2x8xf32>
    %246 = vector.shape_cast %245 : vector<2x8xf32> to vector<2x8x1xf32>
    %247 = tpu.reciprocal %246 {approx = true} : vector<2x8x1xf32> -> vector<2x8x1xf32>
    %248 = vector.broadcast %247 : vector<2x8x1xf32> to vector<2x8x16xf32>
    %249 = arith.mulf %244, %248 : vector<2x8x16xf32>
    %250 = arith.truncf %249 : vector<2x8x16xf32> to vector<2x8x16xbf16>
    %251 = arith.truncf %234 : vector<2x16x32xf32> to vector<2x16x32xbf16>
    "tpu.trace_start"() <{level = 10 : i32, message = "bqk,bkc->bqc"}> : () -> ()
    %cst_77 = arith.constant dense<0.000000e+00> : vector<2x8x32xf32>
    %252 = tpu.matmul %250, %251, %cst_77 {dimension_numbers = #tpu.dot_dimension_numbers<[2], [1], [1], [2], [0, 0, 0, 1, 1, 2], [0], [0]>} : vector<2x8x16xbf16>, vector<2x16x32xbf16>, vector<2x8x32xf32> -> vector<2x8x32xf32>
    "tpu.trace_stop"() : () -> ()
    %253 = vector.shape_cast %252 : vector<2x8x32xf32> to vector<16x32xf32>
    %254 = arith.truncf %253 : vector<16x32xf32> to vector<16x32xbf16>
    %255 = vector.extract_strided_slice %177 {offsets = [64, 0], sizes = [32, 128], strides = [1, 1]} : vector<128x128xbf16> to vector<32x128xbf16>
    %cst_78 = arith.constant dense<0.000000e+00> : vector<16x128xf32>
    %256 = tpu.matmul %254, %255, %cst_78 {dimension_numbers = #tpu.dot_dimension_numbers<[1], [0], [0], [1], [0, 0, 1, 1], [], []>} : vector<16x32xbf16>, vector<32x128xbf16>, vector<16x128xf32> -> vector<16x128xf32>
    %257 = arith.addf %231, %256 : vector<16x128xf32>
    %258 = vector.extract_strided_slice %178 {offsets = [0, 0, 96], sizes = [2, 8, 32], strides = [1, 1, 1]} : vector<2x8x128xf32> to vector<2x8x32xf32>
    %259 = vector.extract_strided_slice %179 {offsets = [0, 0, 96], sizes = [2, 16, 32], strides = [1, 1, 1]} : vector<2x16x128xf32> to vector<2x16x32xf32>
    %260 = vector.extract_strided_slice %180 {offsets = [0, 0, 96], sizes = [2, 16, 32], strides = [1, 1, 1]} : vector<2x16x128xf32> to vector<2x16x32xf32>
    %261 = arith.truncf %258 : vector<2x8x32xf32> to vector<2x8x32xbf16>
    %262 = arith.truncf %259 : vector<2x16x32xf32> to vector<2x16x32xbf16>
    "tpu.trace_start"() <{level = 10 : i32, message = "bqc,bkc->bqk"}> : () -> ()
    %cst_79 = arith.constant dense<0.000000e+00> : vector<2x8x16xf32>
    %263 = tpu.matmul %261, %262, %cst_79 {dimension_numbers = #tpu.dot_dimension_numbers<[2], [2], [1], [1], [0, 0, 0, 1, 1, 1], [0], [0]>} : vector<2x8x32xbf16>, vector<2x16x32xbf16>, vector<2x8x16xf32> -> vector<2x8x16xf32>
    "tpu.trace_stop"() : () -> ()
    %264 = vector.broadcast %176 : vector<2x1x16xf32> to vector<2x8x16xf32>
    %265 = arith.addf %263, %264 : vector<2x8x16xf32>
    %cst_80 = arith.constant dense<0xFF800000> : vector<2x8xf32>
    %266 = vector.multi_reduction <maximumf>, %265, %cst_80 [2] : vector<2x8x16xf32> to vector<2x8xf32>
    %267 = vector.shape_cast %266 : vector<2x8xf32> to vector<2x8x1xf32>
    %268 = vector.broadcast %267 : vector<2x8x1xf32> to vector<2x8x16xf32>
    %269 = arith.subf %265, %268 : vector<2x8x16xf32>
    %270 = math.exp %269 : vector<2x8x16xf32>
    %cst_81 = arith.constant dense<0.000000e+00> : vector<2x8xf32>
    %271 = vector.multi_reduction <add>, %270, %cst_81 [2] : vector<2x8x16xf32> to vector<2x8xf32>
    %272 = vector.shape_cast %271 : vector<2x8xf32> to vector<2x8x1xf32>
    %273 = tpu.reciprocal %272 {approx = true} : vector<2x8x1xf32> -> vector<2x8x1xf32>
    %274 = vector.broadcast %273 : vector<2x8x1xf32> to vector<2x8x16xf32>
    %275 = arith.mulf %270, %274 : vector<2x8x16xf32>
    %276 = arith.truncf %275 : vector<2x8x16xf32> to vector<2x8x16xbf16>
    %277 = arith.truncf %260 : vector<2x16x32xf32> to vector<2x16x32xbf16>
    "tpu.trace_start"() <{level = 10 : i32, message = "bqk,bkc->bqc"}> : () -> ()
    %cst_82 = arith.constant dense<0.000000e+00> : vector<2x8x32xf32>
    %278 = tpu.matmul %276, %277, %cst_82 {dimension_numbers = #tpu.dot_dimension_numbers<[2], [1], [1], [2], [0, 0, 0, 1, 1, 2], [0], [0]>} : vector<2x8x16xbf16>, vector<2x16x32xbf16>, vector<2x8x32xf32> -> vector<2x8x32xf32>
    "tpu.trace_stop"() : () -> ()
    %279 = vector.shape_cast %278 : vector<2x8x32xf32> to vector<16x32xf32>
    %280 = arith.truncf %279 : vector<16x32xf32> to vector<16x32xbf16>
    %281 = vector.extract_strided_slice %177 {offsets = [96, 0], sizes = [32, 128], strides = [1, 1]} : vector<128x128xbf16> to vector<32x128xbf16>
    %cst_83 = arith.constant dense<0.000000e+00> : vector<16x128xf32>
    %282 = tpu.matmul %280, %281, %cst_83 {dimension_numbers = #tpu.dot_dimension_numbers<[1], [0], [0], [1], [0, 0, 1, 1], [], []>} : vector<16x32xbf16>, vector<32x128xbf16>, vector<16x128xf32> -> vector<16x128xf32>
    %283 = arith.addf %257, %282 : vector<16x128xf32>
    %c0_84 = arith.constant 0 : index
    %c0_85 = arith.constant 0 : index
    %284 = vector.load %arg17[%c0_84, %c0_85] : memref<1x128xf32, #tpu.memory_space<vmem>>, vector<1x128xf32>
    %285 = vector.broadcast %284 : vector<1x128xf32> to vector<16x128xf32>
    %286 = arith.addf %283, %285 : vector<16x128xf32>
    %287 = arith.addf %157, %286 : vector<16x128xf32>
    %c0_86 = arith.constant 0 : index
    %c0_87 = arith.constant 0 : index
    %288 = vector.load %arg18[%c0_86, %c0_87] : memref<1x128xf32, #tpu.memory_space<vmem>>, vector<1x128xf32>
    %c0_88 = arith.constant 0 : index
    %c0_89 = arith.constant 0 : index
    %289 = vector.load %arg19[%c0_88, %c0_89] : memref<1x128xf32, #tpu.memory_space<vmem>>, vector<1x128xf32>
    %cst_90 = arith.constant dense<0.000000e+00> : vector<16xf32>
    %290 = vector.multi_reduction <add>, %287, %cst_90 [1] : vector<16x128xf32> to vector<16xf32>
    %291 = vector.shape_cast %290 : vector<16xf32> to vector<16x1xf32>
    %cst_91 = arith.constant 1.280000e+02 : f32
    %292 = vector.broadcast %cst_91 : f32 to vector<16x1xf32>
    %293 = arith.divf %291, %292 : vector<16x1xf32>
    %294 = vector.broadcast %293 : vector<16x1xf32> to vector<16x128xf32>
    %295 = arith.subf %287, %294 : vector<16x128xf32>
    %296 = arith.mulf %295, %295 : vector<16x128xf32>
    %cst_92 = arith.constant dense<0.000000e+00> : vector<16xf32>
    %297 = vector.multi_reduction <add>, %296, %cst_92 [1] : vector<16x128xf32> to vector<16xf32>
    %298 = vector.shape_cast %297 : vector<16xf32> to vector<16x1xf32>
    %cst_93 = arith.constant 1.280000e+02 : f32
    %299 = vector.broadcast %cst_93 : f32 to vector<16x1xf32>
    %300 = arith.divf %298, %299 : vector<16x1xf32>
    %cst_94 = arith.constant 9.99999974E-6 : f32
    %301 = vector.broadcast %cst_94 : f32 to vector<16x1xf32>
    %302 = arith.addf %300, %301 : vector<16x1xf32>
    %303 = math.rsqrt %302 : vector<16x1xf32>
    %304 = vector.broadcast %303 : vector<16x1xf32> to vector<16x128xf32>
    %305 = arith.mulf %295, %304 : vector<16x128xf32>
    %306 = vector.broadcast %288 : vector<1x128xf32> to vector<16x128xf32>
    %307 = arith.mulf %305, %306 : vector<16x128xf32>
    %308 = vector.broadcast %289 : vector<1x128xf32> to vector<16x128xf32>
    %309 = arith.addf %307, %308 : vector<16x128xf32>
    %310 = arith.addf %157, %309 : vector<16x128xf32>
    %c0_95 = arith.constant 0 : index
    %c0_96 = arith.constant 0 : index
    %311 = vector.load %arg20[%c0_95, %c0_96] : memref<1x128xf32, #tpu.memory_space<vmem>>, vector<1x128xf32>
    %c0_97 = arith.constant 0 : index
    %c0_98 = arith.constant 0 : index
    %312 = vector.load %arg21[%c0_97, %c0_98] : memref<1x128xf32, #tpu.memory_space<vmem>>, vector<1x128xf32>
    %cst_99 = arith.constant dense<0.000000e+00> : vector<16xf32>
    %313 = vector.multi_reduction <add>, %310, %cst_99 [1] : vector<16x128xf32> to vector<16xf32>
    %314 = vector.shape_cast %313 : vector<16xf32> to vector<16x1xf32>
    %cst_100 = arith.constant 1.280000e+02 : f32
    %315 = vector.broadcast %cst_100 : f32 to vector<16x1xf32>
    %316 = arith.divf %314, %315 : vector<16x1xf32>
    %317 = vector.broadcast %316 : vector<16x1xf32> to vector<16x128xf32>
    %318 = arith.subf %310, %317 : vector<16x128xf32>
    %319 = arith.mulf %318, %318 : vector<16x128xf32>
    %cst_101 = arith.constant dense<0.000000e+00> : vector<16xf32>
    %320 = vector.multi_reduction <add>, %319, %cst_101 [1] : vector<16x128xf32> to vector<16xf32>
    %321 = vector.shape_cast %320 : vector<16xf32> to vector<16x1xf32>
    %cst_102 = arith.constant 1.280000e+02 : f32
    %322 = vector.broadcast %cst_102 : f32 to vector<16x1xf32>
    %323 = arith.divf %321, %322 : vector<16x1xf32>
    %cst_103 = arith.constant 9.99999974E-6 : f32
    %324 = vector.broadcast %cst_103 : f32 to vector<16x1xf32>
    %325 = arith.addf %323, %324 : vector<16x1xf32>
    %326 = math.rsqrt %325 : vector<16x1xf32>
    %327 = vector.broadcast %326 : vector<16x1xf32> to vector<16x128xf32>
    %328 = arith.mulf %318, %327 : vector<16x128xf32>
    %329 = vector.broadcast %311 : vector<1x128xf32> to vector<16x128xf32>
    %330 = arith.mulf %328, %329 : vector<16x128xf32>
    %331 = vector.broadcast %312 : vector<1x128xf32> to vector<16x128xf32>
    %332 = arith.addf %330, %331 : vector<16x128xf32>
    %c0_104 = arith.constant 0 : index
    %c0_105 = arith.constant 0 : index
    %333 = vector.load %arg22[%c0_104, %c0_105] : memref<128x256xbf16, #tpu.memory_space<vmem>>, vector<128x256xbf16>
    %334 = arith.truncf %332 : vector<16x128xf32> to vector<16x128xbf16>
    %cst_106 = arith.constant dense<0.000000e+00> : vector<16x256xf32>
    %335 = tpu.matmul %334, %333, %cst_106 {dimension_numbers = #tpu.dot_dimension_numbers<[1], [0], [0], [1], [0, 0, 1, 1], [], []>} : vector<16x128xbf16>, vector<128x256xbf16>, vector<16x256xf32> -> vector<16x256xf32>
    %c0_107 = arith.constant 0 : index
    %c0_108 = arith.constant 0 : index
    %336 = vector.load %arg23[%c0_107, %c0_108] : memref<1x256xf32, #tpu.memory_space<vmem>>, vector<1x256xf32>
    %337 = vector.broadcast %336 : vector<1x256xf32> to vector<16x256xf32>
    %338 = arith.addf %335, %337 : vector<16x256xf32>
    %cst_109 = arith.constant 0.000000e+00 : f32
    %339 = vector.broadcast %cst_109 : f32 to vector<16x256xf32>
    %340 = arith.maximumf %338, %339 : vector<16x256xf32>
    %c0_110 = arith.constant 0 : index
    %c0_111 = arith.constant 0 : index
    %341 = vector.load %arg24[%c0_110, %c0_111] : memref<256x128xbf16, #tpu.memory_space<vmem>>, vector<256x128xbf16>
    %342 = arith.truncf %340 : vector<16x256xf32> to vector<16x256xbf16>
    %cst_112 = arith.constant dense<0.000000e+00> : vector<16x128xf32>
    %343 = tpu.matmul %342, %341, %cst_112 {dimension_numbers = #tpu.dot_dimension_numbers<[1], [0], [0], [1], [0, 0, 1, 1], [], []>} : vector<16x256xbf16>, vector<256x128xbf16>, vector<16x128xf32> -> vector<16x128xf32>
    %c0_113 = arith.constant 0 : index
    %c0_114 = arith.constant 0 : index
    %344 = vector.load %arg25[%c0_113, %c0_114] : memref<1x128xf32, #tpu.memory_space<vmem>>, vector<1x128xf32>
    %345 = vector.broadcast %344 : vector<1x128xf32> to vector<16x128xf32>
    %346 = arith.addf %343, %345 : vector<16x128xf32>
    %347 = arith.addf %332, %346 : vector<16x128xf32>
    %c0_115 = arith.constant 0 : index
    %c0_116 = arith.constant 0 : index
    %348 = vector.load %arg26[%c0_115, %c0_116] : memref<1x128xf32, #tpu.memory_space<vmem>>, vector<1x128xf32>
    %c0_117 = arith.constant 0 : index
    %c0_118 = arith.constant 0 : index
    %349 = vector.load %arg27[%c0_117, %c0_118] : memref<1x128xf32, #tpu.memory_space<vmem>>, vector<1x128xf32>
    %cst_119 = arith.constant dense<0.000000e+00> : vector<16xf32>
    %350 = vector.multi_reduction <add>, %347, %cst_119 [1] : vector<16x128xf32> to vector<16xf32>
    %351 = vector.shape_cast %350 : vector<16xf32> to vector<16x1xf32>
    %cst_120 = arith.constant 1.280000e+02 : f32
    %352 = vector.broadcast %cst_120 : f32 to vector<16x1xf32>
    %353 = arith.divf %351, %352 : vector<16x1xf32>
    %354 = vector.broadcast %353 : vector<16x1xf32> to vector<16x128xf32>
    %355 = arith.subf %347, %354 : vector<16x128xf32>
    %356 = arith.mulf %355, %355 : vector<16x128xf32>
    %cst_121 = arith.constant dense<0.000000e+00> : vector<16xf32>
    %357 = vector.multi_reduction <add>, %356, %cst_121 [1] : vector<16x128xf32> to vector<16xf32>
    %358 = vector.shape_cast %357 : vector<16xf32> to vector<16x1xf32>
    %cst_122 = arith.constant 1.280000e+02 : f32
    %359 = vector.broadcast %cst_122 : f32 to vector<16x1xf32>
    %360 = arith.divf %358, %359 : vector<16x1xf32>
    %cst_123 = arith.constant 9.99999974E-6 : f32
    %361 = vector.broadcast %cst_123 : f32 to vector<16x1xf32>
    %362 = arith.addf %360, %361 : vector<16x1xf32>
    %363 = math.rsqrt %362 : vector<16x1xf32>
    %364 = vector.broadcast %363 : vector<16x1xf32> to vector<16x128xf32>
    %365 = arith.mulf %355, %364 : vector<16x128xf32>
    %366 = vector.broadcast %348 : vector<1x128xf32> to vector<16x128xf32>
    %367 = arith.mulf %365, %366 : vector<16x128xf32>
    %368 = vector.broadcast %349 : vector<1x128xf32> to vector<16x128xf32>
    %369 = arith.addf %367, %368 : vector<16x128xf32>
    %c0_124 = arith.constant 0 : index
    %c0_125 = arith.constant 0 : index
    %370 = vector.load %arg28[%c0_124, %c0_125] : memref<16x128xf32, #tpu.memory_space<vmem>>, vector<16x128xf32>
    tpu.vector_store %arg28[%c0_124, %c0_125], %369 {strides = array<i32>} : memref<16x128xf32, #tpu.memory_space<vmem>>, vector<16x128xf32>,
    return
  }
  func.func @transform_0(%arg0: i32) -> (i32, i32) {
    %c0_i32 = arith.constant 0 : i32
    %c0_i32_0 = arith.constant 0 : i32
    %c0_i32_1 = arith.constant 0 : i32
    return %c0_i32, %c0_i32_0 : i32, i32
  }
  func.func @transform_1(%arg0: i32) -> (i32, i32) {
    %c0_i32 = arith.constant 0 : i32
    %c0_i32_0 = arith.constant 0 : i32
    %c0_i32_1 = arith.constant 0 : i32
    return %c0_i32, %c0_i32_0 : i32, i32
  }
  func.func @transform_2(%arg0: i32) -> (i32, i32) {
    %c0_i32 = arith.constant 0 : i32
    %c0_i32_0 = arith.constant 0 : i32
    %c0_i32_1 = arith.constant 0 : i32
    return %c0_i32, %c0_i32_0 : i32, i32
  }
  func.func @transform_3(%arg0: i32) -> (i32, i32) {
    %c0_i32 = arith.constant 0 : i32
    %c0_i32_0 = arith.constant 0 : i32
    %c0_i32_1 = arith.constant 0 : i32
    return %c0_i32, %c0_i32_0 : i32, i32
  }
  func.func @transform_4(%arg0: i32) -> (i32, i32) {
    %c0_i32 = arith.constant 0 : i32
    %c0_i32_0 = arith.constant 0 : i32
    %c0_i32_1 = arith.constant 0 : i32
    return %c0_i32, %c0_i32_0 : i32, i32
  }
  func.func @transform_5(%arg0: i32) -> (i32, i32) {
    %c0_i32 = arith.constant 0 : i32
    %c0_i32_0 = arith.constant 0 : i32
    %c0_i32_1 = arith.constant 0 : i32
    return %c0_i32, %c0_i32_0 : i32, i32
  }
  func.func @transform_6(%arg0: i32) -> (i32, i32) {
    %c0_i32 = arith.constant 0 : i32
    %c0_i32_0 = arith.constant 0 : i32
    %c0_i32_1 = arith.constant 0 : i32
    return %c0_i32, %c0_i32_0 : i32, i32
  }
  func.func @transform_7(%arg0: i32) -> (i32, i32) {
    %c0_i32 = arith.constant 0 : i32
    %c0_i32_0 = arith.constant 0 : i32
    %c0_i32_1 = arith.constant 0 : i32
    return %c0_i32, %c0_i32_0 : i32, i32
  }
  func.func @transform_8(%arg0: i32) -> (i32, i32) {
    %c0_i32 = arith.constant 0 : i32
    %c0_i32_0 = arith.constant 0 : i32
    %c0_i32_1 = arith.constant 0 : i32
    return %c0_i32, %c0_i32_0 : i32, i32
  }
  func.func @transform_9(%arg0: i32) -> (i32, i32) {
    %c0_i32 = arith.constant 0 : i32
    %c0_i32_0 = arith.constant 0 : i32
    %c0_i32_1 = arith.constant 0 : i32
    return %c0_i32, %c0_i32_0 : i32, i32
  }
  func.func @transform_10(%arg0: i32) -> (i32, i32) {
    %c0_i32 = arith.constant 0 : i32
    %c0_i32_0 = arith.constant 0 : i32
    %c0_i32_1 = arith.constant 0 : i32
    return %c0_i32, %c0_i32_0 : i32, i32
  }
  func.func @transform_11(%arg0: i32) -> (i32, i32) {
    %c0_i32 = arith.constant 0 : i32
    %c0_i32_0 = arith.constant 0 : i32
    %c0_i32_1 = arith.constant 0 : i32
    return %c0_i32, %c0_i32_0 : i32, i32
  }
  func.func @transform_12(%arg0: i32) -> (i32, i32) {
    %c0_i32 = arith.constant 0 : i32
    %c0_i32_0 = arith.constant 0 : i32
    %c0_i32_1 = arith.constant 0 : i32
    return %c0_i32, %c0_i32_0 : i32, i32
  }
  func.func @transform_13(%arg0: i32) -> (i32, i32) {
    %c0_i32 = arith.constant 0 : i32
    %c0_i32_0 = arith.constant 0 : i32
    %c0_i32_1 = arith.constant 0 : i32
    return %c0_i32, %c0_i32_0 : i32, i32
  }
  func.func @transform_14(%arg0: i32) -> (i32, i32) {
    %c0_i32 = arith.constant 0 : i32
    %c0_i32_0 = arith.constant 0 : i32
    %c0_i32_1 = arith.constant 0 : i32
    return %c0_i32, %c0_i32_0 : i32, i32
  }
  func.func @transform_15(%arg0: i32) -> (i32, i32) {
    %c0_i32 = arith.constant 0 : i32
    %c0_i32_0 = arith.constant 0 : i32
    %c0_i32_1 = arith.constant 0 : i32
    return %c0_i32, %c0_i32_0 : i32, i32
  }
  func.func @transform_16(%arg0: i32) -> (i32, i32) {
    %c0_i32 = arith.constant 0 : i32
    %c0_i32_0 = arith.constant 0 : i32
    %c0_i32_1 = arith.constant 0 : i32
    return %c0_i32, %c0_i32_0 : i32, i32
  }
  func.func @transform_17(%arg0: i32) -> (i32, i32) {
    %c0_i32 = arith.constant 0 : i32
    %c0_i32_0 = arith.constant 0 : i32
    %c0_i32_1 = arith.constant 0 : i32
    return %c0_i32, %c0_i32_0 : i32, i32
  }
  func.func @transform_18(%arg0: i32) -> (i32, i32) {
    %c0_i32 = arith.constant 0 : i32
    %c0_i32_0 = arith.constant 0 : i32
    %c0_i32_1 = arith.constant 0 : i32
    return %c0_i32, %c0_i32_0 : i32, i32
  }
  func.func @transform_19(%arg0: i32) -> (i32, i32) {
    %c0_i32 = arith.constant 0 : i32
    %c0_i32_0 = arith.constant 0 : i32
    %c0_i32_1 = arith.constant 0 : i32
    return %c0_i32, %c0_i32_0 : i32, i32
  }
  func.func @transform_20(%arg0: i32) -> (i32, i32) {
    %c0_i32 = arith.constant 0 : i32
    %c0_i32_0 = arith.constant 0 : i32
    %c0_i32_1 = arith.constant 0 : i32
    return %c0_i32, %c0_i32_0 : i32, i32
  }
  func.func @transform_21(%arg0: i32) -> (i32, i32) {
    %c0_i32 = arith.constant 0 : i32
    %c0_i32_0 = arith.constant 0 : i32
    %c0_i32_1 = arith.constant 0 : i32
    return %c0_i32, %c0_i32_0 : i32, i32
  }
  func.func @transform_22(%arg0: i32) -> (i32, i32) {
    %c0_i32 = arith.constant 0 : i32
    %c0_i32_0 = arith.constant 0 : i32
    %c0_i32_1 = arith.constant 0 : i32
    return %c0_i32, %c0_i32_0 : i32, i32
  }
  func.func @transform_23(%arg0: i32) -> (i32, i32) {
    %c0_i32 = arith.constant 0 : i32
    %c0_i32_0 = arith.constant 0 : i32
    %c0_i32_1 = arith.constant 0 : i32
    return %c0_i32, %c0_i32_0 : i32, i32
  }
  func.func @transform_24(%arg0: i32) -> (i32, i32) {
    %c0_i32 = arith.constant 0 : i32
    %c0_i32_0 = arith.constant 0 : i32
    %c0_i32_1 = arith.constant 0 : i32
    return %c0_i32, %c0_i32_0 : i32, i32
  }
  func.func @transform_25(%arg0: i32) -> (i32, i32) {
    %c0_i32 = arith.constant 0 : i32
    %c0_i32_0 = arith.constant 0 : i32
    %c0_i32_1 = arith.constant 0 : i32
    return %c0_i32, %c0_i32_0 : i32, i32
  }
  func.func @transform_26(%arg0: i32) -> (i32, i32) {
    %c0_i32 = arith.constant 0 : i32
    %c0_i32_0 = arith.constant 0 : i32
    %c0_i32_1 = arith.constant 0 : i32
    return %c0_i32, %c0_i32_0 : i32, i32
  }
  func.func @transform_27(%arg0: i32) -> (i32, i32) {
    %c0_i32 = arith.constant 0 : i32
    %c0_i32_0 = arith.constant 0 : i32
    %c0_i32_1 = arith.constant 0 : i32
    return %c0_i32, %c0_i32_0 : i32, i32
  }
}

</mosaic_0001>

<llo_original>
// kernel: decoder_layer_forward.1
$region0: #{decoder_layer_forward.1}
  #allocation0 [shape = 'u32[]', space=smem, size = 0x4, offset = 0x4, fixed_abs, tag = 'smem constant byte address 0x4 - core index']
  #allocation1 [shape = 'u32[144,128]{1,0:T(1,128)}', space=vmem, size = 0x12000, scoped, tag = 'internal scratch']
  %s0 = inlined_call_operand.vmem [shape: f32[16,128], index: 0, kind: input, shape index: {}]
  %s1 = inlined_call_operand.vmem [shape: f32[32,128], index: 1, kind: input, shape index: {}]
  %s2 = inlined_call_operand.vmem [shape: f32[2,16], index: 2, kind: input, shape index: {}]
  %s3 = inlined_call_operand.hbm [shape: bf16[128,384], index: 3, kind: input, shape index: {}]
  %s4 = inlined_call_operand.vmem [shape: f32[1,384], index: 4, kind: input, shape index: {}]
  %s5 = inlined_call_operand.hbm [shape: bf16[128,128], index: 5, kind: input, shape index: {}]
  %s6 = inlined_call_operand.vmem [shape: f32[1,128], index: 6, kind: input, shape index: {}]
  %s7 = inlined_call_operand.vmem [shape: f32[1,128], index: 7, kind: input, shape index: {}]
  %s8 = inlined_call_operand.vmem [shape: f32[1,128], index: 8, kind: input, shape index: {}]
  %s9 = inlined_call_operand.vmem [shape: f32[1,128], index: 9, kind: input, shape index: {}]
  %s10 = inlined_call_operand.vmem [shape: f32[1,128], index: 10, kind: input, shape index: {}]
  %s11 = inlined_call_operand.hbm [shape: bf16[128,128], index: 11, kind: input, shape index: {}]
  %s12 = inlined_call_operand.vmem [shape: f32[1,128], index: 12, kind: input, shape index: {}]
  %s13 = inlined_call_operand.hbm [shape: bf16[128,256], index: 13, kind: input, shape index: {}]
  %s14 = inlined_call_operand.vmem [shape: f32[1,256], index: 14, kind: input, shape index: {}]
  %s15 = inlined_call_operand.hbm [shape: bf16[128,128], index: 15, kind: input, shape index: {}]
  %s16 = inlined_call_operand.vmem [shape: f32[1,128], index: 16, kind: input, shape index: {}]
  %s17 = inlined_call_operand.vmem [shape: f32[1,128], index: 17, kind: input, shape index: {}]
  %s18 = inlined_call_operand.vmem [shape: f32[1,128], index: 18, kind: input, shape index: {}]
  %s19 = inlined_call_operand.vmem [shape: f32[1,128], index: 19, kind: input, shape index: {}]
  %s20 = inlined_call_operand.vmem [shape: f32[1,128], index: 20, kind: input, shape index: {}]
  %s21 = inlined_call_operand.hbm [shape: bf16[128,256], index: 21, kind: input, shape index: {}]
  %s22 = inlined_call_operand.vmem [shape: f32[1,256], index: 22, kind: input, shape index: {}]
  %s23 = inlined_call_operand.hbm [shape: bf16[256,128], index: 23, kind: input, shape index: {}]
  %s24 = inlined_call_operand.vmem [shape: f32[1,128], index: 24, kind: input, shape index: {}]
  %s25 = inlined_call_operand.vmem [shape: f32[1,128], index: 25, kind: input, shape index: {}]
  %s26 = inlined_call_operand.vmem [shape: f32[1,128], index: 26, kind: input, shape index: {}]
  %s27 = inlined_call_operand.hbm [shape: f32[16,128], index: 27, kind: output, shape index: {}]
  %s28 = sld [smem:[#allocation0]]
  $region146: #{decoder_layer_forward.1} parent=0
    _
  %s30 = ssub.s32 1, %s28
  %s31 = scalar_select 0, %s30, %s28
  $region1: #{decoder_layer_forward.1} parent=0
    #allocation2 [shape = 'u8[98304]{0}', space=vmem, size = 0x18000, scoped, tag = 'input window, operand 3, single buffered']
    #allocation3 [shape = 's32[1]{0}', space=sflag, size = 0x4, scoped, tag = 'scoped memory for decoder_layer_forward.1']
    #allocation4 [shape = 's32[1]{0}', space=sflag, size = 0x4, scoped, tag = 'scoped memory for decoder_layer_forward.1']
    #allocation5 [shape = 'u8[32768]{0}', space=vmem, size = 0x8000, scoped, tag = 'input window, operand 5, single buffered']
    #allocation6 [shape = 's32[1]{0}', space=sflag, size = 0x4, scoped, tag = 'scoped memory for decoder_layer_forward.1']
    #allocation7 [shape = 'u8[32768]{0}', space=vmem, size = 0x8000, scoped, tag = 'input window, operand 11, single buffered']
    #allocation8 [shape = 'u8[65536]{0}', space=vmem, size = 0x10000, scoped, tag = 'input window, operand 13, single buffered']
    #allocation9 [shape = 's32[1]{0}', space=sflag, size = 0x4, scoped, tag = 'scoped memory for decoder_layer_forward.1']
    #allocation10 [shape = 'u8[32768]{0}', space=vmem, size = 0x8000, scoped, tag = 'input window, operand 15, single buffered']
    #allocation11 [shape = 'u8[65536]{0}', space=vmem, size = 0x10000, scoped, tag = 'input window, operand 21, single buffered']
    #allocation12 [shape = 's32[1]{0}', space=sflag, size = 0x4, scoped, tag = 'scoped memory for decoder_layer_forward.1']
    #allocation13 [shape = 'u8[65536]{0}', space=vmem, size = 0x10000, scoped, tag = 'input window, operand 23, single buffered']
    #allocation14 [shape = 'u8[8192]{0}', space=vmem, size = 0x2000, scoped, tag = 'output window, operand 0, single buffered']
    %32 = vsyncpa [#allocation3], 0
    %33 = vsyncpa [#allocation6], 0
    %34 = vsyncpa [#allocation9], 0
    %35 = vsyncpa [#allocation12], 0
    %36 = vsyncpa [#allocation4], 0
    // Predicated region
    $region2: #{decoder_layer_forward.1} parent=1 // pred_check
      _
    $region3: #{decoder_layer_forward.1} parent=1 // pred_check_branch
      %38 = sbr.rel (0) target = $region5
    $region4: #{decoder_layer_forward.1} parent=1 // pred_region
      _
    $region5: #{decoder_layer_forward.1} parent=1 // pred_fallthru
      _
    // Predicated region
    $region6: #{decoder_layer_forward.1} parent=1 // pred_check
      _
    $region7: #{decoder_layer_forward.1} parent=1 // pred_check_branch
      %40 = sbr.rel (0) target = $region9
    $region8: #{decoder_layer_forward.1} parent=1 // pred_region
      _
    $region9: #{decoder_layer_forward.1} parent=1 // pred_fallthru
      _
    // Predicated region
    $region10: #{decoder_layer_forward.1} parent=1 // pred_check
      _
    $region11: #{decoder_layer_forward.1} parent=1 // pred_check_branch
      %42 = sbr.rel (0) target = $region13
    $region12: #{decoder_layer_forward.1} parent=1 // pred_region
      _
    $region13: #{decoder_layer_forward.1} parent=1 // pred_fallthru
      _
    // Predicated region
    $region14: #{decoder_layer_forward.1} parent=1 // pred_check
      _
    $region15: #{decoder_layer_forward.1} parent=1 // pred_check_branch
      %44 = sbr.rel (0) target = $region17
    $region16: #{decoder_layer_forward.1} parent=1 // pred_region
      %s46 = ssub.s32 3072, 3072
      %47 = vsyncadd [#allocation3], %s46
      %s48 = sshll.u32 [#allocation2], 4
      %s49 = int_to_ptr.vmem [resolvable:$true] %s48
      %54 = dma.hbm_to_vmem [thread:$0]  %s3, 3072, %s49, [#allocation3], 192, 192, 12
    $region17: #{decoder_layer_forward.1} parent=1 // pred_fallthru
      _
    // Predicated region
    $region18: #{decoder_layer_forward.1} parent=1 // pred_check
      _
    $region19: #{decoder_layer_forward.1} parent=1 // pred_check_branch
      %56 = sbr.rel (0) target = $region21
    $region20: #{decoder_layer_forward.1} parent=1 // pred_region
      _
    $region21: #{decoder_layer_forward.1} parent=1 // pred_fallthru
      _
    // Predicated region
    $region22: #{decoder_layer_forward.1} parent=1 // pred_check
      _
    $region23: #{decoder_layer_forward.1} parent=1 // pred_check_branch
      %58 = sbr.rel (0) target = $region25
    $region24: #{decoder_layer_forward.1} parent=1 // pred_region
      %s60 = ssub.s32 1024, 1024
      %61 = vsyncadd [#allocation6], %s60
      %s62 = sshll.u32 [#allocation5], 4
      %s63 = int_to_ptr.vmem [resolvable:$true] %s62
      %68 = dma.hbm_to_vmem [thread:$0]  %s5, 1024, %s63, [#allocation6], 64, 64, 4
    $region25: #{decoder_layer_forward.1} parent=1 // pred_fallthru
      _
    // Predicated region
    $region26: #{decoder_layer_forward.1} parent=1 // pred_check
      _
    $region27: #{decoder_layer_forward.1} parent=1 // pred_check_branch
      %70 = sbr.rel (0) target = $region29
    $region28: #{decoder_layer_forward.1} parent=1 // pred_region
      _
    $region29: #{decoder_layer_forward.1} parent=1 // pred_fallthru
      _
    // Predicated region
    $region30: #{decoder_layer_forward.1} parent=1 // pred_check
      _
    $region31: #{decoder_layer_forward.1} parent=1 // pred_check_branch
      %72 = sbr.rel (0) target = $region33
    $region32: #{decoder_layer_forward.1} parent=1 // pred_region
      _
    $region33: #{decoder_layer_forward.1} parent=1 // pred_fallthru
      _
    // Predicated region
    $region34: #{decoder_layer_forward.1} parent=1 // pred_check
      _
    $region35: #{decoder_layer_forward.1} parent=1 // pred_check_branch
      %74 = sbr.rel (0) target = $region37
    $region36: #{decoder_layer_forward.1} parent=1 // pred_region
      _
    $region37: #{decoder_layer_forward.1} parent=1 // pred_fallthru
      _
    // Predicated region
    $region38: #{decoder_layer_forward.1} parent=1 // pred_check
      _
    $region39: #{decoder_layer_forward.1} parent=1 // pred_check_branch
      %76 = sbr.rel (0) target = $region41
    $region40: #{decoder_layer_forward.1} parent=1 // pred_region
      _
    $region41: #{decoder_layer_forward.1} parent=1 // pred_fallthru
      _
    // Predicated region
    $region42: #{decoder_layer_forward.1} parent=1 // pred_check
      _
    $region43: #{decoder_layer_forward.1} parent=1 // pred_check_branch
      %78 = sbr.rel (0) target = $region45
    $region44: #{decoder_layer_forward.1} parent=1 // pred_region
      _
    $region45: #{decoder_layer_forward.1} parent=1 // pred_fallthru
      _
    // Predicated region
    $region46: #{decoder_layer_forward.1} parent=1 // pred_check
      _
    $region47: #{decoder_layer_forward.1} parent=1 // pred_check_branch
      %80 = sbr.rel (0) target = $region49
    $region48: #{decoder_layer_forward.1} parent=1 // pred_region
      %s82 = ssub.s32 1024, 1024
      %83 = vsyncadd [#allocation6], %s82
      %s84 = sshll.u32 [#allocation7], 4
      %s85 = int_to_ptr.vmem [resolvable:$true] %s84
      %90 = dma.hbm_to_vmem [thread:$0]  %s11, 1024, %s85, [#allocation6], 64, 64, 4
    $region49: #{decoder_layer_forward.1} parent=1 // pred_fallthru
      _
    // Predicated region
    $region50: #{decoder_layer_forward.1} parent=1 // pred_check
      _
    $region51: #{decoder_layer_forward.1} parent=1 // pred_check_branch
      %92 = sbr.rel (0) target = $region53
    $region52: #{decoder_layer_forward.1} parent=1 // pred_region
      _
    $region53: #{decoder_layer_forward.1} parent=1 // pred_fallthru
      _
    // Predicated region
    $region54: #{decoder_layer_forward.1} parent=1 // pred_check
      _
    $region55: #{decoder_layer_forward.1} parent=1 // pred_check_branch
      %94 = sbr.rel (0) target = $region57
    $region56: #{decoder_layer_forward.1} parent=1 // pred_region
      %s96 = ssub.s32 2048, 2048
      %97 = vsyncadd [#allocation9], %s96
      %s98 = sshll.u32 [#allocation8], 4
      %s99 = int_to_ptr.vmem [resolvable:$true] %s98
      %104 = dma.hbm_to_vmem [thread:$0]  %s13, 2048, %s99, [#allocation9], 128, 128, 8
    $region57: #{decoder_layer_forward.1} parent=1 // pred_fallthru
      _
    // Predicated region
    $region58: #{decoder_layer_forward.1} parent=1 // pred_check
      _
    $region59: #{decoder_layer_forward.1} parent=1 // pred_check_branch
      %106 = sbr.rel (0) target = $region61
    $region60: #{decoder_layer_forward.1} parent=1 // pred_region
      _
    $region61: #{decoder_layer_forward.1} parent=1 // pred_fallthru
      _
    // Predicated region
    $region62: #{decoder_layer_forward.1} parent=1 // pred_check
      _
    $region63: #{decoder_layer_forward.1} parent=1 // pred_check_branch
      %108 = sbr.rel (0) target = $region65
    $region64: #{decoder_layer_forward.1} parent=1 // pred_region
      %s110 = ssub.s32 1024, 1024
      %111 = vsyncadd [#allocation9], %s110
      %s112 = sshll.u32 [#allocation10], 4
      %s113 = int_to_ptr.vmem [resolvable:$true] %s112
      %118 = dma.hbm_to_vmem [thread:$0]  %s15, 1024, %s113, [#allocation9], 64, 64, 4
    $region65: #{decoder_layer_forward.1} parent=1 // pred_fallthru
      _
    // Predicated region
    $region66: #{decoder_layer_forward.1} parent=1 // pred_check
      _
    $region67: #{decoder_layer_forward.1} parent=1 // pred_check_branch
      %120 = sbr.rel (0) target = $region69
    $region68: #{decoder_layer_forward.1} parent=1 // pred_region
      _
    $region69: #{decoder_layer_forward.1} parent=1 // pred_fallthru
      _
    // Predicated region
    $region70: #{decoder_layer_forward.1} parent=1 // pred_check
      _
    $region71: #{decoder_layer_forward.1} parent=1 // pred_check_branch
      %122 = sbr.rel (0) target = $region73
    $region72: #{decoder_layer_forward.1} parent=1 // pred_region
      _
    $region73: #{decoder_layer_forward.1} parent=1 // pred_fallthru
      _
    // Predicated region
    $region74: #{decoder_layer_forward.1} parent=1 // pred_check
      _
    $region75: #{decoder_layer_forward.1} parent=1 // pred_check_branch
      %124 = sbr.rel (0) target = $region77
    $region76: #{decoder_layer_forward.1} parent=1 // pred_region
      _
    $region77: #{decoder_layer_forward.1} parent=1 // pred_fallthru
      _
    // Predicated region
    $region78: #{decoder_layer_forward.1} parent=1 // pred_check
      _
    $region79: #{decoder_layer_forward.1} parent=1 // pred_check_branch
      %126 = sbr.rel (0) target = $region81
    $region80: #{decoder_layer_forward.1} parent=1 // pred_region
      _
    $region81: #{decoder_layer_forward.1} parent=1 // pred_fallthru
      _
    // Predicated region
    $region82: #{decoder_layer_forward.1} parent=1 // pred_check
      _
    $region83: #{decoder_layer_forward.1} parent=1 // pred_check_branch
      %128 = sbr.rel (0) target = $region85
    $region84: #{decoder_layer_forward.1} parent=1 // pred_region
      _
    $region85: #{decoder_layer_forward.1} parent=1 // pred_fallthru
      _
    // Predicated region
    $region86: #{decoder_layer_forward.1} parent=1 // pred_check
      _
    $region87: #{decoder_layer_forward.1} parent=1 // pred_check_branch
      %130 = sbr.rel (0) target = $region89
    $region88: #{decoder_layer_forward.1} parent=1 // pred_region
      %s132 = ssub.s32 2048, 2048
      %133 = vsyncadd [#allocation12], %s132
      %s134 = sshll.u32 [#allocation11], 4
      %s135 = int_to_ptr.vmem [resolvable:$true] %s134
      %140 = dma.hbm_to_vmem [thread:$0]  %s21, 2048, %s135, [#allocation12], 128, 128, 8
    $region89: #{decoder_layer_forward.1} parent=1 // pred_fallthru
      _
    // Predicated region
    $region90: #{decoder_layer_forward.1} parent=1 // pred_check
      _
    $region91: #{decoder_layer_forward.1} parent=1 // pred_check_branch
      %142 = sbr.rel (0) target = $region93
    $region92: #{decoder_layer_forward.1} parent=1 // pred_region
      _
    $region93: #{decoder_layer_forward.1} parent=1 // pred_fallthru
      _
    // Predicated region
    $region94: #{decoder_layer_forward.1} parent=1 // pred_check
      _
    $region95: #{decoder_layer_forward.1} parent=1 // pred_check_branch
      %144 = sbr.rel (0) target = $region97
    $region96: #{decoder_layer_forward.1} parent=1 // pred_region
      %s146 = ssub.s32 2048, 2048
      %147 = vsyncadd [#allocation12], %s146
      %s148 = sshll.u32 [#allocation13], 4
      %s149 = int_to_ptr.vmem [resolvable:$true] %s148
      %154 = dma.hbm_to_vmem [thread:$0]  %s23, 2048, %s149, [#allocation12], 64, 64, 4
    $region97: #{decoder_layer_forward.1} parent=1 // pred_fallthru
      _
    // Predicated region
    $region98: #{decoder_layer_forward.1} parent=1 // pred_check
      _
    $region99: #{decoder_layer_forward.1} parent=1 // pred_check_branch
      %156 = sbr.rel (0) target = $region101
    $region100: #{decoder_layer_forward.1} parent=1 // pred_region
      _
    $region101: #{decoder_layer_forward.1} parent=1 // pred_fallthru
      _
    // Predicated region
    $region102: #{decoder_layer_forward.1} parent=1 // pred_check
      _
    $region103: #{decoder_layer_forward.1} parent=1 // pred_check_branch
      %158 = sbr.rel (0) target = $region105
    $region104: #{decoder_layer_forward.1} parent=1 // pred_region
      _
    $region105: #{decoder_layer_forward.1} parent=1 // pred_fallthru
      _
    // Predicated region
    $region106: #{decoder_layer_forward.1} parent=1 // pred_check
      _
    $region107: #{decoder_layer_forward.1} parent=1 // pred_check_branch
      %160 = sbr.rel (0) target = $region109
    $region108: #{decoder_layer_forward.1} parent=1 // pred_region
      _
    $region109: #{decoder_layer_forward.1} parent=1 // pred_fallthru
      _
    // Predicated region
    $region110: #{decoder_layer_forward.1} parent=1 // pred_check
      _
    $region111: #{decoder_layer_forward.1} parent=1 // pred_check_branch
      %162 = sbr.rel (0) target = $region113
    $region112: #{decoder_layer_forward.1} parent=1 // pred_region
      %163 = dma.done [#allocation3], 3072
    $region113: #{decoder_layer_forward.1} parent=1 // pred_fallthru
      _
    // Predicated region
    $region114: #{decoder_layer_forward.1} parent=1 // pred_check
      _
    $region115: #{decoder_layer_forward.1} parent=1 // pred_check_branch
      %165 = sbr.rel (0) target = $region117
    $region116: #{decoder_layer_forward.1} parent=1 // pred_region
      %166 = dma.done [#allocation6], 1024
    $region117: #{decoder_layer_forward.1} parent=1 // pred_fallthru
      _
    // Predicated region
    $region118: #{decoder_layer_forward.1} parent=1 // pred_check
      _
    $region119: #{decoder_layer_forward.1} parent=1 // pred_check_branch
      %168 = sbr.rel (0) target = $region121
    $region120: #{decoder_layer_forward.1} parent=1 // pred_region
      %169 = dma.done [#allocation6], 1024
    $region121: #{decoder_layer_forward.1} parent=1 // pred_fallthru
      _
    // Predicated region
    $region122: #{decoder_layer_forward.1} parent=1 // pred_check
      _
    $region123: #{decoder_layer_forward.1} parent=1 // pred_check_branch
      %171 = sbr.rel (0) target = $region125
    $region124: #{decoder_layer_forward.1} parent=1 // pred_region
      %172 = dma.done [#allocation9], 2048
    $region125: #{decoder_layer_forward.1} parent=1 // pred_fallthru
      _
    // Predicated region
    $region126: #{decoder_layer_forward.1} parent=1 // pred_check
      _
    $region127: #{decoder_layer_forward.1} parent=1 // pred_check_branch
      %174 = sbr.rel (0) target = $region129
    $region128: #{decoder_layer_forward.1} parent=1 // pred_region
      %175 = dma.done [#allocation9], 1024
    $region129: #{decoder_layer_forward.1} parent=1 // pred_fallthru
      _
    // Predicated region
    $region130: #{decoder_layer_forward.1} parent=1 // pred_check
      _
    $region131: #{decoder_layer_forward.1} parent=1 // pred_check_branch
      %177 = sbr.rel (0) target = $region133
    $region132: #{decoder_layer_forward.1} parent=1 // pred_region
      %178 = dma.done [#allocation12], 2048
    $region133: #{decoder_layer_forward.1} parent=1 // pred_fallthru
      _
    // Predicated region
    $region134: #{decoder_layer_forward.1} parent=1 // pred_check
      _
    $region135: #{decoder_layer_forward.1} parent=1 // pred_check_branch
      %180 = sbr.rel (0) target = $region137
    $region136: #{decoder_layer_forward.1} parent=1 // pred_region
      %181 = dma.done [#allocation12], 2048
    $region137: #{decoder_layer_forward.1} parent=1 // pred_fallthru
      _
    %v183 = vld [vmem:[%s0] sm:$0xff]
    %v184 = vld [vmem:[%s0 + $0x8] sm:$0xff]
    %v185 = vld [vmem:[#allocation2] sm:$0xff]
    %v186 = vld [vmem:[#allocation2 + $0x8] sm:$0xf]
    %v187 = vld [vmem:[#allocation2 + $0xc] sm:$0xff]
    %v188 = vld [vmem:[#allocation2 + $0x14] sm:$0xf]
    %v189 = vld [vmem:[#allocation2 + $0x18] sm:$0xff]
    %v190 = vld [vmem:[#allocation2 + $0x20] sm:$0xf]
    %v191 = vld [vmem:[#allocation2 + $0x24] sm:$0xff]
    %v192 = vld [vmem:[#allocation2 + $0x2c] sm:$0xf]
    %v193 = vld [vmem:[#allocation2 + $0x30] sm:$0xff]
    %v194 = vld [vmem:[#allocation2 + $0x38] sm:$0xf]
    %v195 = vld [vmem:[#allocation2 + $0x3c] sm:$0xff]
    %v196 = vld [vmem:[#allocation2 + $0x44] sm:$0xf]
    %v197 = vld [vmem:[#allocation2 + $0x48] sm:$0xff]
    %v198 = vld [vmem:[#allocation2 + $0x50] sm:$0xf]
    %v199 = vld [vmem:[#allocation2 + $0x54] sm:$0xff]
    %v200 = vld [vmem:[#allocation2 + $0x5c] sm:$0xf]
    %v201 = vld [vmem:[#allocation2 + $0x60] sm:$0xff]
    %v202 = vld [vmem:[#allocation2 + $0x68] sm:$0xf]
    %v203 = vld [vmem:[#allocation2 + $0x6c] sm:$0xff]
    %v204 = vld [vmem:[#allocation2 + $0x74] sm:$0xf]
    %v205 = vld [vmem:[#allocation2 + $0x78] sm:$0xff]
    %v206 = vld [vmem:[#allocation2 + $0x80] sm:$0xf]
    %v207 = vld [vmem:[#allocation2 + $0x84] sm:$0xff]
    %v208 = vld [vmem:[#allocation2 + $0x8c] sm:$0xf]
    %v209 = vld [vmem:[#allocation2 + $0x90] sm:$0xff]
    %v210 = vld [vmem:[#allocation2 + $0x98] sm:$0xf]
    %v211 = vld [vmem:[#allocation2 + $0x9c] sm:$0xff]
    %v212 = vld [vmem:[#allocation2 + $0xa4] sm:$0xf]
    %v213 = vld [vmem:[#allocation2 + $0xa8] sm:$0xff]
    %v214 = vld [vmem:[#allocation2 + $0xb0] sm:$0xf]
    %v215 = vld [vmem:[#allocation2 + $0xb4] sm:$0xff]
    %v216 = vld [vmem:[#allocation2 + $0xbc] sm:$0xf]
    %v217 = vpack.c.bf16 %v184, %v183
    %v218 = vld [vmem:[%s4] sm:$0x7]
    %v220 = vlaneseq
    %v221 = vshrl.u32 %v220, 7
    %v222 = vsub.s32 0, %v221
    %v223 = vrot.slane %v218, %v222
    %v224 = vlaneseq
    %v225 = vshrl.u32 %v224, 7
    %v226 = vsub.s32 1, %v225
    %v227 = vrot.slane %v218, %v226
    %v228 = vlaneseq
    %v229 = vshrl.u32 %v228, 7
    %v230 = vsub.s32 2, %v229
    %v231 = vrot.slane %v218, %v230
    %v267 = vunpack.c.l.b16 %v185
    %v268 = vunpack.c.h.b16 %v185
    %v269 = vunpack.c.l.b16 %v186
    %v270 = vunpack.c.l.b16 %v187
    %v271 = vunpack.c.h.b16 %v187
    %v272 = vunpack.c.l.b16 %v188
    %v273 = vunpack.c.l.b16 %v189
    %v274 = vunpack.c.h.b16 %v189
    %v275 = vunpack.c.l.b16 %v190
    %v276 = vunpack.c.l.b16 %v191
    %v277 = vunpack.c.h.b16 %v191
    %v278 = vunpack.c.l.b16 %v192
    %v279 = vunpack.c.l.b16 %v193
    %v280 = vunpack.c.h.b16 %v193
    %v281 = vunpack.c.l.b16 %v194
    %v282 = vunpack.c.l.b16 %v195
    %v283 = vunpack.c.h.b16 %v195
    %v284 = vunpack.c.l.b16 %v196
    %v285 = vunpack.c.l.b16 %v197
    %v286 = vunpack.c.h.b16 %v197
    %v287 = vunpack.c.l.b16 %v198
    %v288 = vunpack.c.l.b16 %v199
    %v289 = vunpack.c.h.b16 %v199
    %v290 = vunpack.c.l.b16 %v200
    %v291 = vunpack.c.l.b16 %v201
    %v292 = vunpack.c.h.b16 %v201
    %v293 = vunpack.c.l.b16 %v202
    %v294 = vunpack.c.l.b16 %v203
    %v295 = vunpack.c.h.b16 %v203
    %v296 = vunpack.c.l.b16 %v204
    %v297 = vunpack.c.l.b16 %v205
    %v298 = vunpack.c.h.b16 %v205
    %v299 = vunpack.c.l.b16 %v206
    %v300 = vunpack.c.l.b16 %v207
    %v301 = vunpack.c.h.b16 %v207
    %v302 = vunpack.c.l.b16 %v208
    %v303 = vunpack.c.l.b16 %v209
    %v304 = vunpack.c.h.b16 %v209
    %v305 = vunpack.c.l.b16 %v210
    %v306 = vunpack.c.l.b16 %v211
    %v307 = vunpack.c.h.b16 %v211
    %v308 = vunpack.c.l.b16 %v212
    %v309 = vunpack.c.l.b16 %v213
    %v310 = vunpack.c.h.b16 %v213
    %v311 = vunpack.c.l.b16 %v214
    %v312 = vunpack.c.l.b16 %v215
    %v313 = vunpack.c.h.b16 %v215
    %v314 = vunpack.c.l.b16 %v216
    %v315 = vpack.c.b16 %v270, %v267
    %v316 = vpack.c.b16 %v271, %v268
    %v317 = vpack.c.b16 %v272, %v269
    %v318 = vpack.c.b16 %v276, %v273
    %v319 = vpack.c.b16 %v277, %v274
    %v320 = vpack.c.b16 %v278, %v275
    %v321 = vpack.c.b16 %v282, %v279
    %v322 = vpack.c.b16 %v283, %v280
    %v323 = vpack.c.b16 %v284, %v281
    %v324 = vpack.c.b16 %v288, %v285
    %v325 = vpack.c.b16 %v289, %v286
    %v326 = vpack.c.b16 %v290, %v287
    %v327 = vpack.c.b16 %v294, %v291
    %v328 = vpack.c.b16 %v295, %v292
    %v329 = vpack.c.b16 %v296, %v293
    %v330 = vpack.c.b16 %v300, %v297
    %v331 = vpack.c.b16 %v301, %v298
    %v332 = vpack.c.b16 %v302, %v299
    %v333 = vpack.c.b16 %v306, %v303
    %v334 = vpack.c.b16 %v307, %v304
    %v335 = vpack.c.b16 %v308, %v305
    %v336 = vpack.c.b16 %v312, %v309
    %v337 = vpack.c.b16 %v313, %v310
    %v338 = vpack.c.b16 %v314, %v311
    %363 = vmatprep.subr.bf16.mxu0 %v316
    %364 = vmatpush1.bf16.msra.mxu0 %v315
    %365 = vmatprep.subr.bf16.mxu0 %v319
    %366 = vmatpush1.bf16.msra.mxu0 %v318
    %367 = vmatprep.subr.bf16.mxu0 %v322
    %368 = vmatpush1.bf16.msra.mxu0 %v321
    %369 = vmatprep.subr.bf16.mxu0 %v325
    %370 = vmatpush1.bf16.msra.mxu0 %v324
    %371 = vmatprep.subr.bf16.mxu0 %v328
    %372 = vmatpush1.bf16.msra.mxu0 %v327
    %373 = vmatprep.subr.bf16.mxu0 %v331
    %374 = vmatpush1.bf16.msra.mxu0 %v330
    %375 = vmatprep.subr.bf16.mxu0 %v334
    %376 = vmatpush1.bf16.msra.mxu0 %v333
    %377 = vmatprep.subr.bf16.mxu0 %v337
    %378 = vmatpush1.bf16.msra.mxu0 %v336
    %379 = vmatprep.subr.bf16.mxu0 0
    %380 = vmatpush1.bf16.msra.mxu0 0
    %381 = vmatprep.subr.bf16.mxu0 0
    %382 = vmatpush1.bf16.msra.mxu0 0
    %383 = vmatprep.subr.bf16.mxu0 0
    %384 = vmatpush1.bf16.msra.mxu0 0
    %385 = vmatprep.subr.bf16.mxu0 0
    %386 = vmatpush1.bf16.msra.mxu0 0
    %387 = vmatprep.subr.bf16.mxu0 0
    %388 = vmatpush1.bf16.msra.mxu0 0
    %389 = vmatprep.subr.bf16.mxu0 0
    %390 = vmatpush1.bf16.msra.mxu0 0
    %391 = vmatprep.subr.bf16.mxu0 0
    %392 = vmatpush1.bf16.msra.mxu0 0
    %393 = vmatprep.subr.bf16.mxu0 0
    %394 = vmatpush1.bf16.msra.mxu0 0
    %395 = vmatprep.mubr.bf16.mxu0 0
    %396 = vmatmul.mubr.bf16.gmra.mrb[0].mxu0 %v217
    %v397 = vpop.f32.mrb[0].mxu0
    %v398 = vadd.f32 %v223, %v397
    %v399 = vpop.f32.mrb[0].mxu0
    %v400 = vadd.f32 %v227, %v399
    %v401 = vpop.f32.mrb[0].mxu0
    %v402 = vadd.f32 %v223, %v401
    %v403 = vpop.f32.mrb[0].mxu0
    %v404 = vadd.f32 %v227, %v403
    %405 = vdwg.mxu0
    %406 = vmatprep.subr.bf16.mxu0 0
    %407 = vmatpush1.bf16.msra.mxu0 %v317
    %408 = vmatprep.subr.bf16.mxu0 0
    %409 = vmatpush1.bf16.msra.mxu0 %v320
    %410 = vmatprep.subr.bf16.mxu0 0
    %411 = vmatpush1.bf16.msra.mxu0 %v323
    %412 = vmatprep.subr.bf16.mxu0 0
    %413 = vmatpush1.bf16.msra.mxu0 %v326
    %414 = vmatprep.subr.bf16.mxu0 0
    %415 = vmatpush1.bf16.msra.mxu0 %v329
    %416 = vmatprep.subr.bf16.mxu0 0
    %417 = vmatpush1.bf16.msra.mxu0 %v332
    %418 = vmatprep.subr.bf16.mxu0 0
    %419 = vmatpush1.bf16.msra.mxu0 %v335
    %420 = vmatprep.subr.bf16.mxu0 0
    %421 = vmatpush1.bf16.msra.mxu0 %v338
    %422 = vmatprep.subr.bf16.mxu0 0
    %423 = vmatpush1.bf16.msra.mxu0 0
    %424 = vmatprep.subr.bf16.mxu0 0
    %425 = vmatpush1.bf16.msra.mxu0 0
    %426 = vmatprep.subr.bf16.mxu0 0
    %427 = vmatpush1.bf16.msra.mxu0 0
    %428 = vmatprep.subr.bf16.mxu0 0
    %429 = vmatpush1.bf16.msra.mxu0 0
    %430 = vmatprep.subr.bf16.mxu0 0
    %431 = vmatpush1.bf16.msra.mxu0 0
    %432 = vmatprep.subr.bf16.mxu0 0
    %433 = vmatpush1.bf16.msra.mxu0 0
    %434 = vmatprep.subr.bf16.mxu0 0
    %435 = vmatpush1.bf16.msra.mxu0 0
    %436 = vmatprep.subr.bf16.mxu0 0
    %437 = vmatpush1.bf16.msra.mxu0 0
    %438 = vmatprep.mubr.bf16.mxu0 0
    %439 = vmatmul.mubr.bf16.gmra.mrb[0].mxu0 %v217
    %v440 = vpop.f32.mrb[0].mxu0
    %v441 = vadd.f32 %v231, %v440
    %v442 = vpop.f32.mrb[0].mxu0
    %v443 = vpop.f32.mrb[0].mxu0
    %v444 = vadd.f32 %v231, %v443
    %v445 = vpop.f32.mrb[0].mxu0
    %446 = vdwg.mxu0
    %v447 = vld [vmem:[#allocation5] sm:$0xf]
    %v448 = vld [vmem:[#allocation5 + $0x4] sm:$0xf]
    %v449 = vld [vmem:[#allocation5 + $0x8] sm:$0xf]
    %v450 = vld [vmem:[#allocation5 + $0xc] sm:$0xf]
    %v451 = vld [vmem:[#allocation5 + $0x10] sm:$0xf]
    %v452 = vld [vmem:[#allocation5 + $0x14] sm:$0xf]
    %v453 = vld [vmem:[#allocation5 + $0x18] sm:$0xf]
    %v454 = vld [vmem:[#allocation5 + $0x1c] sm:$0xf]
    %v455 = vld [vmem:[#allocation5 + $0x20] sm:$0xf]
    %v456 = vld [vmem:[#allocation5 + $0x24] sm:$0xf]
    %v457 = vld [vmem:[#allocation5 + $0x28] sm:$0xf]
    %v458 = vld [vmem:[#allocation5 + $0x2c] sm:$0xf]
    %v459 = vld [vmem:[#allocation5 + $0x30] sm:$0xf]
    %v460 = vld [vmem:[#allocation5 + $0x34] sm:$0xf]
    %v461 = vld [vmem:[#allocation5 + $0x38] sm:$0xf]
    %v462 = vld [vmem:[#allocation5 + $0x3c] sm:$0xf]
    %v463 = vpack.c.bf16 %v398, %v398
    %v464 = vpack.c.bf16 %v402, %v402
    %v465 = vpack.c.bf16 %v400, %v400
    %v466 = vpack.c.bf16 %v404, %v404
    %vm467 = vcmask 261120
    %v469 = vsel %vm467, %v463, 0
    %v472 = vsel %vm467, %v465, 0
    %474 = vmatprep.subr.bf16.mxu0 0
    %475 = vmatpush1.bf16.xpose.msra.mxu0 %v472
    %476 = vmatprep.subr.bf16.mxu0 0
    %477 = vmatpush1.bf16.xpose.msra.mxu0 0
    %478 = vmatprep.subr.bf16.mxu0 0
    %479 = vmatpush1.bf16.xpose.msra.mxu0 0
    %480 = vmatprep.subr.bf16.mxu0 0
    %481 = vmatpush1.bf16.xpose.msra.mxu0 0
    %482 = vmatprep.subr.bf16.mxu0 0
    %483 = vmatpush1.bf16.xpose.msra.mxu0 0
    %484 = vmatprep.subr.bf16.mxu0 0
    %485 = vmatpush1.bf16.xpose.msra.mxu0 0
    %486 = vmatprep.subr.bf16.mxu0 0
    %487 = vmatpush1.bf16.xpose.msra.mxu0 0
    %488 = vmatprep.subr.bf16.mxu0 0
    %489 = vmatpush1.bf16.xpose.msra.mxu0 0
    %490 = vmatprep.subr.bf16.mxu0 0
    %491 = vmatpush1.bf16.xpose.msra.mxu0 0
    %492 = vmatprep.subr.bf16.mxu0 0
    %493 = vmatpush1.bf16.xpose.msra.mxu0 0
    %494 = vmatprep.subr.bf16.mxu0 0
    %495 = vmatpush1.bf16.xpose.msra.mxu0 0
    %496 = vmatprep.subr.bf16.mxu0 0
    %497 = vmatpush1.bf16.xpose.msra.mxu0 0
    %498 = vmatprep.subr.bf16.mxu0 0
    %499 = vmatpush1.bf16.xpose.msra.mxu0 0
    %500 = vmatprep.subr.bf16.mxu0 0
    %501 = vmatpush1.bf16.xpose.msra.mxu0 0
    %502 = vmatprep.subr.bf16.mxu0 0
    %503 = vmatpush1.bf16.xpose.msra.mxu0 0
    %504 = vmatprep.subr.bf16.mxu0 0
    %505 = vmatpush1.bf16.xpose.msra.mxu0 0
    %506 = vmatprep.mubr.bf16.mxu0 0
    %507 = vmatmul.mubr.bf16.gmra.mrb[0].mxu0 %v469
    %v508 = vpop.f32.mrb[0].mxu0
    %v509 = vadd.f32 0.0, %v508
    %v510 = vpop.f32.mrb[0].mxu0
    %v511 = vpop.f32.mrb[0].mxu0
    %v512 = vpop.f32.mrb[0].mxu0
    %513 = vdwg.mxu0
    %v515 = vsel %vm467, %v464, 0
    %v518 = vsel %vm467, %v466, 0
    %520 = vmatprep.subr.bf16.mxu0 0
    %521 = vmatpush1.bf16.xpose.msra.mxu0 %v518
    %522 = vmatprep.subr.bf16.mxu0 0
    %523 = vmatpush1.bf16.xpose.msra.mxu0 0
    %524 = vmatprep.subr.bf16.mxu0 0
    %525 = vmatpush1.bf16.xpose.msra.mxu0 0
    %526 = vmatprep.subr.bf16.mxu0 0
    %527 = vmatpush1.bf16.xpose.msra.mxu0 0
    %528 = vmatprep.subr.bf16.mxu0 0
    %529 = vmatpush1.bf16.xpose.msra.mxu0 0
    %530 = vmatprep.subr.bf16.mxu0 0
    %531 = vmatpush1.bf16.xpose.msra.mxu0 0
    %532 = vmatprep.subr.bf16.mxu0 0
    %533 = vmatpush1.bf16.xpose.msra.mxu0 0
    %534 = vmatprep.subr.bf16.mxu0 0
    %535 = vmatpush1.bf16.xpose.msra.mxu0 0
    %536 = vmatprep.subr.bf16.mxu0 0
    %537 = vmatpush1.bf16.xpose.msra.mxu0 0
    %538 = vmatprep.subr.bf16.mxu0 0
    %539 = vmatpush1.bf16.xpose.msra.mxu0 0
    %540 = vmatprep.subr.bf16.mxu0 0
    %541 = vmatpush1.bf16.xpose.msra.mxu0 0
    %542 = vmatprep.subr.bf16.mxu0 0
    %543 = vmatpush1.bf16.xpose.msra.mxu0 0
    %544 = vmatprep.subr.bf16.mxu0 0
    %545 = vmatpush1.bf16.xpose.msra.mxu0 0
    %546 = vmatprep.subr.bf16.mxu0 0
    %547 = vmatpush1.bf16.xpose.msra.mxu0 0
    %548 = vmatprep.subr.bf16.mxu0 0
    %549 = vmatpush1.bf16.xpose.msra.mxu0 0
    %550 = vmatprep.subr.bf16.mxu0 0
    %551 = vmatpush1.bf16.xpose.msra.mxu0 0
    %552 = vmatprep.mubr.bf16.mxu0 0
    %553 = vmatmul.mubr.bf16.gmra.mrb[0].mxu0 %v515
    %v554 = vpop.f32.mrb[0].mxu0
    %v555 = vadd.f32 0.0, %v554
    %v556 = vpop.f32.mrb[0].mxu0
    %v557 = vpop.f32.mrb[0].mxu0
    %v558 = vpop.f32.mrb[0].mxu0
    %559 = vdwg.mxu0
    %vm560 = vcmask 64512
    %v561 = vsel %vm560, %v509, -inf
    %562 = vmax.xlane.f32.xlu0 %v561
    %v563 = vpop.xlane.xlu0 %562
    %v564 = vsel %vm560, %v555, -inf
    %565 = vmax.xlane.f32.xlu0 %v564
    %v566 = vpop.xlane.xlu0 %565
    %v567 = vsub.f32 %v509, %v563
    %v568 = vsub.f32 %v555, %v566
    %v569 = vmul.f32 %v567, 1.442695
    %v570 = vpow.pop %v569
    %v571 = vmul.f32 %v568, 1.442695
    %v572 = vpow.pop %v571
    %v573 = vsel %vm560, %v570, 0.0
    %574 = vadd.xlane.f32.xlu0 %v573
    %v575 = vpop.xlane.xlu0 %574
    %v576 = vsel %vm560, %v572, 0.0
    %577 = vadd.xlane.f32.xlu0 %v576
    %v578 = vpop.xlane.xlu0 %577
    %v579 = vrcp.pop %v575
    %v580 = vrcp.pop %v578
    %v581 = vmul.f32 %v570, %v579
    %v582 = vmul.f32 %v572, %v580
    %v583 = vpack.c.bf16 %v581, %v581
    %v584 = vpack.c.bf16 %v582, %v582
    %v585 = vpack.c.bf16 %v441, %v441
    %v586 = vpack.c.bf16 %v444, %v444
    %v588 = vsel %vm560, %v583, 0
    %vm590 = vcmask 1043456
    %v592 = vsel %vm590, %v585, 0
    %594 = vmatprep.subr.bf16.mxu0 0
    %595 = vmatpush1.bf16.msra.mxu0 %v592
    %596 = vmatprep.subr.bf16.mxu0 0
    %597 = vmatpush1.bf16.msra.mxu0 0
    %598 = vmatprep.subr.bf16.mxu0 0
    %599 = vmatpush1.bf16.msra.mxu0 0
    %600 = vmatprep.subr.bf16.mxu0 0
    %601 = vmatpush1.bf16.msra.mxu0 0
    %602 = vmatprep.subr.bf16.mxu0 0
    %603 = vmatpush1.bf16.msra.mxu0 0
    %604 = vmatprep.subr.bf16.mxu0 0
    %605 = vmatpush1.bf16.msra.mxu0 0
    %606 = vmatprep.subr.bf16.mxu0 0
    %607 = vmatpush1.bf16.msra.mxu0 0
    %608 = vmatprep.subr.bf16.mxu0 0
    %609 = vmatpush1.bf16.msra.mxu0 0
    %610 = vmatprep.subr.bf16.mxu0 0
    %611 = vmatpush1.bf16.msra.mxu0 0
    %612 = vmatprep.subr.bf16.mxu0 0
    %613 = vmatpush1.bf16.msra.mxu0 0
    %614 = vmatprep.subr.bf16.mxu0 0
    %615 = vmatpush1.bf16.msra.mxu0 0
    %616 = vmatprep.subr.bf16.mxu0 0
    %617 = vmatpush1.bf16.msra.mxu0 0
    %618 = vmatprep.subr.bf16.mxu0 0
    %619 = vmatpush1.bf16.msra.mxu0 0
    %620 = vmatprep.subr.bf16.mxu0 0
    %621 = vmatpush1.bf16.msra.mxu0 0
    %622 = vmatprep.subr.bf16.mxu0 0
    %623 = vmatpush1.bf16.msra.mxu0 0
    %624 = vmatprep.subr.bf16.mxu0 0
    %625 = vmatpush1.bf16.msra.mxu0 0
    %626 = vmatprep.mubr.bf16.mxu0 0
    %627 = vmatmul.mubr.bf16.gmra.mrb[0].mxu0 %v588
    %v628 = vpop.f32.mrb[0].mxu0
    %v629 = vadd.f32 0.0, %v628
    %v630 = vpop.f32.mrb[0].mxu0
    %v631 = vpop.f32.mrb[0].mxu0
    %v632 = vpop.f32.mrb[0].mxu0
    %633 = vdwg.mxu0
    %v635 = vsel %vm560, %v584, 0
    %v638 = vsel %vm590, %v586, 0
    %640 = vmatprep.subr.bf16.mxu0 0
    %641 = vmatpush1.bf16.msra.mxu0 %v638
    %642 = vmatprep.subr.bf16.mxu0 0
    %643 = vmatpush1.bf16.msra.mxu0 0
    %644 = vmatprep.subr.bf16.mxu0 0
    %645 = vmatpush1.bf16.msra.mxu0 0
    %646 = vmatprep.subr.bf16.mxu0 0
    %647 = vmatpush1.bf16.msra.mxu0 0
    %648 = vmatprep.subr.bf16.mxu0 0
    %649 = vmatpush1.bf16.msra.mxu0 0
    %650 = vmatprep.subr.bf16.mxu0 0
    %651 = vmatpush1.bf16.msra.mxu0 0
    %652 = vmatprep.subr.bf16.mxu0 0
    %653 = vmatpush1.bf16.msra.mxu0 0
    %654 = vmatprep.subr.bf16.mxu0 0
    %655 = vmatpush1.bf16.msra.mxu0 0
    %656 = vmatprep.subr.bf16.mxu0 0
    %657 = vmatpush1.bf16.msra.mxu0 0
    %658 = vmatprep.subr.bf16.mxu0 0
    %659 = vmatpush1.bf16.msra.mxu0 0
    %660 = vmatprep.subr.bf16.mxu0 0
    %661 = vmatpush1.bf16.msra.mxu0 0
    %662 = vmatprep.subr.bf16.mxu0 0
    %663 = vmatpush1.bf16.msra.mxu0 0
    %664 = vmatprep.subr.bf16.mxu0 0
    %665 = vmatpush1.bf16.msra.mxu0 0
    %666 = vmatprep.subr.bf16.mxu0 0
    %667 = vmatpush1.bf16.msra.mxu0 0
    %668 = vmatprep.subr.bf16.mxu0 0
    %669 = vmatpush1.bf16.msra.mxu0 0
    %670 = vmatprep.subr.bf16.mxu0 0
    %671 = vmatpush1.bf16.msra.mxu0 0
    %672 = vmatprep.mubr.bf16.mxu0 0
    %673 = vmatmul.mubr.bf16.gmra.mrb[0].mxu0 %v635
    %v674 = vpop.f32.mrb[0].mxu0
    %v675 = vadd.f32 0.0, %v674
    %v676 = vpop.f32.mrb[0].mxu0
    %v677 = vpop.f32.mrb[0].mxu0
    %v678 = vpop.f32.mrb[0].mxu0
    %679 = vdwg.mxu0
    %v680 = vpack.c.bf16 %v675, %v629
    %682 = vrot.lane.b32.xlu0 %v463, 96
    %v683 = vpop.permute.xlu0 %682
    %685 = vrot.lane.b32.xlu0 %v465, 96
    %v686 = vpop.permute.xlu0 %685
    %v688 = vsel %vm467, %v683, 0
    %v691 = vsel %vm467, %v686, 0
    %693 = vmatprep.subr.bf16.mxu0 0
    %694 = vmatpush1.bf16.xpose.msra.mxu0 %v691
    %695 = vmatprep.subr.bf16.mxu0 0
    %696 = vmatpush1.bf16.xpose.msra.mxu0 0
    %697 = vmatprep.subr.bf16.mxu0 0
    %698 = vmatpush1.bf16.xpose.msra.mxu0 0
    %699 = vmatprep.subr.bf16.mxu0 0
    %700 = vmatpush1.bf16.xpose.msra.mxu0 0
    %701 = vmatprep.subr.bf16.mxu0 0
    %702 = vmatpush1.bf16.xpose.msra.mxu0 0
    %703 = vmatprep.subr.bf16.mxu0 0
    %704 = vmatpush1.bf16.xpose.msra.mxu0 0
    %705 = vmatprep.subr.bf16.mxu0 0
    %706 = vmatpush1.bf16.xpose.msra.mxu0 0
    %707 = vmatprep.subr.bf16.mxu0 0
    %708 = vmatpush1.bf16.xpose.msra.mxu0 0
    %709 = vmatprep.subr.bf16.mxu0 0
    %710 = vmatpush1.bf16.xpose.msra.mxu0 0
    %711 = vmatprep.subr.bf16.mxu0 0
    %712 = vmatpush1.bf16.xpose.msra.mxu0 0
    %713 = vmatprep.subr.bf16.mxu0 0
    %714 = vmatpush1.bf16.xpose.msra.mxu0 0
    %715 = vmatprep.subr.bf16.mxu0 0
    %716 = vmatpush1.bf16.xpose.msra.mxu0 0
    %717 = vmatprep.subr.bf16.mxu0 0
    %718 = vmatpush1.bf16.xpose.msra.mxu0 0
    %719 = vmatprep.subr.bf16.mxu0 0
    %720 = vmatpush1.bf16.xpose.msra.mxu0 0
    %721 = vmatprep.subr.bf16.mxu0 0
    %722 = vmatpush1.bf16.xpose.msra.mxu0 0
    %723 = vmatprep.subr.bf16.mxu0 0
    %724 = vmatpush1.bf16.xpose.msra.mxu0 0
    %725 = vmatprep.mubr.bf16.mxu0 0
    %726 = vmatmul.mubr.bf16.gmra.mrb[0].mxu0 %v688
    %v727 = vpop.f32.mrb[0].mxu0
    %v728 = vadd.f32 0.0, %v727
    %v729 = vpop.f32.mrb[0].mxu0
    %v730 = vpop.f32.mrb[0].mxu0
    %v731 = vpop.f32.mrb[0].mxu0
    %732 = vdwg.mxu0
    %734 = vrot.lane.b32.xlu0 %v464, 96
    %v735 = vpop.permute.xlu0 %734
    %737 = vrot.lane.b32.xlu0 %v466, 96
    %v738 = vpop.permute.xlu0 %737
    %v740 = vsel %vm467, %v735, 0
    %v743 = vsel %vm467, %v738, 0
    %745 = vmatprep.subr.bf16.mxu0 0
    %746 = vmatpush1.bf16.xpose.msra.mxu0 %v743
    %747 = vmatprep.subr.bf16.mxu0 0
    %748 = vmatpush1.bf16.xpose.msra.mxu0 0
    %749 = vmatprep.subr.bf16.mxu0 0
    %750 = vmatpush1.bf16.xpose.msra.mxu0 0
    %751 = vmatprep.subr.bf16.mxu0 0
    %752 = vmatpush1.bf16.xpose.msra.mxu0 0
    %753 = vmatprep.subr.bf16.mxu0 0
    %754 = vmatpush1.bf16.xpose.msra.mxu0 0
    %755 = vmatprep.subr.bf16.mxu0 0
    %756 = vmatpush1.bf16.xpose.msra.mxu0 0
    %757 = vmatprep.subr.bf16.mxu0 0
    %758 = vmatpush1.bf16.xpose.msra.mxu0 0
    %759 = vmatprep.subr.bf16.mxu0 0
    %760 = vmatpush1.bf16.xpose.msra.mxu0 0
    %761 = vmatprep.subr.bf16.mxu0 0
    %762 = vmatpush1.bf16.xpose.msra.mxu0 0
    %763 = vmatprep.subr.bf16.mxu0 0
    %764 = vmatpush1.bf16.xpose.msra.mxu0 0
    %765 = vmatprep.subr.bf16.mxu0 0
    %766 = vmatpush1.bf16.xpose.msra.mxu0 0
    %767 = vmatprep.subr.bf16.mxu0 0
    %768 = vmatpush1.bf16.xpose.msra.mxu0 0
    %769 = vmatprep.subr.bf16.mxu0 0
    %770 = vmatpush1.bf16.xpose.msra.mxu0 0
    %771 = vmatprep.subr.bf16.mxu0 0
    %772 = vmatpush1.bf16.xpose.msra.mxu0 0
    %773 = vmatprep.subr.bf16.mxu0 0
    %774 = vmatpush1.bf16.xpose.msra.mxu0 0
    %775 = vmatprep.subr.bf16.mxu0 0
    %776 = vmatpush1.bf16.xpose.msra.mxu0 0
    %777 = vmatprep.mubr.bf16.mxu0 0
    %778 = vmatmul.mubr.bf16.gmra.mrb[0].mxu0 %v740
    %v779 = vpop.f32.mrb[0].mxu0
    %v780 = vadd.f32 0.0, %v779
    %v781 = vpop.f32.mrb[0].mxu0
    %v782 = vpop.f32.mrb[0].mxu0
    %v783 = vpop.f32.mrb[0].mxu0
    %784 = vdwg.mxu0
    %v785 = vsel %vm560, %v728, -inf
    %786 = vmax.xlane.f32.xlu0 %v785
    %v787 = vpop.xlane.xlu0 %786
    %v788 = vsel %vm560, %v780, -inf
    %789 = vmax.xlane.f32.xlu0 %v788
    %v790 = vpop.xlane.xlu0 %789
    %v791 = vsub.f32 %v728, %v787
    %v792 = vsub.f32 %v780, %v790
    %v793 = vmul.f32 %v791, 1.442695
    %v794 = vpow.pop %v793
    %v795 = vmul.f32 %v792, 1.442695
    %v796 = vpow.pop %v795
    %v797 = vsel %vm560, %v794, 0.0
    %798 = vadd.xlane.f32.xlu0 %v797
    %v799 = vpop.xlane.xlu0 %798
    %v800 = vsel %vm560, %v796, 0.0
    %801 = vadd.xlane.f32.xlu0 %v800
    %v802 = vpop.xlane.xlu0 %801
    %v803 = vrcp.pop %v799
    %v804 = vrcp.pop %v802
    %v805 = vmul.f32 %v794, %v803
    %v806 = vmul.f32 %v796, %v804
    %v807 = vpack.c.bf16 %v805, %v805
    %v808 = vpack.c.bf16 %v806, %v806
    %810 = vrot.lane.b32.xlu0 %v585, 96
    %v811 = vpop.permute.xlu0 %810
    %v813 = vsel %vm560, %v807, 0
    %v816 = vsel %vm590, %v811, 0
    %818 = vmatprep.subr.bf16.mxu0 0
    %819 = vmatpush1.bf16.msra.mxu0 %v816
    %820 = vmatprep.subr.bf16.mxu0 0
    %821 = vmatpush1.bf16.msra.mxu0 0
    %822 = vmatprep.subr.bf16.mxu0 0
    %823 = vmatpush1.bf16.msra.mxu0 0
    %824 = vmatprep.subr.bf16.mxu0 0
    %825 = vmatpush1.bf16.msra.mxu0 0
    %826 = vmatprep.subr.bf16.mxu0 0
    %827 = vmatpush1.bf16.msra.mxu0 0
    %828 = vmatprep.subr.bf16.mxu0 0
    %829 = vmatpush1.bf16.msra.mxu0 0
    %830 = vmatprep.subr.bf16.mxu0 0
    %831 = vmatpush1.bf16.msra.mxu0 0
    %832 = vmatprep.subr.bf16.mxu0 0
    %833 = vmatpush1.bf16.msra.mxu0 0
    %834 = vmatprep.subr.bf16.mxu0 0
    %835 = vmatpush1.bf16.msra.mxu0 0
    %836 = vmatprep.subr.bf16.mxu0 0
    %837 = vmatpush1.bf16.msra.mxu0 0
    %838 = vmatprep.subr.bf16.mxu0 0
    %839 = vmatpush1.bf16.msra.mxu0 0
    %840 = vmatprep.subr.bf16.mxu0 0
    %841 = vmatpush1.bf16.msra.mxu0 0
    %842 = vmatprep.subr.bf16.mxu0 0
    %843 = vmatpush1.bf16.msra.mxu0 0
    %844 = vmatprep.subr.bf16.mxu0 0
    %845 = vmatpush1.bf16.msra.mxu0 0
    %846 = vmatprep.subr.bf16.mxu0 0
    %847 = vmatpush1.bf16.msra.mxu0 0
    %848 = vmatprep.subr.bf16.mxu0 0
    %849 = vmatpush1.bf16.msra.mxu0 0
    %850 = vmatprep.mubr.bf16.mxu0 0
    %851 = vmatmul.mubr.bf16.gmra.mrb[0].mxu0 %v813
    %v852 = vpop.f32.mrb[0].mxu0
    %v853 = vadd.f32 0.0, %v852
    %v854 = vpop.f32.mrb[0].mxu0
    %v855 = vpop.f32.mrb[0].mxu0
    %v856 = vpop.f32.mrb[0].mxu0
    %857 = vdwg.mxu0
    %859 = vrot.lane.b32.xlu0 %v586, 96
    %v860 = vpop.permute.xlu0 %859
    %v862 = vsel %vm560, %v808, 0
    %v865 = vsel %vm590, %v860, 0
    %867 = vmatprep.subr.bf16.mxu0 0
    %868 = vmatpush1.bf16.msra.mxu0 %v865
    %869 = vmatprep.subr.bf16.mxu0 0
    %870 = vmatpush1.bf16.msra.mxu0 0
    %871 = vmatprep.subr.bf16.mxu0 0
    %872 = vmatpush1.bf16.msra.mxu0 0
    %873 = vmatprep.subr.bf16.mxu0 0
    %874 = vmatpush1.bf16.msra.mxu0 0
    %875 = vmatprep.subr.bf16.mxu0 0
    %876 = vmatpush1.bf16.msra.mxu0 0
    %877 = vmatprep.subr.bf16.mxu0 0
    %878 = vmatpush1.bf16.msra.mxu0 0
    %879 = vmatprep.subr.bf16.mxu0 0
    %880 = vmatpush1.bf16.msra.mxu0 0
    %881 = vmatprep.subr.bf16.mxu0 0
    %882 = vmatpush1.bf16.msra.mxu0 0
    %883 = vmatprep.subr.bf16.mxu0 0
    %884 = vmatpush1.bf16.msra.mxu0 0
    %885 = vmatprep.subr.bf16.mxu0 0
    %886 = vmatpush1.bf16.msra.mxu0 0
    %887 = vmatprep.subr.bf16.mxu0 0
    %888 = vmatpush1.bf16.msra.mxu0 0
    %889 = vmatprep.subr.bf16.mxu0 0
    %890 = vmatpush1.bf16.msra.mxu0 0
    %891 = vmatprep.subr.bf16.mxu0 0
    %892 = vmatpush1.bf16.msra.mxu0 0
    %893 = vmatprep.subr.bf16.mxu0 0
    %894 = vmatpush1.bf16.msra.mxu0 0
    %895 = vmatprep.subr.bf16.mxu0 0
    %896 = vmatpush1.bf16.msra.mxu0 0
    %897 = vmatprep.subr.bf16.mxu0 0
    %898 = vmatpush1.bf16.msra.mxu0 0
    %899 = vmatprep.mubr.bf16.mxu0 0
    %900 = vmatmul.mubr.bf16.gmra.mrb[0].mxu0 %v862
    %v901 = vpop.f32.mrb[0].mxu0
    %v902 = vadd.f32 0.0, %v901
    %v903 = vpop.f32.mrb[0].mxu0
    %v904 = vpop.f32.mrb[0].mxu0
    %v905 = vpop.f32.mrb[0].mxu0
    %906 = vdwg.mxu0
    %v907 = vpack.c.bf16 %v902, %v853
    %v912 = vunpack.c.l.b16 %v451
    %v913 = vunpack.c.l.b16 %v452
    %v914 = vunpack.c.l.b16 %v453
    %v915 = vunpack.c.l.b16 %v454
    %v916 = vpack.c.b16 %v913, %v912
    %v917 = vpack.c.b16 %v915, %v914
    %v921 = vsel %vm467, %v907, 0
    %923 = vmatprep.subr.bf16.mxu0 0
    %924 = vmatpush1.bf16.msra.mxu0 %v916
    %925 = vmatprep.subr.bf16.mxu0 0
    %926 = vmatpush1.bf16.msra.mxu0 %v917
    %927 = vmatprep.subr.bf16.mxu0 0
    %928 = vmatpush1.bf16.msra.mxu0 0
    %929 = vmatprep.subr.bf16.mxu0 0
    %930 = vmatpush1.bf16.msra.mxu0 0
    %931 = vmatprep.subr.bf16.mxu0 0
    %932 = vmatpush1.bf16.msra.mxu0 0
    %933 = vmatprep.subr.bf16.mxu0 0
    %934 = vmatpush1.bf16.msra.mxu0 0
    %935 = vmatprep.subr.bf16.mxu0 0
    %936 = vmatpush1.bf16.msra.mxu0 0
    %937 = vmatprep.subr.bf16.mxu0 0
    %938 = vmatpush1.bf16.msra.mxu0 0
    %939 = vmatprep.subr.bf16.mxu0 0
    %940 = vmatpush1.bf16.msra.mxu0 0
    %941 = vmatprep.subr.bf16.mxu0 0
    %942 = vmatpush1.bf16.msra.mxu0 0
    %943 = vmatprep.subr.bf16.mxu0 0
    %944 = vmatpush1.bf16.msra.mxu0 0
    %945 = vmatprep.subr.bf16.mxu0 0
    %946 = vmatpush1.bf16.msra.mxu0 0
    %947 = vmatprep.subr.bf16.mxu0 0
    %948 = vmatpush1.bf16.msra.mxu0 0
    %949 = vmatprep.subr.bf16.mxu0 0
    %950 = vmatpush1.bf16.msra.mxu0 0
    %951 = vmatprep.subr.bf16.mxu0 0
    %952 = vmatpush1.bf16.msra.mxu0 0
    %953 = vmatprep.subr.bf16.mxu0 0
    %954 = vmatpush1.bf16.msra.mxu0 0
    %955 = vmatprep.mubr.bf16.mxu0 0
    %956 = vmatmul.mubr.bf16.gmra.mrb[0].mxu0 %v921
    %v957 = vpop.f32.mrb[0].mxu0
    %v958 = vadd.f32 0.0, %v957
    %v959 = vpop.f32.mrb[0].mxu0
    %v960 = vpop.f32.mrb[0].mxu0
    %v961 = vadd.f32 0.0, %v960
    %v962 = vpop.f32.mrb[0].mxu0
    %963 = vdwg.mxu0
    %v968 = vunpack.c.l.b16 %v447
    %v969 = vunpack.c.l.b16 %v448
    %v970 = vunpack.c.l.b16 %v449
    %v971 = vunpack.c.l.b16 %v450
    %v972 = vpack.c.b16 %v969, %v968
    %v973 = vpack.c.b16 %v971, %v970
    %v977 = vsel %vm467, %v680, 0
    %979 = vmatprep.subr.bf16.mxu0 0
    %980 = vmatpush1.bf16.msra.mxu0 %v972
    %981 = vmatprep.subr.bf16.mxu0 0
    %982 = vmatpush1.bf16.msra.mxu0 %v973
    %983 = vmatprep.subr.bf16.mxu0 0
    %984 = vmatpush1.bf16.msra.mxu0 0
    %985 = vmatprep.subr.bf16.mxu0 0
    %986 = vmatpush1.bf16.msra.mxu0 0
    %987 = vmatprep.subr.bf16.mxu0 0
    %988 = vmatpush1.bf16.msra.mxu0 0
    %989 = vmatprep.subr.bf16.mxu0 0
    %990 = vmatpush1.bf16.msra.mxu0 0
    %991 = vmatprep.subr.bf16.mxu0 0
    %992 = vmatpush1.bf16.msra.mxu0 0
    %993 = vmatprep.subr.bf16.mxu0 0
    %994 = vmatpush1.bf16.msra.mxu0 0
    %995 = vmatprep.subr.bf16.mxu0 0
    %996 = vmatpush1.bf16.msra.mxu0 0
    %997 = vmatprep.subr.bf16.mxu0 0
    %998 = vmatpush1.bf16.msra.mxu0 0
    %999 = vmatprep.subr.bf16.mxu0 0
    %1000 = vmatpush1.bf16.msra.mxu0 0
    %1001 = vmatprep.subr.bf16.mxu0 0
    %1002 = vmatpush1.bf16.msra.mxu0 0
    %1003 = vmatprep.subr.bf16.mxu0 0
    %1004 = vmatpush1.bf16.msra.mxu0 0
    %1005 = vmatprep.subr.bf16.mxu0 0
    %1006 = vmatpush1.bf16.msra.mxu0 0
    %1007 = vmatprep.subr.bf16.mxu0 0
    %1008 = vmatpush1.bf16.msra.mxu0 0
    %1009 = vmatprep.subr.bf16.mxu0 0
    %1010 = vmatpush1.bf16.msra.mxu0 0
    %1011 = vmatprep.mubr.bf16.mxu0 0
    %1012 = vmatmul.mubr.bf16.gmra.mrb[0].mxu0 %v977
    %v1013 = vpop.f32.mrb[0].mxu0
    %v1014 = vadd.f32 %v958, %v1013
    %v1015 = vpop.f32.mrb[0].mxu0
    %v1016 = vpop.f32.mrb[0].mxu0
    %v1017 = vadd.f32 %v961, %v1016
    %v1018 = vpop.f32.mrb[0].mxu0
    %1019 = vdwg.mxu0
    %1020 = vrot.lane.b32.xlu0 %v463, 64
    %v1021 = vpop.permute.xlu0 %1020
    %1022 = vrot.lane.b32.xlu0 %v465, 64
    %v1023 = vpop.permute.xlu0 %1022
    %v1025 = vsel %vm467, %v1021, 0
    %v1028 = vsel %vm467, %v1023, 0
    %1030 = vmatprep.subr.bf16.mxu0 0
    %1031 = vmatpush1.bf16.xpose.msra.mxu0 %v1028
    %1032 = vmatprep.subr.bf16.mxu0 0
    %1033 = vmatpush1.bf16.xpose.msra.mxu0 0
    %1034 = vmatprep.subr.bf16.mxu0 0
    %1035 = vmatpush1.bf16.xpose.msra.mxu0 0
    %1036 = vmatprep.subr.bf16.mxu0 0
    %1037 = vmatpush1.bf16.xpose.msra.mxu0 0
    %1038 = vmatprep.subr.bf16.mxu0 0
    %1039 = vmatpush1.bf16.xpose.msra.mxu0 0
    %1040 = vmatprep.subr.bf16.mxu0 0
    %1041 = vmatpush1.bf16.xpose.msra.mxu0 0
    %1042 = vmatprep.subr.bf16.mxu0 0
    %1043 = vmatpush1.bf16.xpose.msra.mxu0 0
    %1044 = vmatprep.subr.bf16.mxu0 0
    %1045 = vmatpush1.bf16.xpose.msra.mxu0 0
    %1046 = vmatprep.subr.bf16.mxu0 0
    %1047 = vmatpush1.bf16.xpose.msra.mxu0 0
    %1048 = vmatprep.subr.bf16.mxu0 0
    %1049 = vmatpush1.bf16.xpose.msra.mxu0 0
    %1050 = vmatprep.subr.bf16.mxu0 0
    %1051 = vmatpush1.bf16.xpose.msra.mxu0 0
    %1052 = vmatprep.subr.bf16.mxu0 0
    %1053 = vmatpush1.bf16.xpose.msra.mxu0 0
    %1054 = vmatprep.subr.bf16.mxu0 0
    %1055 = vmatpush1.bf16.xpose.msra.mxu0 0
    %1056 = vmatprep.subr.bf16.mxu0 0
    %1057 = vmatpush1.bf16.xpose.msra.mxu0 0
    %1058 = vmatprep.subr.bf16.mxu0 0
    %1059 = vmatpush1.bf16.xpose.msra.mxu0 0
    %1060 = vmatprep.subr.bf16.mxu0 0
    %1061 = vmatpush1.bf16.xpose.msra.mxu0 0
    %1062 = vmatprep.mubr.bf16.mxu0 0
    %1063 = vmatmul.mubr.bf16.gmra.mrb[0].mxu0 %v1025
    %v1064 = vpop.f32.mrb[0].mxu0
    %v1065 = vadd.f32 0.0, %v1064
    %v1066 = vpop.f32.mrb[0].mxu0
    %v1067 = vpop.f32.mrb[0].mxu0
    %v1068 = vpop.f32.mrb[0].mxu0
    %1069 = vdwg.mxu0
    %1070 = vrot.lane.b32.xlu0 %v464, 64
    %v1071 = vpop.permute.xlu0 %1070
    %1072 = vrot.lane.b32.xlu0 %v466, 64
    %v1073 = vpop.permute.xlu0 %1072
    %v1075 = vsel %vm467, %v1071, 0
    %v1078 = vsel %vm467, %v1073, 0
    %1080 = vmatprep.subr.bf16.mxu0 0
    %1081 = vmatpush1.bf16.xpose.msra.mxu0 %v1078
    %1082 = vmatprep.subr.bf16.mxu0 0
    %1083 = vmatpush1.bf16.xpose.msra.mxu0 0
    %1084 = vmatprep.subr.bf16.mxu0 0
    %1085 = vmatpush1.bf16.xpose.msra.mxu0 0
    %1086 = vmatprep.subr.bf16.mxu0 0
    %1087 = vmatpush1.bf16.xpose.msra.mxu0 0
    %1088 = vmatprep.subr.bf16.mxu0 0
    %1089 = vmatpush1.bf16.xpose.msra.mxu0 0
    %1090 = vmatprep.subr.bf16.mxu0 0
    %1091 = vmatpush1.bf16.xpose.msra.mxu0 0
    %1092 = vmatprep.subr.bf16.mxu0 0
    %1093 = vmatpush1.bf16.xpose.msra.mxu0 0
    %1094 = vmatprep.subr.bf16.mxu0 0
    %1095 = vmatpush1.bf16.xpose.msra.mxu0 0
    %1096 = vmatprep.subr.bf16.mxu0 0
    %1097 = vmatpush1.bf16.xpose.msra.mxu0 0
    %1098 = vmatprep.subr.bf16.mxu0 0
    %1099 = vmatpush1.bf16.xpose.msra.mxu0 0
    %1100 = vmatprep.subr.bf16.mxu0 0
    %1101 = vmatpush1.bf16.xpose.msra.mxu0 0
    %1102 = vmatprep.subr.bf16.mxu0 0
    %1103 = vmatpush1.bf16.xpose.msra.mxu0 0
    %1104 = vmatprep.subr.bf16.mxu0 0
    %1105 = vmatpush1.bf16.xpose.msra.mxu0 0
    %1106 = vmatprep.subr.bf16.mxu0 0
    %1107 = vmatpush1.bf16.xpose.msra.mxu0 0
    %1108 = vmatprep.subr.bf16.mxu0 0
    %1109 = vmatpush1.bf16.xpose.msra.mxu0 0
    %1110 = vmatprep.subr.bf16.mxu0 0
    %1111 = vmatpush1.bf16.xpose.msra.mxu0 0
    %1112 = vmatprep.mubr.bf16.mxu0 0
    %1113 = vmatmul.mubr.bf16.gmra.mrb[0].mxu0 %v1075
    %v1114 = vpop.f32.mrb[0].mxu0
    %v1115 = vadd.f32 0.0, %v1114
    %v1116 = vpop.f32.mrb[0].mxu0
    %v1117 = vpop.f32.mrb[0].mxu0
    %v1118 = vpop.f32.mrb[0].mxu0
    %1119 = vdwg.mxu0
    %v1120 = vsel %vm560, %v1065, -inf
    %1121 = vmax.xlane.f32.xlu0 %v1120
    %v1122 = vpop.xlane.xlu0 %1121
    %v1123 = vsel %vm560, %v1115, -inf
    %1124 = vmax.xlane.f32.xlu0 %v1123
    %v1125 = vpop.xlane.xlu0 %1124
    %v1126 = vsub.f32 %v1065, %v1122
    %v1127 = vsub.f32 %v1115, %v1125
    %v1128 = vmul.f32 %v1126, 1.442695
    %v1129 = vpow.pop %v1128
    %v1130 = vmul.f32 %v1127, 1.442695
    %v1131 = vpow.pop %v1130
    %v1132 = vsel %vm560, %v1129, 0.0
    %1133 = vadd.xlane.f32.xlu0 %v1132
    %v1134 = vpop.xlane.xlu0 %1133
    %v1135 = vsel %vm560, %v1131, 0.0
    %1136 = vadd.xlane.f32.xlu0 %v1135
    %v1137 = vpop.xlane.xlu0 %1136
    %v1138 = vrcp.pop %v1134
    %v1139 = vrcp.pop %v1137
    %v1140 = vmul.f32 %v1129, %v1138
    %v1141 = vmul.f32 %v1131, %v1139
    %v1142 = vpack.c.bf16 %v1140, %v1140
    %v1143 = vpack.c.bf16 %v1141, %v1141
    %1144 = vrot.lane.b32.xlu0 %v585, 64
    %v1145 = vpop.permute.xlu0 %1144
    %v1147 = vsel %vm560, %v1142, 0
    %v1150 = vsel %vm590, %v1145, 0
    %1152 = vmatprep.subr.bf16.mxu0 0
    %1153 = vmatpush1.bf16.msra.mxu0 %v1150
    %1154 = vmatprep.subr.bf16.mxu0 0
    %1155 = vmatpush1.bf16.msra.mxu0 0
    %1156 = vmatprep.subr.bf16.mxu0 0
    %1157 = vmatpush1.bf16.msra.mxu0 0
    %1158 = vmatprep.subr.bf16.mxu0 0
    %1159 = vmatpush1.bf16.msra.mxu0 0
    %1160 = vmatprep.subr.bf16.mxu0 0
    %1161 = vmatpush1.bf16.msra.mxu0 0
    %1162 = vmatprep.subr.bf16.mxu0 0
    %1163 = vmatpush1.bf16.msra.mxu0 0
    %1164 = vmatprep.subr.bf16.mxu0 0
    %1165 = vmatpush1.bf16.msra.mxu0 0
    %1166 = vmatprep.subr.bf16.mxu0 0
    %1167 = vmatpush1.bf16.msra.mxu0 0
    %1168 = vmatprep.subr.bf16.mxu0 0
    %1169 = vmatpush1.bf16.msra.mxu0 0
    %1170 = vmatprep.subr.bf16.mxu0 0
    %1171 = vmatpush1.bf16.msra.mxu0 0
    %1172 = vmatprep.subr.bf16.mxu0 0
    %1173 = vmatpush1.bf16.msra.mxu0 0
    %1174 = vmatprep.subr.bf16.mxu0 0
    %1175 = vmatpush1.bf16.msra.mxu0 0
    %1176 = vmatprep.subr.bf16.mxu0 0
    %1177 = vmatpush1.bf16.msra.mxu0 0
    %1178 = vmatprep.subr.bf16.mxu0 0
    %1179 = vmatpush1.bf16.msra.mxu0 0
    %1180 = vmatprep.subr.bf16.mxu0 0
    %1181 = vmatpush1.bf16.msra.mxu0 0
    %1182 = vmatprep.subr.bf16.mxu0 0
    %1183 = vmatpush1.bf16.msra.mxu0 0
    %1184 = vmatprep.mubr.bf16.mxu0 0
    %1185 = vmatmul.mubr.bf16.gmra.mrb[0].mxu0 %v1147
    %v1186 = vpop.f32.mrb[0].mxu0
    %v1187 = vadd.f32 0.0, %v1186
    %v1188 = vpop.f32.mrb[0].mxu0
    %v1189 = vpop.f32.mrb[0].mxu0
    %v1190 = vpop.f32.mrb[0].mxu0
    %1191 = vdwg.mxu0
    %1192 = vrot.lane.b32.xlu0 %v586, 64
    %v1193 = vpop.permute.xlu0 %1192
    %v1195 = vsel %vm560, %v1143, 0
    %v1198 = vsel %vm590, %v1193, 0
    %1200 = vmatprep.subr.bf16.mxu0 0
    %1201 = vmatpush1.bf16.msra.mxu0 %v1198
    %1202 = vmatprep.subr.bf16.mxu0 0
    %1203 = vmatpush1.bf16.msra.mxu0 0
    %1204 = vmatprep.subr.bf16.mxu0 0
    %1205 = vmatpush1.bf16.msra.mxu0 0
    %1206 = vmatprep.subr.bf16.mxu0 0
    %1207 = vmatpush1.bf16.msra.mxu0 0
    %1208 = vmatprep.subr.bf16.mxu0 0
    %1209 = vmatpush1.bf16.msra.mxu0 0
    %1210 = vmatprep.subr.bf16.mxu0 0
    %1211 = vmatpush1.bf16.msra.mxu0 0
    %1212 = vmatprep.subr.bf16.mxu0 0
    %1213 = vmatpush1.bf16.msra.mxu0 0
    %1214 = vmatprep.subr.bf16.mxu0 0
    %1215 = vmatpush1.bf16.msra.mxu0 0
    %1216 = vmatprep.subr.bf16.mxu0 0
    %1217 = vmatpush1.bf16.msra.mxu0 0
    %1218 = vmatprep.subr.bf16.mxu0 0
    %1219 = vmatpush1.bf16.msra.mxu0 0
    %1220 = vmatprep.subr.bf16.mxu0 0
    %1221 = vmatpush1.bf16.msra.mxu0 0
    %1222 = vmatprep.subr.bf16.mxu0 0
    %1223 = vmatpush1.bf16.msra.mxu0 0
    %1224 = vmatprep.subr.bf16.mxu0 0
    %1225 = vmatpush1.bf16.msra.mxu0 0
    %1226 = vmatprep.subr.bf16.mxu0 0
    %1227 = vmatpush1.bf16.msra.mxu0 0
    %1228 = vmatprep.subr.bf16.mxu0 0
    %1229 = vmatpush1.bf16.msra.mxu0 0
    %1230 = vmatprep.subr.bf16.mxu0 0
    %1231 = vmatpush1.bf16.msra.mxu0 0
    %1232 = vmatprep.mubr.bf16.mxu0 0
    %1233 = vmatmul.mubr.bf16.gmra.mrb[0].mxu0 %v1195
    %v1234 = vpop.f32.mrb[0].mxu0
    %v1235 = vadd.f32 0.0, %v1234
    %v1236 = vpop.f32.mrb[0].mxu0
    %v1237 = vpop.f32.mrb[0].mxu0
    %v1238 = vpop.f32.mrb[0].mxu0
    %1239 = vdwg.mxu0
    %v1240 = vpack.c.bf16 %v1235, %v1187
    %v1245 = vunpack.c.l.b16 %v455
    %v1246 = vunpack.c.l.b16 %v456
    %v1247 = vunpack.c.l.b16 %v457
    %v1248 = vunpack.c.l.b16 %v458
    %v1249 = vpack.c.b16 %v1246, %v1245
    %v1250 = vpack.c.b16 %v1248, %v1247
    %v1254 = vsel %vm467, %v1240, 0
    %1256 = vmatprep.subr.bf16.mxu0 0
    %1257 = vmatpush1.bf16.msra.mxu0 %v1249
    %1258 = vmatprep.subr.bf16.mxu0 0
    %1259 = vmatpush1.bf16.msra.mxu0 %v1250
    %1260 = vmatprep.subr.bf16.mxu0 0
    %1261 = vmatpush1.bf16.msra.mxu0 0
    %1262 = vmatprep.subr.bf16.mxu0 0
    %1263 = vmatpush1.bf16.msra.mxu0 0
    %1264 = vmatprep.subr.bf16.mxu0 0
    %1265 = vmatpush1.bf16.msra.mxu0 0
    %1266 = vmatprep.subr.bf16.mxu0 0
    %1267 = vmatpush1.bf16.msra.mxu0 0
    %1268 = vmatprep.subr.bf16.mxu0 0
    %1269 = vmatpush1.bf16.msra.mxu0 0
    %1270 = vmatprep.subr.bf16.mxu0 0
    %1271 = vmatpush1.bf16.msra.mxu0 0
    %1272 = vmatprep.subr.bf16.mxu0 0
    %1273 = vmatpush1.bf16.msra.mxu0 0
    %1274 = vmatprep.subr.bf16.mxu0 0
    %1275 = vmatpush1.bf16.msra.mxu0 0
    %1276 = vmatprep.subr.bf16.mxu0 0
    %1277 = vmatpush1.bf16.msra.mxu0 0
    %1278 = vmatprep.subr.bf16.mxu0 0
    %1279 = vmatpush1.bf16.msra.mxu0 0
    %1280 = vmatprep.subr.bf16.mxu0 0
    %1281 = vmatpush1.bf16.msra.mxu0 0
    %1282 = vmatprep.subr.bf16.mxu0 0
    %1283 = vmatpush1.bf16.msra.mxu0 0
    %1284 = vmatprep.subr.bf16.mxu0 0
    %1285 = vmatpush1.bf16.msra.mxu0 0
    %1286 = vmatprep.subr.bf16.mxu0 0
    %1287 = vmatpush1.bf16.msra.mxu0 0
    %1288 = vmatprep.mubr.bf16.mxu0 0
    %1289 = vmatmul.mubr.bf16.gmra.mrb[0].mxu0 %v1254
    %v1290 = vpop.f32.mrb[0].mxu0
    %v1291 = vadd.f32 0.0, %v1290
    %v1292 = vpop.f32.mrb[0].mxu0
    %v1293 = vpop.f32.mrb[0].mxu0
    %v1294 = vadd.f32 0.0, %v1293
    %v1295 = vpop.f32.mrb[0].mxu0
    %1296 = vdwg.mxu0
    %v1297 = vadd.f32 %v1014, %v1291
    %v1298 = vadd.f32 %v1017, %v1294
    %1299 = vrot.lane.b32.xlu0 %v463, 32
    %v1300 = vpop.permute.xlu0 %1299
    %1301 = vrot.lane.b32.xlu0 %v465, 32
    %v1302 = vpop.permute.xlu0 %1301
    %v1304 = vsel %vm467, %v1300, 0
    %v1307 = vsel %vm467, %v1302, 0
    %1309 = vmatprep.subr.bf16.mxu0 0
    %1310 = vmatpush1.bf16.xpose.msra.mxu0 %v1307
    %1311 = vmatprep.subr.bf16.mxu0 0
    %1312 = vmatpush1.bf16.xpose.msra.mxu0 0
    %1313 = vmatprep.subr.bf16.mxu0 0
    %1314 = vmatpush1.bf16.xpose.msra.mxu0 0
    %1315 = vmatprep.subr.bf16.mxu0 0
    %1316 = vmatpush1.bf16.xpose.msra.mxu0 0
    %1317 = vmatprep.subr.bf16.mxu0 0
    %1318 = vmatpush1.bf16.xpose.msra.mxu0 0
    %1319 = vmatprep.subr.bf16.mxu0 0
    %1320 = vmatpush1.bf16.xpose.msra.mxu0 0
    %1321 = vmatprep.subr.bf16.mxu0 0
    %1322 = vmatpush1.bf16.xpose.msra.mxu0 0
    %1323 = vmatprep.subr.bf16.mxu0 0
    %1324 = vmatpush1.bf16.xpose.msra.mxu0 0
    %1325 = vmatprep.subr.bf16.mxu0 0
    %1326 = vmatpush1.bf16.xpose.msra.mxu0 0
    %1327 = vmatprep.subr.bf16.mxu0 0
    %1328 = vmatpush1.bf16.xpose.msra.mxu0 0
    %1329 = vmatprep.subr.bf16.mxu0 0
    %1330 = vmatpush1.bf16.xpose.msra.mxu0 0
    %1331 = vmatprep.subr.bf16.mxu0 0
    %1332 = vmatpush1.bf16.xpose.msra.mxu0 0
    %1333 = vmatprep.subr.bf16.mxu0 0
    %1334 = vmatpush1.bf16.xpose.msra.mxu0 0
    %1335 = vmatprep.subr.bf16.mxu0 0
    %1336 = vmatpush1.bf16.xpose.msra.mxu0 0
    %1337 = vmatprep.subr.bf16.mxu0 0
    %1338 = vmatpush1.bf16.xpose.msra.mxu0 0
    %1339 = vmatprep.subr.bf16.mxu0 0
    %1340 = vmatpush1.bf16.xpose.msra.mxu0 0
    %1341 = vmatprep.mubr.bf16.mxu0 0
    %1342 = vmatmul.mubr.bf16.gmra.mrb[0].mxu0 %v1304
    %v1343 = vpop.f32.mrb[0].mxu0
    %v1344 = vadd.f32 0.0, %v1343
    %v1345 = vpop.f32.mrb[0].mxu0
    %v1346 = vpop.f32.mrb[0].mxu0
    %v1347 = vpop.f32.mrb[0].mxu0
    %1348 = vdwg.mxu0
    %1349 = vrot.lane.b32.xlu0 %v464, 32
    %v1350 = vpop.permute.xlu0 %1349
    %1351 = vrot.lane.b32.xlu0 %v466, 32
    %v1352 = vpop.permute.xlu0 %1351
    %v1354 = vsel %vm467, %v1350, 0
    %v1357 = vsel %vm467, %v1352, 0
    %1359 = vmatprep.subr.bf16.mxu0 0
    %1360 = vmatpush1.bf16.xpose.msra.mxu0 %v1357
    %1361 = vmatprep.subr.bf16.mxu0 0
    %1362 = vmatpush1.bf16.xpose.msra.mxu0 0
    %1363 = vmatprep.subr.bf16.mxu0 0
    %1364 = vmatpush1.bf16.xpose.msra.mxu0 0
    %1365 = vmatprep.subr.bf16.mxu0 0
    %1366 = vmatpush1.bf16.xpose.msra.mxu0 0
    %1367 = vmatprep.subr.bf16.mxu0 0
    %1368 = vmatpush1.bf16.xpose.msra.mxu0 0
    %1369 = vmatprep.subr.bf16.mxu0 0
    %1370 = vmatpush1.bf16.xpose.msra.mxu0 0
    %1371 = vmatprep.subr.bf16.mxu0 0
    %1372 = vmatpush1.bf16.xpose.msra.mxu0 0
    %1373 = vmatprep.subr.bf16.mxu0 0
    %1374 = vmatpush1.bf16.xpose.msra.mxu0 0
    %1375 = vmatprep.subr.bf16.mxu0 0
    %1376 = vmatpush1.bf16.xpose.msra.mxu0 0
    %1377 = vmatprep.subr.bf16.mxu0 0
    %1378 = vmatpush1.bf16.xpose.msra.mxu0 0
    %1379 = vmatprep.subr.bf16.mxu0 0
    %1380 = vmatpush1.bf16.xpose.msra.mxu0 0
    %1381 = vmatprep.subr.bf16.mxu0 0
    %1382 = vmatpush1.bf16.xpose.msra.mxu0 0
    %1383 = vmatprep.subr.bf16.mxu0 0
    %1384 = vmatpush1.bf16.xpose.msra.mxu0 0
    %1385 = vmatprep.subr.bf16.mxu0 0
    %1386 = vmatpush1.bf16.xpose.msra.mxu0 0
    %1387 = vmatprep.subr.bf16.mxu0 0
    %1388 = vmatpush1.bf16.xpose.msra.mxu0 0
    %1389 = vmatprep.subr.bf16.mxu0 0
    %1390 = vmatpush1.bf16.xpose.msra.mxu0 0
    %1391 = vmatprep.mubr.bf16.mxu0 0
    %1392 = vmatmul.mubr.bf16.gmra.mrb[0].mxu0 %v1354
    %v1393 = vpop.f32.mrb[0].mxu0
    %v1394 = vadd.f32 0.0, %v1393
    %v1395 = vpop.f32.mrb[0].mxu0
    %v1396 = vpop.f32.mrb[0].mxu0
    %v1397 = vpop.f32.mrb[0].mxu0
    %1398 = vdwg.mxu0
    %v1399 = vsel %vm560, %v1344, -inf
    %1400 = vmax.xlane.f32.xlu0 %v1399
    %v1401 = vpop.xlane.xlu0 %1400
    %v1402 = vsel %vm560, %v1394, -inf
    %1403 = vmax.xlane.f32.xlu0 %v1402
    %v1404 = vpop.xlane.xlu0 %1403
    %v1405 = vsub.f32 %v1344, %v1401
    %v1406 = vsub.f32 %v1394, %v1404
    %v1407 = vmul.f32 %v1405, 1.442695
    %v1408 = vpow.pop %v1407
    %v1409 = vmul.f32 %v1406, 1.442695
    %v1410 = vpow.pop %v1409
    %v1411 = vsel %vm560, %v1408, 0.0
    %1412 = vadd.xlane.f32.xlu0 %v1411
    %v1413 = vpop.xlane.xlu0 %1412
    %v1414 = vsel %vm560, %v1410, 0.0
    %1415 = vadd.xlane.f32.xlu0 %v1414
    %v1416 = vpop.xlane.xlu0 %1415
    %v1417 = vrcp.pop %v1413
    %v1418 = vrcp.pop %v1416
    %v1419 = vmul.f32 %v1408, %v1417
    %v1420 = vmul.f32 %v1410, %v1418
    %v1421 = vpack.c.bf16 %v1419, %v1419
    %v1422 = vpack.c.bf16 %v1420, %v1420
    %1423 = vrot.lane.b32.xlu0 %v585, 32
    %v1424 = vpop.permute.xlu0 %1423
    %v1426 = vsel %vm560, %v1421, 0
    %v1429 = vsel %vm590, %v1424, 0
    %1431 = vmatprep.subr.bf16.mxu0 0
    %1432 = vmatpush1.bf16.msra.mxu0 %v1429
    %1433 = vmatprep.subr.bf16.mxu0 0
    %1434 = vmatpush1.bf16.msra.mxu0 0
    %1435 = vmatprep.subr.bf16.mxu0 0
    %1436 = vmatpush1.bf16.msra.mxu0 0
    %1437 = vmatprep.subr.bf16.mxu0 0
    %1438 = vmatpush1.bf16.msra.mxu0 0
    %1439 = vmatprep.subr.bf16.mxu0 0
    %1440 = vmatpush1.bf16.msra.mxu0 0
    %1441 = vmatprep.subr.bf16.mxu0 0
    %1442 = vmatpush1.bf16.msra.mxu0 0
    %1443 = vmatprep.subr.bf16.mxu0 0
    %1444 = vmatpush1.bf16.msra.mxu0 0
    %1445 = vmatprep.subr.bf16.mxu0 0
    %1446 = vmatpush1.bf16.msra.mxu0 0
    %1447 = vmatprep.subr.bf16.mxu0 0
    %1448 = vmatpush1.bf16.msra.mxu0 0
    %1449 = vmatprep.subr.bf16.mxu0 0
    %1450 = vmatpush1.bf16.msra.mxu0 0
    %1451 = vmatprep.subr.bf16.mxu0 0
    %1452 = vmatpush1.bf16.msra.mxu0 0
    %1453 = vmatprep.subr.bf16.mxu0 0
    %1454 = vmatpush1.bf16.msra.mxu0 0
    %1455 = vmatprep.subr.bf16.mxu0 0
    %1456 = vmatpush1.bf16.msra.mxu0 0
    %1457 = vmatprep.subr.bf16.mxu0 0
    %1458 = vmatpush1.bf16.msra.mxu0 0
    %1459 = vmatprep.subr.bf16.mxu0 0
    %1460 = vmatpush1.bf16.msra.mxu0 0
    %1461 = vmatprep.subr.bf16.mxu0 0
    %1462 = vmatpush1.bf16.msra.mxu0 0
    %1463 = vmatprep.mubr.bf16.mxu0 0
    %1464 = vmatmul.mubr.bf16.gmra.mrb[0].mxu0 %v1426
    %v1465 = vpop.f32.mrb[0].mxu0
    %v1466 = vadd.f32 0.0, %v1465
    %v1467 = vpop.f32.mrb[0].mxu0
    %v1468 = vpop.f32.mrb[0].mxu0
    %v1469 = vpop.f32.mrb[0].mxu0
    %1470 = vdwg.mxu0
    %1471 = vrot.lane.b32.xlu0 %v586, 32
    %v1472 = vpop.permute.xlu0 %1471
    %v1474 = vsel %vm560, %v1422, 0
    %v1477 = vsel %vm590, %v1472, 0
    %1479 = vmatprep.subr.bf16.mxu0 0
    %1480 = vmatpush1.bf16.msra.mxu0 %v1477
    %1481 = vmatprep.subr.bf16.mxu0 0
    %1482 = vmatpush1.bf16.msra.mxu0 0
    %1483 = vmatprep.subr.bf16.mxu0 0
    %1484 = vmatpush1.bf16.msra.mxu0 0
    %1485 = vmatprep.subr.bf16.mxu0 0
    %1486 = vmatpush1.bf16.msra.mxu0 0
    %1487 = vmatprep.subr.bf16.mxu0 0
    %1488 = vmatpush1.bf16.msra.mxu0 0
    %1489 = vmatprep.subr.bf16.mxu0 0
    %1490 = vmatpush1.bf16.msra.mxu0 0
    %1491 = vmatprep.subr.bf16.mxu0 0
    %1492 = vmatpush1.bf16.msra.mxu0 0
    %1493 = vmatprep.subr.bf16.mxu0 0
    %1494 = vmatpush1.bf16.msra.mxu0 0
    %1495 = vmatprep.subr.bf16.mxu0 0
    %1496 = vmatpush1.bf16.msra.mxu0 0
    %1497 = vmatprep.subr.bf16.mxu0 0
    %1498 = vmatpush1.bf16.msra.mxu0 0
    %1499 = vmatprep.subr.bf16.mxu0 0
    %1500 = vmatpush1.bf16.msra.mxu0 0
    %1501 = vmatprep.subr.bf16.mxu0 0
    %1502 = vmatpush1.bf16.msra.mxu0 0
    %1503 = vmatprep.subr.bf16.mxu0 0
    %1504 = vmatpush1.bf16.msra.mxu0 0
    %1505 = vmatprep.subr.bf16.mxu0 0
    %1506 = vmatpush1.bf16.msra.mxu0 0
    %1507 = vmatprep.subr.bf16.mxu0 0
    %1508 = vmatpush1.bf16.msra.mxu0 0
    %1509 = vmatprep.subr.bf16.mxu0 0
    %1510 = vmatpush1.bf16.msra.mxu0 0
    %1511 = vmatprep.mubr.bf16.mxu0 0
    %1512 = vmatmul.mubr.bf16.gmra.mrb[0].mxu0 %v1474
    %v1513 = vpop.f32.mrb[0].mxu0
    %v1514 = vadd.f32 0.0, %v1513
    %v1515 = vpop.f32.mrb[0].mxu0
    %v1516 = vpop.f32.mrb[0].mxu0
    %v1517 = vpop.f32.mrb[0].mxu0
    %1518 = vdwg.mxu0
    %v1519 = vpack.c.bf16 %v1514, %v1466
    %v1524 = vunpack.c.l.b16 %v459
    %v1525 = vunpack.c.l.b16 %v460
    %v1526 = vunpack.c.l.b16 %v461
    %v1527 = vunpack.c.l.b16 %v462
    %v1528 = vpack.c.b16 %v1525, %v1524
    %v1529 = vpack.c.b16 %v1527, %v1526
    %v1533 = vsel %vm467, %v1519, 0
    %1535 = vmatprep.subr.bf16.mxu0 0
    %1536 = vmatpush1.bf16.msra.mxu0 %v1528
    %1537 = vmatprep.subr.bf16.mxu0 0
    %1538 = vmatpush1.bf16.msra.mxu0 %v1529
    %1539 = vmatprep.subr.bf16.mxu0 0
    %1540 = vmatpush1.bf16.msra.mxu0 0
    %1541 = vmatprep.subr.bf16.mxu0 0
    %1542 = vmatpush1.bf16.msra.mxu0 0
    %1543 = vmatprep.subr.bf16.mxu0 0
    %1544 = vmatpush1.bf16.msra.mxu0 0
    %1545 = vmatprep.subr.bf16.mxu0 0
    %1546 = vmatpush1.bf16.msra.mxu0 0
    %1547 = vmatprep.subr.bf16.mxu0 0
    %1548 = vmatpush1.bf16.msra.mxu0 0
    %1549 = vmatprep.subr.bf16.mxu0 0
    %1550 = vmatpush1.bf16.msra.mxu0 0
    %1551 = vmatprep.subr.bf16.mxu0 0
    %1552 = vmatpush1.bf16.msra.mxu0 0
    %1553 = vmatprep.subr.bf16.mxu0 0
    %1554 = vmatpush1.bf16.msra.mxu0 0
    %1555 = vmatprep.subr.bf16.mxu0 0
    %1556 = vmatpush1.bf16.msra.mxu0 0
    %1557 = vmatprep.subr.bf16.mxu0 0
    %1558 = vmatpush1.bf16.msra.mxu0 0
    %1559 = vmatprep.subr.bf16.mxu0 0
    %1560 = vmatpush1.bf16.msra.mxu0 0
    %1561 = vmatprep.subr.bf16.mxu0 0
    %1562 = vmatpush1.bf16.msra.mxu0 0
    %1563 = vmatprep.subr.bf16.mxu0 0
    %1564 = vmatpush1.bf16.msra.mxu0 0
    %1565 = vmatprep.subr.bf16.mxu0 0
    %1566 = vmatpush1.bf16.msra.mxu0 0
    %1567 = vmatprep.mubr.bf16.mxu0 0
    %1568 = vmatmul.mubr.bf16.gmra.mrb[0].mxu0 %v1533
    %v1569 = vpop.f32.mrb[0].mxu0
    %v1570 = vadd.f32 0.0, %v1569
    %v1571 = vpop.f32.mrb[0].mxu0
    %v1572 = vpop.f32.mrb[0].mxu0
    %v1573 = vadd.f32 0.0, %v1572
    %v1574 = vpop.f32.mrb[0].mxu0
    %1575 = vdwg.mxu0
    %v1576 = vadd.f32 %v1297, %v1570
    %v1577 = vadd.f32 %v1298, %v1573
    %v1578 = vld [vmem:[%s6] sm:$0x1]
    %v1580 = vlaneseq
    %v1581 = vshrl.u32 %v1580, 7
    %v1582 = vsub.s32 0, %v1581
    %v1583 = vrot.slane %v1578, %v1582
    %v1585 = vadd.f32 %v1576, %v1583
    %v1586 = vadd.f32 %v1577, %v1583
    %v1587 = vadd.f32 %v183, %v1585
    %v1588 = vadd.f32 %v184, %v1586
    %v1589 = vld [vmem:[%s7] sm:$0x1]
    %v1590 = vld [vmem:[%s8] sm:$0x1]
    %1591 = vadd.xlane.f32.xlu0 %v1587
    %v1592 = vpop.xlane.xlu0 %1591
    %1593 = vadd.xlane.f32.xlu0 %v1588
    %v1594 = vpop.xlane.xlu0 %1593
    %v1595 = vrcp.pop 128.0
    %v1596 = vmul.f32 %v1592, %v1595
    %v1597 = vmul.f32 %v1594, %v1595
    %v1598 = vsub.f32 %v1587, %v1596
    %v1599 = vsub.f32 %v1588, %v1597
    %v1600 = vmul.f32 %v1598, %v1598
    %v1601 = vmul.f32 %v1599, %v1599
    %1602 = vadd.xlane.f32.xlu0 %v1600
    %v1603 = vpop.xlane.xlu0 %1602
    %1604 = vadd.xlane.f32.xlu0 %v1601
    %v1605 = vpop.xlane.xlu0 %1604
    %v1606 = vmul.f32 %v1603, %v1595
    %v1607 = vmul.f32 %v1605, %v1595
    %v1608 = vadd.f32 %v1606, 1e-05
    %v1609 = vadd.f32 %v1607, 1e-05
    %v1610 = vrsqrt.pop %v1608
    %v1611 = vrsqrt.pop %v1609
    %v1612 = vmul.f32 %v1598, %v1610
    %v1613 = vmul.f32 %v1599, %v1611
    %v1615 = vlaneseq
    %v1616 = vshrl.u32 %v1615, 7
    %v1617 = vsub.s32 0, %v1616
    %v1618 = vrot.slane %v1589, %v1617
    %v1620 = vmul.f32 %v1612, %v1618
    %v1621 = vmul.f32 %v1613, %v1618
    %v1623 = vlaneseq
    %v1624 = vshrl.u32 %v1623, 7
    %v1625 = vsub.s32 0, %v1624
    %v1626 = vrot.slane %v1590, %v1625
    %v1628 = vadd.f32 %v1620, %v1626
    %v1629 = vadd.f32 %v1621, %v1626
    %v1630 = vadd.f32 %v183, %v1628
    %v1631 = vadd.f32 %v184, %v1629
    %v1632 = vld [vmem:[%s9] sm:$0x1]
    %v1633 = vld [vmem:[%s10] sm:$0x1]
    %1634 = vadd.xlane.f32.xlu0 %v1630
    %v1635 = vpop.xlane.xlu0 %1634
    %1636 = vadd.xlane.f32.xlu0 %v1631
    %v1637 = vpop.xlane.xlu0 %1636
    %v1638 = vmul.f32 %v1635, %v1595
    %v1639 = vmul.f32 %v1637, %v1595
    %v1640 = vsub.f32 %v1630, %v1638
    %v1641 = vsub.f32 %v1631, %v1639
    %v1642 = vmul.f32 %v1640, %v1640
    %v1643 = vmul.f32 %v1641, %v1641
    %1644 = vadd.xlane.f32.xlu0 %v1642
    %v1645 = vpop.xlane.xlu0 %1644
    %1646 = vadd.xlane.f32.xlu0 %v1643
    %v1647 = vpop.xlane.xlu0 %1646
    %v1648 = vmul.f32 %v1645, %v1595
    %v1649 = vmul.f32 %v1647, %v1595
    %v1650 = vadd.f32 %v1648, 1e-05
    %v1651 = vadd.f32 %v1649, 1e-05
    %v1652 = vrsqrt.pop %v1650
    %v1653 = vrsqrt.pop %v1651
    %v1654 = vmul.f32 %v1640, %v1652
    %v1655 = vmul.f32 %v1641, %v1653
    %v1657 = vlaneseq
    %v1658 = vshrl.u32 %v1657, 7
    %v1659 = vsub.s32 0, %v1658
    %v1660 = vrot.slane %v1632, %v1659
    %v1662 = vmul.f32 %v1654, %v1660
    %v1663 = vmul.f32 %v1655, %v1660
    %v1665 = vlaneseq
    %v1666 = vshrl.u32 %v1665, 7
    %v1667 = vsub.s32 0, %v1666
    %v1668 = vrot.slane %v1633, %v1667
    %v1670 = vadd.f32 %v1662, %v1668
    %v1671 = vadd.f32 %v1663, %v1668
    %v1672 = vld [vmem:[%s1] sm:$0xff]
    %v1673 = vld [vmem:[%s1 + $0x8] sm:$0xff]
    %v1674 = vld [vmem:[%s1 + $0x10] sm:$0xff]
    %v1675 = vld [vmem:[%s1 + $0x18] sm:$0xff]
    %v1676 = vld [vmem:[#allocation7] sm:$0xf]
    %v1677 = vld [vmem:[#allocation7 + $0x4] sm:$0xf]
    %v1678 = vld [vmem:[#allocation7 + $0x8] sm:$0xf]
    %v1679 = vld [vmem:[#allocation7 + $0xc] sm:$0xf]
    %v1680 = vld [vmem:[#allocation7 + $0x10] sm:$0xf]
    %v1681 = vld [vmem:[#allocation7 + $0x14] sm:$0xf]
    %v1682 = vld [vmem:[#allocation7 + $0x18] sm:$0xf]
    %v1683 = vld [vmem:[#allocation7 + $0x1c] sm:$0xf]
    %v1684 = vld [vmem:[#allocation7 + $0x20] sm:$0xf]
    %v1685 = vld [vmem:[#allocation7 + $0x24] sm:$0xf]
    %v1686 = vld [vmem:[#allocation7 + $0x28] sm:$0xf]
    %v1687 = vld [vmem:[#allocation7 + $0x2c] sm:$0xf]
    %v1688 = vld [vmem:[#allocation7 + $0x30] sm:$0xf]
    %v1689 = vld [vmem:[#allocation7 + $0x34] sm:$0xf]
    %v1690 = vld [vmem:[#allocation7 + $0x38] sm:$0xf]
    %v1691 = vld [vmem:[#allocation7 + $0x3c] sm:$0xf]
    %v1692 = vpack.c.bf16 %v1671, %v1670
    %v1693 = vld [vmem:[%s12] sm:$0x1]
    %v1695 = vlaneseq
    %v1696 = vshrl.u32 %v1695, 7
    %v1697 = vsub.s32 0, %v1696
    %v1698 = vrot.slane %v1693, %v1697
    %v1716 = vunpack.c.l.b16 %v1676
    %v1717 = vunpack.c.l.b16 %v1677
    %v1718 = vunpack.c.l.b16 %v1678
    %v1719 = vunpack.c.l.b16 %v1679
    %v1720 = vunpack.c.l.b16 %v1680
    %v1721 = vunpack.c.l.b16 %v1681
    %v1722 = vunpack.c.l.b16 %v1682
    %v1723 = vunpack.c.l.b16 %v1683
    %v1724 = vunpack.c.l.b16 %v1684
    %v1725 = vunpack.c.l.b16 %v1685
    %v1726 = vunpack.c.l.b16 %v1686
    %v1727 = vunpack.c.l.b16 %v1687
    %v1728 = vunpack.c.l.b16 %v1688
    %v1729 = vunpack.c.l.b16 %v1689
    %v1730 = vunpack.c.l.b16 %v1690
    %v1731 = vunpack.c.l.b16 %v1691
    %v1732 = vpack.c.b16 %v1717, %v1716
    %v1733 = vpack.c.b16 %v1719, %v1718
    %v1734 = vpack.c.b16 %v1721, %v1720
    %v1735 = vpack.c.b16 %v1723, %v1722
    %v1736 = vpack.c.b16 %v1725, %v1724
    %v1737 = vpack.c.b16 %v1727, %v1726
    %v1738 = vpack.c.b16 %v1729, %v1728
    %v1739 = vpack.c.b16 %v1731, %v1730
    %1748 = vmatprep.subr.bf16.mxu0 0
    %1749 = vmatpush1.bf16.msra.mxu0 %v1732
    %1750 = vmatprep.subr.bf16.mxu0 0
    %1751 = vmatpush1.bf16.msra.mxu0 %v1733
    %1752 = vmatprep.subr.bf16.mxu0 0
    %1753 = vmatpush1.bf16.msra.mxu0 %v1734
    %1754 = vmatprep.subr.bf16.mxu0 0
    %1755 = vmatpush1.bf16.msra.mxu0 %v1735
    %1756 = vmatprep.subr.bf16.mxu0 0
    %1757 = vmatpush1.bf16.msra.mxu0 %v1736
    %1758 = vmatprep.subr.bf16.mxu0 0
    %1759 = vmatpush1.bf16.msra.mxu0 %v1737
    %1760 = vmatprep.subr.bf16.mxu0 0
    %1761 = vmatpush1.bf16.msra.mxu0 %v1738
    %1762 = vmatprep.subr.bf16.mxu0 0
    %1763 = vmatpush1.bf16.msra.mxu0 %v1739
    %1764 = vmatprep.subr.bf16.mxu0 0
    %1765 = vmatpush1.bf16.msra.mxu0 0
    %1766 = vmatprep.subr.bf16.mxu0 0
    %1767 = vmatpush1.bf16.msra.mxu0 0
    %1768 = vmatprep.subr.bf16.mxu0 0
    %1769 = vmatpush1.bf16.msra.mxu0 0
    %1770 = vmatprep.subr.bf16.mxu0 0
    %1771 = vmatpush1.bf16.msra.mxu0 0
    %1772 = vmatprep.subr.bf16.mxu0 0
    %1773 = vmatpush1.bf16.msra.mxu0 0
    %1774 = vmatprep.subr.bf16.mxu0 0
    %1775 = vmatpush1.bf16.msra.mxu0 0
    %1776 = vmatprep.subr.bf16.mxu0 0
    %1777 = vmatpush1.bf16.msra.mxu0 0
    %1778 = vmatprep.subr.bf16.mxu0 0
    %1779 = vmatpush1.bf16.msra.mxu0 0
    %1780 = vmatprep.mubr.bf16.mxu0 0
    %1781 = vmatmul.mubr.bf16.gmra.mrb[0].mxu0 %v1692
    %v1782 = vpop.f32.mrb[0].mxu0
    %v1783 = vadd.f32 %v1698, %v1782
    %v1784 = vpop.f32.mrb[0].mxu0
    %v1785 = vpop.f32.mrb[0].mxu0
    %v1786 = vadd.f32 %v1698, %v1785
    %v1787 = vpop.f32.mrb[0].mxu0
    %1788 = vdwg.mxu0
    %v1789 = vld [vmem:[#allocation8] sm:$0xff]
    %v1790 = vld [vmem:[#allocation8 + $0x8] sm:$0xff]
    %v1791 = vld [vmem:[#allocation8 + $0x10] sm:$0xff]
    %v1792 = vld [vmem:[#allocation8 + $0x18] sm:$0xff]
    %v1793 = vld [vmem:[#allocation8 + $0x20] sm:$0xff]
    %v1794 = vld [vmem:[#allocation8 + $0x28] sm:$0xff]
    %v1795 = vld [vmem:[#allocation8 + $0x30] sm:$0xff]
    %v1796 = vld [vmem:[#allocation8 + $0x38] sm:$0xff]
    %v1797 = vld [vmem:[#allocation8 + $0x40] sm:$0xff]
    %v1798 = vld [vmem:[#allocation8 + $0x48] sm:$0xff]
    %v1799 = vld [vmem:[#allocation8 + $0x50] sm:$0xff]
    %v1800 = vld [vmem:[#allocation8 + $0x58] sm:$0xff]
    %v1801 = vld [vmem:[#allocation8 + $0x60] sm:$0xff]
    %v1802 = vld [vmem:[#allocation8 + $0x68] sm:$0xff]
    %v1803 = vld [vmem:[#allocation8 + $0x70] sm:$0xff]
    %v1804 = vld [vmem:[#allocation8 + $0x78] sm:$0xff]
    %v1805 = vpack.c.bf16 %v1673, %v1672
    %v1806 = vpack.c.bf16 %v1675, %v1674
    %v1807 = vld [vmem:[%s14] sm:$0x3]
    %v1809 = vlaneseq
    %v1810 = vshrl.u32 %v1809, 7
    %v1811 = vsub.s32 0, %v1810
    %v1812 = vrot.slane %v1807, %v1811
    %v1813 = vlaneseq
    %v1814 = vshrl.u32 %v1813, 7
    %v1815 = vsub.s32 1, %v1814
    %v1816 = vrot.slane %v1807, %v1815
    %v1835 = vunpack.c.l.b16 %v1789
    %v1836 = vunpack.c.h.b16 %v1789
    %v1837 = vunpack.c.l.b16 %v1790
    %v1838 = vunpack.c.h.b16 %v1790
    %v1839 = vunpack.c.l.b16 %v1791
    %v1840 = vunpack.c.h.b16 %v1791
    %v1841 = vunpack.c.l.b16 %v1792
    %v1842 = vunpack.c.h.b16 %v1792
    %v1843 = vunpack.c.l.b16 %v1793
    %v1844 = vunpack.c.h.b16 %v1793
    %v1845 = vunpack.c.l.b16 %v1794
    %v1846 = vunpack.c.h.b16 %v1794
    %v1847 = vunpack.c.l.b16 %v1795
    %v1848 = vunpack.c.h.b16 %v1795
    %v1849 = vunpack.c.l.b16 %v1796
    %v1850 = vunpack.c.h.b16 %v1796
    %v1851 = vunpack.c.l.b16 %v1797
    %v1852 = vunpack.c.h.b16 %v1797
    %v1853 = vunpack.c.l.b16 %v1798
    %v1854 = vunpack.c.h.b16 %v1798
    %v1855 = vunpack.c.l.b16 %v1799
    %v1856 = vunpack.c.h.b16 %v1799
    %v1857 = vunpack.c.l.b16 %v1800
    %v1858 = vunpack.c.h.b16 %v1800
    %v1859 = vunpack.c.l.b16 %v1801
    %v1860 = vunpack.c.h.b16 %v1801
    %v1861 = vunpack.c.l.b16 %v1802
    %v1862 = vunpack.c.h.b16 %v1802
    %v1863 = vunpack.c.l.b16 %v1803
    %v1864 = vunpack.c.h.b16 %v1803
    %v1865 = vunpack.c.l.b16 %v1804
    %v1866 = vunpack.c.h.b16 %v1804
    %v1867 = vpack.c.b16 %v1837, %v1835
    %v1868 = vpack.c.b16 %v1838, %v1836
    %v1869 = vpack.c.b16 %v1841, %v1839
    %v1870 = vpack.c.b16 %v1842, %v1840
    %v1871 = vpack.c.b16 %v1845, %v1843
    %v1872 = vpack.c.b16 %v1846, %v1844
    %v1873 = vpack.c.b16 %v1849, %v1847
    %v1874 = vpack.c.b16 %v1850, %v1848
    %v1875 = vpack.c.b16 %v1853, %v1851
    %v1876 = vpack.c.b16 %v1854, %v1852
    %v1877 = vpack.c.b16 %v1857, %v1855
    %v1878 = vpack.c.b16 %v1858, %v1856
    %v1879 = vpack.c.b16 %v1861, %v1859
    %v1880 = vpack.c.b16 %v1862, %v1860
    %v1881 = vpack.c.b16 %v1865, %v1863
    %v1882 = vpack.c.b16 %v1866, %v1864
    %1899 = vmatprep.subr.bf16.mxu0 %v1868
    %1900 = vmatpush1.bf16.msra.mxu0 %v1867
    %1901 = vmatprep.subr.bf16.mxu0 %v1870
    %1902 = vmatpush1.bf16.msra.mxu0 %v1869
    %1903 = vmatprep.subr.bf16.mxu0 %v1872
    %1904 = vmatpush1.bf16.msra.mxu0 %v1871
    %1905 = vmatprep.subr.bf16.mxu0 %v1874
    %1906 = vmatpush1.bf16.msra.mxu0 %v1873
    %1907 = vmatprep.subr.bf16.mxu0 %v1876
    %1908 = vmatpush1.bf16.msra.mxu0 %v1875
    %1909 = vmatprep.subr.bf16.mxu0 %v1878
    %1910 = vmatpush1.bf16.msra.mxu0 %v1877
    %1911 = vmatprep.subr.bf16.mxu0 %v1880
    %1912 = vmatpush1.bf16.msra.mxu0 %v1879
    %1913 = vmatprep.subr.bf16.mxu0 %v1882
    %1914 = vmatpush1.bf16.msra.mxu0 %v1881
    %1915 = vmatprep.subr.bf16.mxu0 0
    %1916 = vmatpush1.bf16.msra.mxu0 0
    %1917 = vmatprep.subr.bf16.mxu0 0
    %1918 = vmatpush1.bf16.msra.mxu0 0
    %1919 = vmatprep.subr.bf16.mxu0 0
    %1920 = vmatpush1.bf16.msra.mxu0 0
    %1921 = vmatprep.subr.bf16.mxu0 0
    %1922 = vmatpush1.bf16.msra.mxu0 0
    %1923 = vmatprep.subr.bf16.mxu0 0
    %1924 = vmatpush1.bf16.msra.mxu0 0
    %1925 = vmatprep.subr.bf16.mxu0 0
    %1926 = vmatpush1.bf16.msra.mxu0 0
    %1927 = vmatprep.subr.bf16.mxu0 0
    %1928 = vmatpush1.bf16.msra.mxu0 0
    %1929 = vmatprep.subr.bf16.mxu0 0
    %1930 = vmatpush1.bf16.msra.mxu0 0
    %1931 = vmatprep.mubr.bf16.mxu0 0
    %1932 = vmatmul.mubr.bf16.gmra.mrb[0].mxu0 %v1805
    %v1933 = vpop.f32.mrb[0].mxu0
    %v1934 = vadd.f32 %v1812, %v1933
    %v1935 = vpop.f32.mrb[0].mxu0
    %v1936 = vadd.f32 %v1816, %v1935
    %v1937 = vpop.f32.mrb[0].mxu0
    %v1938 = vadd.f32 %v1812, %v1937
    %v1939 = vpop.f32.mrb[0].mxu0
    %v1940 = vadd.f32 %v1816, %v1939
    %1941 = vmatprep.mubr.bf16.mxu0 0
    %1942 = vmatmul.mubr.bf16.gmra.mrb[0].mxu0 %v1806
    %v1943 = vpop.f32.mrb[0].mxu0
    %v1944 = vadd.f32 %v1812, %v1943
    %v1945 = vpop.f32.mrb[0].mxu0
    %v1946 = vadd.f32 %v1816, %v1945
    %v1947 = vpop.f32.mrb[0].mxu0
    %v1948 = vadd.f32 %v1812, %v1947
    %v1949 = vpop.f32.mrb[0].mxu0
    %v1950 = vadd.f32 %v1816, %v1949
    %1951 = vdwg.mxu0
    %v1952 = vld [vmem:[%s2] sm:$0x3]
    %v1953 = vmul.f32 %v1952, -1e+30
    %v1956 = vunpack.c.l.s4 1966171168
    %v1957 = vunpack.c.0.s8 %v1956
    %v1958 = vlaneseq
    %v1959 = vshrl.u32 %v1958, 7
    %v1960 = vsub.s32 %v1957, %v1959
    %v1961 = vrot.slane %v1953, %v1960
    %v1962 = vcombine.high %v1961, %v1961
    %v1964 = vunpack.c.l.s4 1966171168
    %v1965 = vunpack.c.0.s8 %v1964
    %v1966 = vlaneseq
    %v1967 = vshrl.u32 %v1966, 7
    %v1968 = vsub.s32 %v1965, %v1967
    %v1969 = vrot.slane %v1961, %v1968
    %v1971 = vunpack.c.l.s4 1966171168
    %v1972 = vunpack.c.0.s8 %v1971
    %v1973 = vlaneseq
    %v1974 = vshrl.u32 %v1973, 7
    %v1975 = vsub.s32 %v1972, %v1974
    %v1976 = vrot.slane %v1962, %v1975
    %v1977 = vld [vmem:[#allocation10] sm:$0xf]
    %v1978 = vld [vmem:[#allocation10 + $0x4] sm:$0xf]
    %v1979 = vld [vmem:[#allocation10 + $0x8] sm:$0xf]
    %v1980 = vld [vmem:[#allocation10 + $0xc] sm:$0xf]
    %v1981 = vld [vmem:[#allocation10 + $0x10] sm:$0xf]
    %v1982 = vld [vmem:[#allocation10 + $0x14] sm:$0xf]
    %v1983 = vld [vmem:[#allocation10 + $0x18] sm:$0xf]
    %v1984 = vld [vmem:[#allocation10 + $0x1c] sm:$0xf]
    %v1985 = vld [vmem:[#allocation10 + $0x20] sm:$0xf]
    %v1986 = vld [vmem:[#allocation10 + $0x24] sm:$0xf]
    %v1987 = vld [vmem:[#allocation10 + $0x28] sm:$0xf]
    %v1988 = vld [vmem:[#allocation10 + $0x2c] sm:$0xf]
    %v1989 = vld [vmem:[#allocation10 + $0x30] sm:$0xf]
    %v1990 = vld [vmem:[#allocation10 + $0x34] sm:$0xf]
    %v1991 = vld [vmem:[#allocation10 + $0x38] sm:$0xf]
    %v1992 = vld [vmem:[#allocation10 + $0x3c] sm:$0xf]
    %v1993 = vpack.c.bf16 %v1783, %v1783
    %v1994 = vpack.c.bf16 %v1786, %v1786
    %v1995 = vpack.c.bf16 %v1938, %v1934
    %v1996 = vpack.c.bf16 %v1948, %v1944
    %v1997 = vlaneseq
    %v1998 = vshrl.u32 %v1997, 7
    %v1999 = vsub.s32 0, %v1998
    %v2000 = vrot.slane %v1969, %v1999
    %v2001 = vlaneseq
    %v2002 = vshrl.u32 %v2001, 7
    %v2003 = vsub.s32 0, %v2002
    %v2004 = vrot.slane %v1976, %v2003
    %v2008 = vsel %vm467, %v1993, 0
    %v2011 = vsel %vm467, %v1995, 0
    %2013 = vmatprep.subr.bf16.mxu0 0
    %2014 = vmatpush1.bf16.xpose.msra.mxu0 %v2011
    %2015 = vmatprep.subr.bf16.mxu0 0
    %2016 = vmatpush1.bf16.xpose.msra.mxu0 0
    %2017 = vmatprep.subr.bf16.mxu0 0
    %2018 = vmatpush1.bf16.xpose.msra.mxu0 0
    %2019 = vmatprep.subr.bf16.mxu0 0
    %2020 = vmatpush1.bf16.xpose.msra.mxu0 0
    %2021 = vmatprep.subr.bf16.mxu0 0
    %2022 = vmatpush1.bf16.xpose.msra.mxu0 0
    %2023 = vmatprep.subr.bf16.mxu0 0
    %2024 = vmatpush1.bf16.xpose.msra.mxu0 0
    %2025 = vmatprep.subr.bf16.mxu0 0
    %2026 = vmatpush1.bf16.xpose.msra.mxu0 0
    %2027 = vmatprep.subr.bf16.mxu0 0
    %2028 = vmatpush1.bf16.xpose.msra.mxu0 0
    %2029 = vmatprep.subr.bf16.mxu0 0
    %2030 = vmatpush1.bf16.xpose.msra.mxu0 0
    %2031 = vmatprep.subr.bf16.mxu0 0
    %2032 = vmatpush1.bf16.xpose.msra.mxu0 0
    %2033 = vmatprep.subr.bf16.mxu0 0
    %2034 = vmatpush1.bf16.xpose.msra.mxu0 0
    %2035 = vmatprep.subr.bf16.mxu0 0
    %2036 = vmatpush1.bf16.xpose.msra.mxu0 0
    %2037 = vmatprep.subr.bf16.mxu0 0
    %2038 = vmatpush1.bf16.xpose.msra.mxu0 0
    %2039 = vmatprep.subr.bf16.mxu0 0
    %2040 = vmatpush1.bf16.xpose.msra.mxu0 0
    %2041 = vmatprep.subr.bf16.mxu0 0
    %2042 = vmatpush1.bf16.xpose.msra.mxu0 0
    %2043 = vmatprep.subr.bf16.mxu0 0
    %2044 = vmatpush1.bf16.xpose.msra.mxu0 0
    %2045 = vmatprep.mubr.bf16.mxu0 0
    %2046 = vmatmul.mubr.bf16.gmra.mrb[0].mxu0 %v2008
    %v2047 = vpop.f32.mrb[0].mxu0
    %v2048 = vadd.f32 %v2000, %v2047
    %v2049 = vpop.f32.mrb[0].mxu0
    %v2050 = vpop.f32.mrb[0].mxu0
    %v2051 = vpop.f32.mrb[0].mxu0
    %2052 = vdwg.mxu0
    %v2054 = vsel %vm467, %v1994, 0
    %v2057 = vsel %vm467, %v1996, 0
    %2059 = vmatprep.subr.bf16.mxu0 0
    %2060 = vmatpush1.bf16.xpose.msra.mxu0 %v2057
    %2061 = vmatprep.subr.bf16.mxu0 0
    %2062 = vmatpush1.bf16.xpose.msra.mxu0 0
    %2063 = vmatprep.subr.bf16.mxu0 0
    %2064 = vmatpush1.bf16.xpose.msra.mxu0 0
    %2065 = vmatprep.subr.bf16.mxu0 0
    %2066 = vmatpush1.bf16.xpose.msra.mxu0 0
    %2067 = vmatprep.subr.bf16.mxu0 0
    %2068 = vmatpush1.bf16.xpose.msra.mxu0 0
    %2069 = vmatprep.subr.bf16.mxu0 0
    %2070 = vmatpush1.bf16.xpose.msra.mxu0 0
    %2071 = vmatprep.subr.bf16.mxu0 0
    %2072 = vmatpush1.bf16.xpose.msra.mxu0 0
    %2073 = vmatprep.subr.bf16.mxu0 0
    %2074 = vmatpush1.bf16.xpose.msra.mxu0 0
    %2075 = vmatprep.subr.bf16.mxu0 0
    %2076 = vmatpush1.bf16.xpose.msra.mxu0 0
    %2077 = vmatprep.subr.bf16.mxu0 0
    %2078 = vmatpush1.bf16.xpose.msra.mxu0 0
    %2079 = vmatprep.subr.bf16.mxu0 0
    %2080 = vmatpush1.bf16.xpose.msra.mxu0 0
    %2081 = vmatprep.subr.bf16.mxu0 0
    %2082 = vmatpush1.bf16.xpose.msra.mxu0 0
    %2083 = vmatprep.subr.bf16.mxu0 0
    %2084 = vmatpush1.bf16.xpose.msra.mxu0 0
    %2085 = vmatprep.subr.bf16.mxu0 0
    %2086 = vmatpush1.bf16.xpose.msra.mxu0 0
    %2087 = vmatprep.subr.bf16.mxu0 0
    %2088 = vmatpush1.bf16.xpose.msra.mxu0 0
    %2089 = vmatprep.subr.bf16.mxu0 0
    %2090 = vmatpush1.bf16.xpose.msra.mxu0 0
    %2091 = vmatprep.mubr.bf16.mxu0 0
    %2092 = vmatmul.mubr.bf16.gmra.mrb[0].mxu0 %v2054
    %v2093 = vpop.f32.mrb[0].mxu0
    %v2094 = vadd.f32 %v2004, %v2093
    %v2095 = vpop.f32.mrb[0].mxu0
    %v2096 = vpop.f32.mrb[0].mxu0
    %v2097 = vpop.f32.mrb[0].mxu0
    %2098 = vdwg.mxu0
    %vm2099 = vcmask 130048
    %v2100 = vsel %vm2099, %v2048, -inf
    %2101 = vmax.xlane.f32.xlu0 %v2100
    %v2102 = vpop.xlane.xlu0 %2101
    %v2103 = vsel %vm2099, %v2094, -inf
    %2104 = vmax.xlane.f32.xlu0 %v2103
    %v2105 = vpop.xlane.xlu0 %2104
    %v2106 = vsub.f32 %v2048, %v2102
    %v2107 = vsub.f32 %v2094, %v2105
    %v2108 = vmul.f32 %v2106, 1.442695
    %v2109 = vpow.pop %v2108
    %v2110 = vmul.f32 %v2107, 1.442695
    %v2111 = vpow.pop %v2110
    %v2112 = vsel %vm2099, %v2109, 0.0
    %2113 = vadd.xlane.f32.xlu0 %v2112
    %v2114 = vpop.xlane.xlu0 %2113
    %v2115 = vsel %vm2099, %v2111, 0.0
    %2116 = vadd.xlane.f32.xlu0 %v2115
    %v2117 = vpop.xlane.xlu0 %2116
    %v2118 = vrcp.pop %v2114
    %v2119 = vrcp.pop %v2117
    %v2120 = vmul.f32 %v2109, %v2118
    %v2121 = vmul.f32 %v2111, %v2119
    %v2122 = vpack.c.bf16 %v2120, %v2120
    %v2123 = vpack.c.bf16 %v2121, %v2121
    %v2124 = vpack.c.bf16 %v1940, %v1936
    %v2125 = vpack.c.bf16 %v1950, %v1946
    %v2127 = vsel %vm2099, %v2122, 0
    %2129 = vmatprep.subr.bf16.mxu0 0
    %2130 = vmatpush1.bf16.msra.mxu0 %v2124
    %2131 = vmatprep.subr.bf16.mxu0 0
    %2132 = vmatpush1.bf16.msra.mxu0 0
    %2133 = vmatprep.subr.bf16.mxu0 0
    %2134 = vmatpush1.bf16.msra.mxu0 0
    %2135 = vmatprep.subr.bf16.mxu0 0
    %2136 = vmatpush1.bf16.msra.mxu0 0
    %2137 = vmatprep.subr.bf16.mxu0 0
    %2138 = vmatpush1.bf16.msra.mxu0 0
    %2139 = vmatprep.subr.bf16.mxu0 0
    %2140 = vmatpush1.bf16.msra.mxu0 0
    %2141 = vmatprep.subr.bf16.mxu0 0
    %2142 = vmatpush1.bf16.msra.mxu0 0
    %2143 = vmatprep.subr.bf16.mxu0 0
    %2144 = vmatpush1.bf16.msra.mxu0 0
    %2145 = vmatprep.subr.bf16.mxu0 0
    %2146 = vmatpush1.bf16.msra.mxu0 0
    %2147 = vmatprep.subr.bf16.mxu0 0
    %2148 = vmatpush1.bf16.msra.mxu0 0
    %2149 = vmatprep.subr.bf16.mxu0 0
    %2150 = vmatpush1.bf16.msra.mxu0 0
    %2151 = vmatprep.subr.bf16.mxu0 0
    %2152 = vmatpush1.bf16.msra.mxu0 0
    %2153 = vmatprep.subr.bf16.mxu0 0
    %2154 = vmatpush1.bf16.msra.mxu0 0
    %2155 = vmatprep.subr.bf16.mxu0 0
    %2156 = vmatpush1.bf16.msra.mxu0 0
    %2157 = vmatprep.subr.bf16.mxu0 0
    %2158 = vmatpush1.bf16.msra.mxu0 0
    %2159 = vmatprep.subr.bf16.mxu0 0
    %2160 = vmatpush1.bf16.msra.mxu0 0
    %2161 = vmatprep.mubr.bf16.mxu0 0
    %2162 = vmatmul.mubr.bf16.gmra.mrb[0].mxu0 %v2127
    %v2163 = vpop.f32.mrb[0].mxu0
    %v2164 = vadd.f32 0.0, %v2163
    %v2165 = vpop.f32.mrb[0].mxu0
    %v2166 = vpop.f32.mrb[0].mxu0
    %v2167 = vpop.f32.mrb[0].mxu0
    %2168 = vdwg.mxu0
    %v2170 = vsel %vm2099, %v2123, 0
    %2172 = vmatprep.subr.bf16.mxu0 0
    %2173 = vmatpush1.bf16.msra.mxu0 %v2125
    %2174 = vmatprep.subr.bf16.mxu0 0
    %2175 = vmatpush1.bf16.msra.mxu0 0
    %2176 = vmatprep.subr.bf16.mxu0 0
    %2177 = vmatpush1.bf16.msra.mxu0 0
    %2178 = vmatprep.subr.bf16.mxu0 0
    %2179 = vmatpush1.bf16.msra.mxu0 0
    %2180 = vmatprep.subr.bf16.mxu0 0
    %2181 = vmatpush1.bf16.msra.mxu0 0
    %2182 = vmatprep.subr.bf16.mxu0 0
    %2183 = vmatpush1.bf16.msra.mxu0 0
    %2184 = vmatprep.subr.bf16.mxu0 0
    %2185 = vmatpush1.bf16.msra.mxu0 0
    %2186 = vmatprep.subr.bf16.mxu0 0
    %2187 = vmatpush1.bf16.msra.mxu0 0
    %2188 = vmatprep.subr.bf16.mxu0 0
    %2189 = vmatpush1.bf16.msra.mxu0 0
    %2190 = vmatprep.subr.bf16.mxu0 0
    %2191 = vmatpush1.bf16.msra.mxu0 0
    %2192 = vmatprep.subr.bf16.mxu0 0
    %2193 = vmatpush1.bf16.msra.mxu0 0
    %2194 = vmatprep.subr.bf16.mxu0 0
    %2195 = vmatpush1.bf16.msra.mxu0 0
    %2196 = vmatprep.subr.bf16.mxu0 0
    %2197 = vmatpush1.bf16.msra.mxu0 0
    %2198 = vmatprep.subr.bf16.mxu0 0
    %2199 = vmatpush1.bf16.msra.mxu0 0
    %2200 = vmatprep.subr.bf16.mxu0 0
    %2201 = vmatpush1.bf16.msra.mxu0 0
    %2202 = vmatprep.subr.bf16.mxu0 0
    %2203 = vmatpush1.bf16.msra.mxu0 0
    %2204 = vmatprep.mubr.bf16.mxu0 0
    %2205 = vmatmul.mubr.bf16.gmra.mrb[0].mxu0 %v2170
    %v2206 = vpop.f32.mrb[0].mxu0
    %v2207 = vadd.f32 0.0, %v2206
    %v2208 = vpop.f32.mrb[0].mxu0
    %v2209 = vpop.f32.mrb[0].mxu0
    %v2210 = vpop.f32.mrb[0].mxu0
    %2211 = vdwg.mxu0
    %v2212 = vpack.c.bf16 %v2207, %v2164
    %2214 = vrot.lane.b32.xlu0 %v1993, 96
    %v2215 = vpop.permute.xlu0 %2214
    %2217 = vrot.lane.b32.xlu0 %v1995, 96
    %v2218 = vpop.permute.xlu0 %2217
    %v2220 = vsel %vm467, %v2215, 0
    %v2223 = vsel %vm467, %v2218, 0
    %2225 = vmatprep.subr.bf16.mxu0 0
    %2226 = vmatpush1.bf16.xpose.msra.mxu0 %v2223
    %2227 = vmatprep.subr.bf16.mxu0 0
    %2228 = vmatpush1.bf16.xpose.msra.mxu0 0
    %2229 = vmatprep.subr.bf16.mxu0 0
    %2230 = vmatpush1.bf16.xpose.msra.mxu0 0
    %2231 = vmatprep.subr.bf16.mxu0 0
    %2232 = vmatpush1.bf16.xpose.msra.mxu0 0
    %2233 = vmatprep.subr.bf16.mxu0 0
    %2234 = vmatpush1.bf16.xpose.msra.mxu0 0
    %2235 = vmatprep.subr.bf16.mxu0 0
    %2236 = vmatpush1.bf16.xpose.msra.mxu0 0
    %2237 = vmatprep.subr.bf16.mxu0 0
    %2238 = vmatpush1.bf16.xpose.msra.mxu0 0
    %2239 = vmatprep.subr.bf16.mxu0 0
    %2240 = vmatpush1.bf16.xpose.msra.mxu0 0
    %2241 = vmatprep.subr.bf16.mxu0 0
    %2242 = vmatpush1.bf16.xpose.msra.mxu0 0
    %2243 = vmatprep.subr.bf16.mxu0 0
    %2244 = vmatpush1.bf16.xpose.msra.mxu0 0
    %2245 = vmatprep.subr.bf16.mxu0 0
    %2246 = vmatpush1.bf16.xpose.msra.mxu0 0
    %2247 = vmatprep.subr.bf16.mxu0 0
    %2248 = vmatpush1.bf16.xpose.msra.mxu0 0
    %2249 = vmatprep.subr.bf16.mxu0 0
    %2250 = vmatpush1.bf16.xpose.msra.mxu0 0
    %2251 = vmatprep.subr.bf16.mxu0 0
    %2252 = vmatpush1.bf16.xpose.msra.mxu0 0
    %2253 = vmatprep.subr.bf16.mxu0 0
    %2254 = vmatpush1.bf16.xpose.msra.mxu0 0
    %2255 = vmatprep.subr.bf16.mxu0 0
    %2256 = vmatpush1.bf16.xpose.msra.mxu0 0
    %2257 = vmatprep.mubr.bf16.mxu0 0
    %2258 = vmatmul.mubr.bf16.gmra.mrb[0].mxu0 %v2220
    %v2259 = vpop.f32.mrb[0].mxu0
    %v2260 = vadd.f32 %v2000, %v2259
    %v2261 = vpop.f32.mrb[0].mxu0
    %v2262 = vpop.f32.mrb[0].mxu0
    %v2263 = vpop.f32.mrb[0].mxu0
    %2264 = vdwg.mxu0
    %2266 = vrot.lane.b32.xlu0 %v1994, 96
    %v2267 = vpop.permute.xlu0 %2266
    %2269 = vrot.lane.b32.xlu0 %v1996, 96
    %v2270 = vpop.permute.xlu0 %2269
    %v2272 = vsel %vm467, %v2267, 0
    %v2275 = vsel %vm467, %v2270, 0
    %2277 = vmatprep.subr.bf16.mxu0 0
    %2278 = vmatpush1.bf16.xpose.msra.mxu0 %v2275
    %2279 = vmatprep.subr.bf16.mxu0 0
    %2280 = vmatpush1.bf16.xpose.msra.mxu0 0
    %2281 = vmatprep.subr.bf16.mxu0 0
    %2282 = vmatpush1.bf16.xpose.msra.mxu0 0
    %2283 = vmatprep.subr.bf16.mxu0 0
    %2284 = vmatpush1.bf16.xpose.msra.mxu0 0
    %2285 = vmatprep.subr.bf16.mxu0 0
    %2286 = vmatpush1.bf16.xpose.msra.mxu0 0
    %2287 = vmatprep.subr.bf16.mxu0 0
    %2288 = vmatpush1.bf16.xpose.msra.mxu0 0
    %2289 = vmatprep.subr.bf16.mxu0 0
    %2290 = vmatpush1.bf16.xpose.msra.mxu0 0
    %2291 = vmatprep.subr.bf16.mxu0 0
    %2292 = vmatpush1.bf16.xpose.msra.mxu0 0
    %2293 = vmatprep.subr.bf16.mxu0 0
    %2294 = vmatpush1.bf16.xpose.msra.mxu0 0
    %2295 = vmatprep.subr.bf16.mxu0 0
    %2296 = vmatpush1.bf16.xpose.msra.mxu0 0
    %2297 = vmatprep.subr.bf16.mxu0 0
    %2298 = vmatpush1.bf16.xpose.msra.mxu0 0
    %2299 = vmatprep.subr.bf16.mxu0 0
    %2300 = vmatpush1.bf16.xpose.msra.mxu0 0
    %2301 = vmatprep.subr.bf16.mxu0 0
    %2302 = vmatpush1.bf16.xpose.msra.mxu0 0
    %2303 = vmatprep.subr.bf16.mxu0 0
    %2304 = vmatpush1.bf16.xpose.msra.mxu0 0
    %2305 = vmatprep.subr.bf16.mxu0 0
    %2306 = vmatpush1.bf16.xpose.msra.mxu0 0
    %2307 = vmatprep.subr.bf16.mxu0 0
    %2308 = vmatpush1.bf16.xpose.msra.mxu0 0
    %2309 = vmatprep.mubr.bf16.mxu0 0
    %2310 = vmatmul.mubr.bf16.gmra.mrb[0].mxu0 %v2272
    %v2311 = vpop.f32.mrb[0].mxu0
    %v2312 = vadd.f32 %v2004, %v2311
    %v2313 = vpop.f32.mrb[0].mxu0
    %v2314 = vpop.f32.mrb[0].mxu0
    %v2315 = vpop.f32.mrb[0].mxu0
    %2316 = vdwg.mxu0
    %v2317 = vsel %vm2099, %v2260, -inf
    %2318 = vmax.xlane.f32.xlu0 %v2317
    %v2319 = vpop.xlane.xlu0 %2318
    %v2320 = vsel %vm2099, %v2312, -inf
    %2321 = vmax.xlane.f32.xlu0 %v2320
    %v2322 = vpop.xlane.xlu0 %2321
    %v2323 = vsub.f32 %v2260, %v2319
    %v2324 = vsub.f32 %v2312, %v2322
    %v2325 = vmul.f32 %v2323, 1.442695
    %v2326 = vpow.pop %v2325
    %v2327 = vmul.f32 %v2324, 1.442695
    %v2328 = vpow.pop %v2327
    %v2329 = vsel %vm2099, %v2326, 0.0
    %2330 = vadd.xlane.f32.xlu0 %v2329
    %v2331 = vpop.xlane.xlu0 %2330
    %v2332 = vsel %vm2099, %v2328, 0.0
    %2333 = vadd.xlane.f32.xlu0 %v2332
    %v2334 = vpop.xlane.xlu0 %2333
    %v2335 = vrcp.pop %v2331
    %v2336 = vrcp.pop %v2334
    %v2337 = vmul.f32 %v2326, %v2335
    %v2338 = vmul.f32 %v2328, %v2336
    %v2339 = vpack.c.bf16 %v2337, %v2337
    %v2340 = vpack.c.bf16 %v2338, %v2338
    %2342 = vrot.lane.b32.xlu0 %v2124, 96
    %v2343 = vpop.permute.xlu0 %2342
    %v2346 = vsel %vm2099, %v2339, 0
    %2348 = vmatprep.subr.bf16.mxu0 0
    %2349 = vmatpush1.bf16.msra.mxu0 %v2343
    %2350 = vmatprep.subr.bf16.mxu0 0
    %2351 = vmatpush1.bf16.msra.mxu0 0
    %2352 = vmatprep.subr.bf16.mxu0 0
    %2353 = vmatpush1.bf16.msra.mxu0 0
    %2354 = vmatprep.subr.bf16.mxu0 0
    %2355 = vmatpush1.bf16.msra.mxu0 0
    %2356 = vmatprep.subr.bf16.mxu0 0
    %2357 = vmatpush1.bf16.msra.mxu0 0
    %2358 = vmatprep.subr.bf16.mxu0 0
    %2359 = vmatpush1.bf16.msra.mxu0 0
    %2360 = vmatprep.subr.bf16.mxu0 0
    %2361 = vmatpush1.bf16.msra.mxu0 0
    %2362 = vmatprep.subr.bf16.mxu0 0
    %2363 = vmatpush1.bf16.msra.mxu0 0
    %2364 = vmatprep.subr.bf16.mxu0 0
    %2365 = vmatpush1.bf16.msra.mxu0 0
    %2366 = vmatprep.subr.bf16.mxu0 0
    %2367 = vmatpush1.bf16.msra.mxu0 0
    %2368 = vmatprep.subr.bf16.mxu0 0
    %2369 = vmatpush1.bf16.msra.mxu0 0
    %2370 = vmatprep.subr.bf16.mxu0 0
    %2371 = vmatpush1.bf16.msra.mxu0 0
    %2372 = vmatprep.subr.bf16.mxu0 0
    %2373 = vmatpush1.bf16.msra.mxu0 0
    %2374 = vmatprep.subr.bf16.mxu0 0
    %2375 = vmatpush1.bf16.msra.mxu0 0
    %2376 = vmatprep.subr.bf16.mxu0 0
    %2377 = vmatpush1.bf16.msra.mxu0 0
    %2378 = vmatprep.subr.bf16.mxu0 0
    %2379 = vmatpush1.bf16.msra.mxu0 0
    %2380 = vmatprep.mubr.bf16.mxu0 0
    %2381 = vmatmul.mubr.bf16.gmra.mrb[0].mxu0 %v2346
    %v2382 = vpop.f32.mrb[0].mxu0
    %v2383 = vadd.f32 0.0, %v2382
    %v2384 = vpop.f32.mrb[0].mxu0
    %v2385 = vpop.f32.mrb[0].mxu0
    %v2386 = vpop.f32.mrb[0].mxu0
    %2387 = vdwg.mxu0
    %2389 = vrot.lane.b32.xlu0 %v2125, 96
    %v2390 = vpop.permute.xlu0 %2389
    %v2393 = vsel %vm2099, %v2340, 0
    %2395 = vmatprep.subr.bf16.mxu0 0
    %2396 = vmatpush1.bf16.msra.mxu0 %v2390
    %2397 = vmatprep.subr.bf16.mxu0 0
    %2398 = vmatpush1.bf16.msra.mxu0 0
    %2399 = vmatprep.subr.bf16.mxu0 0
    %2400 = vmatpush1.bf16.msra.mxu0 0
    %2401 = vmatprep.subr.bf16.mxu0 0
    %2402 = vmatpush1.bf16.msra.mxu0 0
    %2403 = vmatprep.subr.bf16.mxu0 0
    %2404 = vmatpush1.bf16.msra.mxu0 0
    %2405 = vmatprep.subr.bf16.mxu0 0
    %2406 = vmatpush1.bf16.msra.mxu0 0
    %2407 = vmatprep.subr.bf16.mxu0 0
    %2408 = vmatpush1.bf16.msra.mxu0 0
    %2409 = vmatprep.subr.bf16.mxu0 0
    %2410 = vmatpush1.bf16.msra.mxu0 0
    %2411 = vmatprep.subr.bf16.mxu0 0
    %2412 = vmatpush1.bf16.msra.mxu0 0
    %2413 = vmatprep.subr.bf16.mxu0 0
    %2414 = vmatpush1.bf16.msra.mxu0 0
    %2415 = vmatprep.subr.bf16.mxu0 0
    %2416 = vmatpush1.bf16.msra.mxu0 0
    %2417 = vmatprep.subr.bf16.mxu0 0
    %2418 = vmatpush1.bf16.msra.mxu0 0
    %2419 = vmatprep.subr.bf16.mxu0 0
    %2420 = vmatpush1.bf16.msra.mxu0 0
    %2421 = vmatprep.subr.bf16.mxu0 0
    %2422 = vmatpush1.bf16.msra.mxu0 0
    %2423 = vmatprep.subr.bf16.mxu0 0
    %2424 = vmatpush1.bf16.msra.mxu0 0
    %2425 = vmatprep.subr.bf16.mxu0 0
    %2426 = vmatpush1.bf16.msra.mxu0 0
    %2427 = vmatprep.mubr.bf16.mxu0 0
    %2428 = vmatmul.mubr.bf16.gmra.mrb[0].mxu0 %v2393
    %v2429 = vpop.f32.mrb[0].mxu0
    %v2430 = vadd.f32 0.0, %v2429
    %v2431 = vpop.f32.mrb[0].mxu0
    %v2432 = vpop.f32.mrb[0].mxu0
    %v2433 = vpop.f32.mrb[0].mxu0
    %2434 = vdwg.mxu0
    %v2435 = vpack.c.bf16 %v2430, %v2383
    %v2440 = vunpack.c.l.b16 %v1981
    %v2441 = vunpack.c.l.b16 %v1982
    %v2442 = vunpack.c.l.b16 %v1983
    %v2443 = vunpack.c.l.b16 %v1984
    %v2444 = vpack.c.b16 %v2441, %v2440
    %v2445 = vpack.c.b16 %v2443, %v2442
    %v2449 = vsel %vm467, %v2435, 0
    %2451 = vmatprep.subr.bf16.mxu0 0
    %2452 = vmatpush1.bf16.msra.mxu0 %v2444
    %2453 = vmatprep.subr.bf16.mxu0 0
    %2454 = vmatpush1.bf16.msra.mxu0 %v2445
    %2455 = vmatprep.subr.bf16.mxu0 0
    %2456 = vmatpush1.bf16.msra.mxu0 0
    %2457 = vmatprep.subr.bf16.mxu0 0
    %2458 = vmatpush1.bf16.msra.mxu0 0
    %2459 = vmatprep.subr.bf16.mxu0 0
    %2460 = vmatpush1.bf16.msra.mxu0 0
    %2461 = vmatprep.subr.bf16.mxu0 0
    %2462 = vmatpush1.bf16.msra.mxu0 0
    %2463 = vmatprep.subr.bf16.mxu0 0
    %2464 = vmatpush1.bf16.msra.mxu0 0
    %2465 = vmatprep.subr.bf16.mxu0 0
    %2466 = vmatpush1.bf16.msra.mxu0 0
    %2467 = vmatprep.subr.bf16.mxu0 0
    %2468 = vmatpush1.bf16.msra.mxu0 0
    %2469 = vmatprep.subr.bf16.mxu0 0
    %2470 = vmatpush1.bf16.msra.mxu0 0
    %2471 = vmatprep.subr.bf16.mxu0 0
    %2472 = vmatpush1.bf16.msra.mxu0 0
    %2473 = vmatprep.subr.bf16.mxu0 0
    %2474 = vmatpush1.bf16.msra.mxu0 0
    %2475 = vmatprep.subr.bf16.mxu0 0
    %2476 = vmatpush1.bf16.msra.mxu0 0
    %2477 = vmatprep.subr.bf16.mxu0 0
    %2478 = vmatpush1.bf16.msra.mxu0 0
    %2479 = vmatprep.subr.bf16.mxu0 0
    %2480 = vmatpush1.bf16.msra.mxu0 0
    %2481 = vmatprep.subr.bf16.mxu0 0
    %2482 = vmatpush1.bf16.msra.mxu0 0
    %2483 = vmatprep.mubr.bf16.mxu0 0
    %2484 = vmatmul.mubr.bf16.gmra.mrb[0].mxu0 %v2449
    %v2485 = vpop.f32.mrb[0].mxu0
    %v2486 = vadd.f32 0.0, %v2485
    %v2487 = vpop.f32.mrb[0].mxu0
    %v2488 = vpop.f32.mrb[0].mxu0
    %v2489 = vadd.f32 0.0, %v2488
    %v2490 = vpop.f32.mrb[0].mxu0
    %2491 = vdwg.mxu0
    %v2496 = vunpack.c.l.b16 %v1977
    %v2497 = vunpack.c.l.b16 %v1978
    %v2498 = vunpack.c.l.b16 %v1979
    %v2499 = vunpack.c.l.b16 %v1980
    %v2500 = vpack.c.b16 %v2497, %v2496
    %v2501 = vpack.c.b16 %v2499, %v2498
    %v2505 = vsel %vm467, %v2212, 0
    %2507 = vmatprep.subr.bf16.mxu0 0
    %2508 = vmatpush1.bf16.msra.mxu0 %v2500
    %2509 = vmatprep.subr.bf16.mxu0 0
    %2510 = vmatpush1.bf16.msra.mxu0 %v2501
    %2511 = vmatprep.subr.bf16.mxu0 0
    %2512 = vmatpush1.bf16.msra.mxu0 0
    %2513 = vmatprep.subr.bf16.mxu0 0
    %2514 = vmatpush1.bf16.msra.mxu0 0
    %2515 = vmatprep.subr.bf16.mxu0 0
    %2516 = vmatpush1.bf16.msra.mxu0 0
    %2517 = vmatprep.subr.bf16.mxu0 0
    %2518 = vmatpush1.bf16.msra.mxu0 0
    %2519 = vmatprep.subr.bf16.mxu0 0
    %2520 = vmatpush1.bf16.msra.mxu0 0
    %2521 = vmatprep.subr.bf16.mxu0 0
    %2522 = vmatpush1.bf16.msra.mxu0 0
    %2523 = vmatprep.subr.bf16.mxu0 0
    %2524 = vmatpush1.bf16.msra.mxu0 0
    %2525 = vmatprep.subr.bf16.mxu0 0
    %2526 = vmatpush1.bf16.msra.mxu0 0
    %2527 = vmatprep.subr.bf16.mxu0 0
    %2528 = vmatpush1.bf16.msra.mxu0 0
    %2529 = vmatprep.subr.bf16.mxu0 0
    %2530 = vmatpush1.bf16.msra.mxu0 0
    %2531 = vmatprep.subr.bf16.mxu0 0
    %2532 = vmatpush1.bf16.msra.mxu0 0
    %2533 = vmatprep.subr.bf16.mxu0 0
    %2534 = vmatpush1.bf16.msra.mxu0 0
    %2535 = vmatprep.subr.bf16.mxu0 0
    %2536 = vmatpush1.bf16.msra.mxu0 0
    %2537 = vmatprep.subr.bf16.mxu0 0
    %2538 = vmatpush1.bf16.msra.mxu0 0
    %2539 = vmatprep.mubr.bf16.mxu0 0
    %2540 = vmatmul.mubr.bf16.gmra.mrb[0].mxu0 %v2505
    %v2541 = vpop.f32.mrb[0].mxu0
    %v2542 = vadd.f32 %v2486, %v2541
    %v2543 = vpop.f32.mrb[0].mxu0
    %v2544 = vpop.f32.mrb[0].mxu0
    %v2545 = vadd.f32 %v2489, %v2544
    %v2546 = vpop.f32.mrb[0].mxu0
    %2547 = vdwg.mxu0
    %2548 = vrot.lane.b32.xlu0 %v1993, 64
    %v2549 = vpop.permute.xlu0 %2548
    %2550 = vrot.lane.b32.xlu0 %v1995, 64
    %v2551 = vpop.permute.xlu0 %2550
    %v2553 = vsel %vm467, %v2549, 0
    %v2556 = vsel %vm467, %v2551, 0
    %2558 = vmatprep.subr.bf16.mxu0 0
    %2559 = vmatpush1.bf16.xpose.msra.mxu0 %v2556
    %2560 = vmatprep.subr.bf16.mxu0 0
    %2561 = vmatpush1.bf16.xpose.msra.mxu0 0
    %2562 = vmatprep.subr.bf16.mxu0 0
    %2563 = vmatpush1.bf16.xpose.msra.mxu0 0
    %2564 = vmatprep.subr.bf16.mxu0 0
    %2565 = vmatpush1.bf16.xpose.msra.mxu0 0
    %2566 = vmatprep.subr.bf16.mxu0 0
    %2567 = vmatpush1.bf16.xpose.msra.mxu0 0
    %2568 = vmatprep.subr.bf16.mxu0 0
    %2569 = vmatpush1.bf16.xpose.msra.mxu0 0
    %2570 = vmatprep.subr.bf16.mxu0 0
    %2571 = vmatpush1.bf16.xpose.msra.mxu0 0
    %2572 = vmatprep.subr.bf16.mxu0 0
    %2573 = vmatpush1.bf16.xpose.msra.mxu0 0
    %2574 = vmatprep.subr.bf16.mxu0 0
    %2575 = vmatpush1.bf16.xpose.msra.mxu0 0
    %2576 = vmatprep.subr.bf16.mxu0 0
    %2577 = vmatpush1.bf16.xpose.msra.mxu0 0
    %2578 = vmatprep.subr.bf16.mxu0 0
    %2579 = vmatpush1.bf16.xpose.msra.mxu0 0
    %2580 = vmatprep.subr.bf16.mxu0 0
    %2581 = vmatpush1.bf16.xpose.msra.mxu0 0
    %2582 = vmatprep.subr.bf16.mxu0 0
    %2583 = vmatpush1.bf16.xpose.msra.mxu0 0
    %2584 = vmatprep.subr.bf16.mxu0 0
    %2585 = vmatpush1.bf16.xpose.msra.mxu0 0
    %2586 = vmatprep.subr.bf16.mxu0 0
    %2587 = vmatpush1.bf16.xpose.msra.mxu0 0
    %2588 = vmatprep.subr.bf16.mxu0 0
    %2589 = vmatpush1.bf16.xpose.msra.mxu0 0
    %2590 = vmatprep.mubr.bf16.mxu0 0
    %2591 = vmatmul.mubr.bf16.gmra.mrb[0].mxu0 %v2553
    %v2592 = vpop.f32.mrb[0].mxu0
    %v2593 = vadd.f32 %v2000, %v2592
    %v2594 = vpop.f32.mrb[0].mxu0
    %v2595 = vpop.f32.mrb[0].mxu0
    %v2596 = vpop.f32.mrb[0].mxu0
    %2597 = vdwg.mxu0
    %2598 = vrot.lane.b32.xlu0 %v1994, 64
    %v2599 = vpop.permute.xlu0 %2598
    %2600 = vrot.lane.b32.xlu0 %v1996, 64
    %v2601 = vpop.permute.xlu0 %2600
    %v2603 = vsel %vm467, %v2599, 0
    %v2606 = vsel %vm467, %v2601, 0
    %2608 = vmatprep.subr.bf16.mxu0 0
    %2609 = vmatpush1.bf16.xpose.msra.mxu0 %v2606
    %2610 = vmatprep.subr.bf16.mxu0 0
    %2611 = vmatpush1.bf16.xpose.msra.mxu0 0
    %2612 = vmatprep.subr.bf16.mxu0 0
    %2613 = vmatpush1.bf16.xpose.msra.mxu0 0
    %2614 = vmatprep.subr.bf16.mxu0 0
    %2615 = vmatpush1.bf16.xpose.msra.mxu0 0
    %2616 = vmatprep.subr.bf16.mxu0 0
    %2617 = vmatpush1.bf16.xpose.msra.mxu0 0
    %2618 = vmatprep.subr.bf16.mxu0 0
    %2619 = vmatpush1.bf16.xpose.msra.mxu0 0
    %2620 = vmatprep.subr.bf16.mxu0 0
    %2621 = vmatpush1.bf16.xpose.msra.mxu0 0
    %2622 = vmatprep.subr.bf16.mxu0 0
    %2623 = vmatpush1.bf16.xpose.msra.mxu0 0
    %2624 = vmatprep.subr.bf16.mxu0 0
    %2625 = vmatpush1.bf16.xpose.msra.mxu0 0
    %2626 = vmatprep.subr.bf16.mxu0 0
    %2627 = vmatpush1.bf16.xpose.msra.mxu0 0
    %2628 = vmatprep.subr.bf16.mxu0 0
    %2629 = vmatpush1.bf16.xpose.msra.mxu0 0
    %2630 = vmatprep.subr.bf16.mxu0 0
    %2631 = vmatpush1.bf16.xpose.msra.mxu0 0
    %2632 = vmatprep.subr.bf16.mxu0 0
    %2633 = vmatpush1.bf16.xpose.msra.mxu0 0
    %2634 = vmatprep.subr.bf16.mxu0 0
    %2635 = vmatpush1.bf16.xpose.msra.mxu0 0
    %2636 = vmatprep.subr.bf16.mxu0 0
    %2637 = vmatpush1.bf16.xpose.msra.mxu0 0
    %2638 = vmatprep.subr.bf16.mxu0 0
    %2639 = vmatpush1.bf16.xpose.msra.mxu0 0
    %2640 = vmatprep.mubr.bf16.mxu0 0
    %2641 = vmatmul.mubr.bf16.gmra.mrb[0].mxu0 %v2603
    %v2642 = vpop.f32.mrb[0].mxu0
    %v2643 = vadd.f32 %v2004, %v2642
    %v2644 = vpop.f32.mrb[0].mxu0
    %v2645 = vpop.f32.mrb[0].mxu0
    %v2646 = vpop.f32.mrb[0].mxu0
    %2647 = vdwg.mxu0
    %v2648 = vsel %vm2099, %v2593, -inf
    %2649 = vmax.xlane.f32.xlu0 %v2648
    %v2650 = vpop.xlane.xlu0 %2649
    %v2651 = vsel %vm2099, %v2643, -inf
    %2652 = vmax.xlane.f32.xlu0 %v2651
    %v2653 = vpop.xlane.xlu0 %2652
    %v2654 = vsub.f32 %v2593, %v2650
    %v2655 = vsub.f32 %v2643, %v2653
    %v2656 = vmul.f32 %v2654, 1.442695
    %v2657 = vpow.pop %v2656
    %v2658 = vmul.f32 %v2655, 1.442695
    %v2659 = vpow.pop %v2658
    %v2660 = vsel %vm2099, %v2657, 0.0
    %2661 = vadd.xlane.f32.xlu0 %v2660
    %v2662 = vpop.xlane.xlu0 %2661
    %v2663 = vsel %vm2099, %v2659, 0.0
    %2664 = vadd.xlane.f32.xlu0 %v2663
    %v2665 = vpop.xlane.xlu0 %2664
    %v2666 = vrcp.pop %v2662
    %v2667 = vrcp.pop %v2665
    %v2668 = vmul.f32 %v2657, %v2666
    %v2669 = vmul.f32 %v2659, %v2667
    %v2670 = vpack.c.bf16 %v2668, %v2668
    %v2671 = vpack.c.bf16 %v2669, %v2669
    %2672 = vrot.lane.b32.xlu0 %v2124, 64
    %v2673 = vpop.permute.xlu0 %2672
    %v2676 = vsel %vm2099, %v2670, 0
    %2678 = vmatprep.subr.bf16.mxu0 0
    %2679 = vmatpush1.bf16.msra.mxu0 %v2673
    %2680 = vmatprep.subr.bf16.mxu0 0
    %2681 = vmatpush1.bf16.msra.mxu0 0
    %2682 = vmatprep.subr.bf16.mxu0 0
    %2683 = vmatpush1.bf16.msra.mxu0 0
    %2684 = vmatprep.subr.bf16.mxu0 0
    %2685 = vmatpush1.bf16.msra.mxu0 0
    %2686 = vmatprep.subr.bf16.mxu0 0
    %2687 = vmatpush1.bf16.msra.mxu0 0
    %2688 = vmatprep.subr.bf16.mxu0 0
    %2689 = vmatpush1.bf16.msra.mxu0 0
    %2690 = vmatprep.subr.bf16.mxu0 0
    %2691 = vmatpush1.bf16.msra.mxu0 0
    %2692 = vmatprep.subr.bf16.mxu0 0
    %2693 = vmatpush1.bf16.msra.mxu0 0
    %2694 = vmatprep.subr.bf16.mxu0 0
    %2695 = vmatpush1.bf16.msra.mxu0 0
    %2696 = vmatprep.subr.bf16.mxu0 0
    %2697 = vmatpush1.bf16.msra.mxu0 0
    %2698 = vmatprep.subr.bf16.mxu0 0
    %2699 = vmatpush1.bf16.msra.mxu0 0
    %2700 = vmatprep.subr.bf16.mxu0 0
    %2701 = vmatpush1.bf16.msra.mxu0 0
    %2702 = vmatprep.subr.bf16.mxu0 0
    %2703 = vmatpush1.bf16.msra.mxu0 0
    %2704 = vmatprep.subr.bf16.mxu0 0
    %2705 = vmatpush1.bf16.msra.mxu0 0
    %2706 = vmatprep.subr.bf16.mxu0 0
    %2707 = vmatpush1.bf16.msra.mxu0 0
    %2708 = vmatprep.subr.bf16.mxu0 0
    %2709 = vmatpush1.bf16.msra.mxu0 0
    %2710 = vmatprep.mubr.bf16.mxu0 0
    %2711 = vmatmul.mubr.bf16.gmra.mrb[0].mxu0 %v2676
    %v2712 = vpop.f32.mrb[0].mxu0
    %v2713 = vadd.f32 0.0, %v2712
    %v2714 = vpop.f32.mrb[0].mxu0
    %v2715 = vpop.f32.mrb[0].mxu0
    %v2716 = vpop.f32.mrb[0].mxu0
    %2717 = vdwg.mxu0
    %2718 = vrot.lane.b32.xlu0 %v2125, 64
    %v2719 = vpop.permute.xlu0 %2718
    %v2722 = vsel %vm2099, %v2671, 0
    %2724 = vmatprep.subr.bf16.mxu0 0
    %2725 = vmatpush1.bf16.msra.mxu0 %v2719
    %2726 = vmatprep.subr.bf16.mxu0 0
    %2727 = vmatpush1.bf16.msra.mxu0 0
    %2728 = vmatprep.subr.bf16.mxu0 0
    %2729 = vmatpush1.bf16.msra.mxu0 0
    %2730 = vmatprep.subr.bf16.mxu0 0
    %2731 = vmatpush1.bf16.msra.mxu0 0
    %2732 = vmatprep.subr.bf16.mxu0 0
    %2733 = vmatpush1.bf16.msra.mxu0 0
    %2734 = vmatprep.subr.bf16.mxu0 0
    %2735 = vmatpush1.bf16.msra.mxu0 0
    %2736 = vmatprep.subr.bf16.mxu0 0
    %2737 = vmatpush1.bf16.msra.mxu0 0
    %2738 = vmatprep.subr.bf16.mxu0 0
    %2739 = vmatpush1.bf16.msra.mxu0 0
    %2740 = vmatprep.subr.bf16.mxu0 0
    %2741 = vmatpush1.bf16.msra.mxu0 0
    %2742 = vmatprep.subr.bf16.mxu0 0
    %2743 = vmatpush1.bf16.msra.mxu0 0
    %2744 = vmatprep.subr.bf16.mxu0 0
    %2745 = vmatpush1.bf16.msra.mxu0 0
    %2746 = vmatprep.subr.bf16.mxu0 0
    %2747 = vmatpush1.bf16.msra.mxu0 0
    %2748 = vmatprep.subr.bf16.mxu0 0
    %2749 = vmatpush1.bf16.msra.mxu0 0
    %2750 = vmatprep.subr.bf16.mxu0 0
    %2751 = vmatpush1.bf16.msra.mxu0 0
    %2752 = vmatprep.subr.bf16.mxu0 0
    %2753 = vmatpush1.bf16.msra.mxu0 0
    %2754 = vmatprep.subr.bf16.mxu0 0
    %2755 = vmatpush1.bf16.msra.mxu0 0
    %2756 = vmatprep.mubr.bf16.mxu0 0
    %2757 = vmatmul.mubr.bf16.gmra.mrb[0].mxu0 %v2722
    %v2758 = vpop.f32.mrb[0].mxu0
    %v2759 = vadd.f32 0.0, %v2758
    %v2760 = vpop.f32.mrb[0].mxu0
    %v2761 = vpop.f32.mrb[0].mxu0
    %v2762 = vpop.f32.mrb[0].mxu0
    %2763 = vdwg.mxu0
    %v2764 = vpack.c.bf16 %v2759, %v2713
    %v2769 = vunpack.c.l.b16 %v1985
    %v2770 = vunpack.c.l.b16 %v1986
    %v2771 = vunpack.c.l.b16 %v1987
    %v2772 = vunpack.c.l.b16 %v1988
    %v2773 = vpack.c.b16 %v2770, %v2769
    %v2774 = vpack.c.b16 %v2772, %v2771
    %v2778 = vsel %vm467, %v2764, 0
    %2780 = vmatprep.subr.bf16.mxu0 0
    %2781 = vmatpush1.bf16.msra.mxu0 %v2773
    %2782 = vmatprep.subr.bf16.mxu0 0
    %2783 = vmatpush1.bf16.msra.mxu0 %v2774
    %2784 = vmatprep.subr.bf16.mxu0 0
    %2785 = vmatpush1.bf16.msra.mxu0 0
    %2786 = vmatprep.subr.bf16.mxu0 0
    %2787 = vmatpush1.bf16.msra.mxu0 0
    %2788 = vmatprep.subr.bf16.mxu0 0
    %2789 = vmatpush1.bf16.msra.mxu0 0
    %2790 = vmatprep.subr.bf16.mxu0 0
    %2791 = vmatpush1.bf16.msra.mxu0 0
    %2792 = vmatprep.subr.bf16.mxu0 0
    %2793 = vmatpush1.bf16.msra.mxu0 0
    %2794 = vmatprep.subr.bf16.mxu0 0
    %2795 = vmatpush1.bf16.msra.mxu0 0
    %2796 = vmatprep.subr.bf16.mxu0 0
    %2797 = vmatpush1.bf16.msra.mxu0 0
    %2798 = vmatprep.subr.bf16.mxu0 0
    %2799 = vmatpush1.bf16.msra.mxu0 0
    %2800 = vmatprep.subr.bf16.mxu0 0
    %2801 = vmatpush1.bf16.msra.mxu0 0
    %2802 = vmatprep.subr.bf16.mxu0 0
    %2803 = vmatpush1.bf16.msra.mxu0 0
    %2804 = vmatprep.subr.bf16.mxu0 0
    %2805 = vmatpush1.bf16.msra.mxu0 0
    %2806 = vmatprep.subr.bf16.mxu0 0
    %2807 = vmatpush1.bf16.msra.mxu0 0
    %2808 = vmatprep.subr.bf16.mxu0 0
    %2809 = vmatpush1.bf16.msra.mxu0 0
    %2810 = vmatprep.subr.bf16.mxu0 0
    %2811 = vmatpush1.bf16.msra.mxu0 0
    %2812 = vmatprep.mubr.bf16.mxu0 0
    %2813 = vmatmul.mubr.bf16.gmra.mrb[0].mxu0 %v2778
    %v2814 = vpop.f32.mrb[0].mxu0
    %v2815 = vadd.f32 0.0, %v2814
    %v2816 = vpop.f32.mrb[0].mxu0
    %v2817 = vpop.f32.mrb[0].mxu0
    %v2818 = vadd.f32 0.0, %v2817
    %v2819 = vpop.f32.mrb[0].mxu0
    %2820 = vdwg.mxu0
    %v2821 = vadd.f32 %v2542, %v2815
    %v2822 = vadd.f32 %v2545, %v2818
    %2823 = vrot.lane.b32.xlu0 %v1993, 32
    %v2824 = vpop.permute.xlu0 %2823
    %2825 = vrot.lane.b32.xlu0 %v1995, 32
    %v2826 = vpop.permute.xlu0 %2825
    %v2828 = vsel %vm467, %v2824, 0
    %v2831 = vsel %vm467, %v2826, 0
    %2833 = vmatprep.subr.bf16.mxu0 0
    %2834 = vmatpush1.bf16.xpose.msra.mxu0 %v2831
    %2835 = vmatprep.subr.bf16.mxu0 0
    %2836 = vmatpush1.bf16.xpose.msra.mxu0 0
    %2837 = vmatprep.subr.bf16.mxu0 0
    %2838 = vmatpush1.bf16.xpose.msra.mxu0 0
    %2839 = vmatprep.subr.bf16.mxu0 0
    %2840 = vmatpush1.bf16.xpose.msra.mxu0 0
    %2841 = vmatprep.subr.bf16.mxu0 0
    %2842 = vmatpush1.bf16.xpose.msra.mxu0 0
    %2843 = vmatprep.subr.bf16.mxu0 0
    %2844 = vmatpush1.bf16.xpose.msra.mxu0 0
    %2845 = vmatprep.subr.bf16.mxu0 0
    %2846 = vmatpush1.bf16.xpose.msra.mxu0 0
    %2847 = vmatprep.subr.bf16.mxu0 0
    %2848 = vmatpush1.bf16.xpose.msra.mxu0 0
    %2849 = vmatprep.subr.bf16.mxu0 0
    %2850 = vmatpush1.bf16.xpose.msra.mxu0 0
    %2851 = vmatprep.subr.bf16.mxu0 0
    %2852 = vmatpush1.bf16.xpose.msra.mxu0 0
    %2853 = vmatprep.subr.bf16.mxu0 0
    %2854 = vmatpush1.bf16.xpose.msra.mxu0 0
    %2855 = vmatprep.subr.bf16.mxu0 0
    %2856 = vmatpush1.bf16.xpose.msra.mxu0 0
    %2857 = vmatprep.subr.bf16.mxu0 0
    %2858 = vmatpush1.bf16.xpose.msra.mxu0 0
    %2859 = vmatprep.subr.bf16.mxu0 0
    %2860 = vmatpush1.bf16.xpose.msra.mxu0 0
    %2861 = vmatprep.subr.bf16.mxu0 0
    %2862 = vmatpush1.bf16.xpose.msra.mxu0 0
    %2863 = vmatprep.subr.bf16.mxu0 0
    %2864 = vmatpush1.bf16.xpose.msra.mxu0 0
    %2865 = vmatprep.mubr.bf16.mxu0 0
    %2866 = vmatmul.mubr.bf16.gmra.mrb[0].mxu0 %v2828
    %v2867 = vpop.f32.mrb[0].mxu0
    %v2868 = vadd.f32 %v2000, %v2867
    %v2869 = vpop.f32.mrb[0].mxu0
    %v2870 = vpop.f32.mrb[0].mxu0
    %v2871 = vpop.f32.mrb[0].mxu0
    %2872 = vdwg.mxu0
    %2873 = vrot.lane.b32.xlu0 %v1994, 32
    %v2874 = vpop.permute.xlu0 %2873
    %2875 = vrot.lane.b32.xlu0 %v1996, 32
    %v2876 = vpop.permute.xlu0 %2875
    %v2878 = vsel %vm467, %v2874, 0
    %v2881 = vsel %vm467, %v2876, 0
    %2883 = vmatprep.subr.bf16.mxu0 0
    %2884 = vmatpush1.bf16.xpose.msra.mxu0 %v2881
    %2885 = vmatprep.subr.bf16.mxu0 0
    %2886 = vmatpush1.bf16.xpose.msra.mxu0 0
    %2887 = vmatprep.subr.bf16.mxu0 0
    %2888 = vmatpush1.bf16.xpose.msra.mxu0 0
    %2889 = vmatprep.subr.bf16.mxu0 0
    %2890 = vmatpush1.bf16.xpose.msra.mxu0 0
    %2891 = vmatprep.subr.bf16.mxu0 0
    %2892 = vmatpush1.bf16.xpose.msra.mxu0 0
    %2893 = vmatprep.subr.bf16.mxu0 0
    %2894 = vmatpush1.bf16.xpose.msra.mxu0 0
    %2895 = vmatprep.subr.bf16.mxu0 0
    %2896 = vmatpush1.bf16.xpose.msra.mxu0 0
    %2897 = vmatprep.subr.bf16.mxu0 0
    %2898 = vmatpush1.bf16.xpose.msra.mxu0 0
    %2899 = vmatprep.subr.bf16.mxu0 0
    %2900 = vmatpush1.bf16.xpose.msra.mxu0 0
    %2901 = vmatprep.subr.bf16.mxu0 0
    %2902 = vmatpush1.bf16.xpose.msra.mxu0 0
    %2903 = vmatprep.subr.bf16.mxu0 0
    %2904 = vmatpush1.bf16.xpose.msra.mxu0 0
    %2905 = vmatprep.subr.bf16.mxu0 0
    %2906 = vmatpush1.bf16.xpose.msra.mxu0 0
    %2907 = vmatprep.subr.bf16.mxu0 0
    %2908 = vmatpush1.bf16.xpose.msra.mxu0 0
    %2909 = vmatprep.subr.bf16.mxu0 0
    %2910 = vmatpush1.bf16.xpose.msra.mxu0 0
    %2911 = vmatprep.subr.bf16.mxu0 0
    %2912 = vmatpush1.bf16.xpose.msra.mxu0 0
    %2913 = vmatprep.subr.bf16.mxu0 0
    %2914 = vmatpush1.bf16.xpose.msra.mxu0 0
    %2915 = vmatprep.mubr.bf16.mxu0 0
    %2916 = vmatmul.mubr.bf16.gmra.mrb[0].mxu0 %v2878
    %v2917 = vpop.f32.mrb[0].mxu0
    %v2918 = vadd.f32 %v2004, %v2917
    %v2919 = vpop.f32.mrb[0].mxu0
    %v2920 = vpop.f32.mrb[0].mxu0
    %v2921 = vpop.f32.mrb[0].mxu0
    %2922 = vdwg.mxu0
    %v2923 = vsel %vm2099, %v2868, -inf
    %2924 = vmax.xlane.f32.xlu0 %v2923
    %v2925 = vpop.xlane.xlu0 %2924
    %v2926 = vsel %vm2099, %v2918, -inf
    %2927 = vmax.xlane.f32.xlu0 %v2926
    %v2928 = vpop.xlane.xlu0 %2927
    %v2929 = vsub.f32 %v2868, %v2925
    %v2930 = vsub.f32 %v2918, %v2928
    %v2931 = vmul.f32 %v2929, 1.442695
    %v2932 = vpow.pop %v2931
    %v2933 = vmul.f32 %v2930, 1.442695
    %v2934 = vpow.pop %v2933
    %v2935 = vsel %vm2099, %v2932, 0.0
    %2936 = vadd.xlane.f32.xlu0 %v2935
    %v2937 = vpop.xlane.xlu0 %2936
    %v2938 = vsel %vm2099, %v2934, 0.0
    %2939 = vadd.xlane.f32.xlu0 %v2938
    %v2940 = vpop.xlane.xlu0 %2939
    %v2941 = vrcp.pop %v2937
    %v2942 = vrcp.pop %v2940
    %v2943 = vmul.f32 %v2932, %v2941
    %v2944 = vmul.f32 %v2934, %v2942
    %v2945 = vpack.c.bf16 %v2943, %v2943
    %v2946 = vpack.c.bf16 %v2944, %v2944
    %2947 = vrot.lane.b32.xlu0 %v2124, 32
    %v2948 = vpop.permute.xlu0 %2947
    %v2951 = vsel %vm2099, %v2945, 0
    %2953 = vmatprep.subr.bf16.mxu0 0
    %2954 = vmatpush1.bf16.msra.mxu0 %v2948
    %2955 = vmatprep.subr.bf16.mxu0 0
    %2956 = vmatpush1.bf16.msra.mxu0 0
    %2957 = vmatprep.subr.bf16.mxu0 0
    %2958 = vmatpush1.bf16.msra.mxu0 0
    %2959 = vmatprep.subr.bf16.mxu0 0
    %2960 = vmatpush1.bf16.msra.mxu0 0
    %2961 = vmatprep.subr.bf16.mxu0 0
    %2962 = vmatpush1.bf16.msra.mxu0 0
    %2963 = vmatprep.subr.bf16.mxu0 0
    %2964 = vmatpush1.bf16.msra.mxu0 0
    %2965 = vmatprep.subr.bf16.mxu0 0
    %2966 = vmatpush1.bf16.msra.mxu0 0
    %2967 = vmatprep.subr.bf16.mxu0 0
    %2968 = vmatpush1.bf16.msra.mxu0 0
    %2969 = vmatprep.subr.bf16.mxu0 0
    %2970 = vmatpush1.bf16.msra.mxu0 0
    %2971 = vmatprep.subr.bf16.mxu0 0
    %2972 = vmatpush1.bf16.msra.mxu0 0
    %2973 = vmatprep.subr.bf16.mxu0 0
    %2974 = vmatpush1.bf16.msra.mxu0 0
    %2975 = vmatprep.subr.bf16.mxu0 0
    %2976 = vmatpush1.bf16.msra.mxu0 0
    %2977 = vmatprep.subr.bf16.mxu0 0
    %2978 = vmatpush1.bf16.msra.mxu0 0
    %2979 = vmatprep.subr.bf16.mxu0 0
    %2980 = vmatpush1.bf16.msra.mxu0 0
    %2981 = vmatprep.subr.bf16.mxu0 0
    %2982 = vmatpush1.bf16.msra.mxu0 0
    %2983 = vmatprep.subr.bf16.mxu0 0
    %2984 = vmatpush1.bf16.msra.mxu0 0
    %2985 = vmatprep.mubr.bf16.mxu0 0
    %2986 = vmatmul.mubr.bf16.gmra.mrb[0].mxu0 %v2951
    %v2987 = vpop.f32.mrb[0].mxu0
    %v2988 = vadd.f32 0.0, %v2987
    %v2989 = vpop.f32.mrb[0].mxu0
    %v2990 = vpop.f32.mrb[0].mxu0
    %v2991 = vpop.f32.mrb[0].mxu0
    %2992 = vdwg.mxu0
    %2993 = vrot.lane.b32.xlu0 %v2125, 32
    %v2994 = vpop.permute.xlu0 %2993
    %v2997 = vsel %vm2099, %v2946, 0
    %2999 = vmatprep.subr.bf16.mxu0 0
    %3000 = vmatpush1.bf16.msra.mxu0 %v2994
    %3001 = vmatprep.subr.bf16.mxu0 0
    %3002 = vmatpush1.bf16.msra.mxu0 0
    %3003 = vmatprep.subr.bf16.mxu0 0
    %3004 = vmatpush1.bf16.msra.mxu0 0
    %3005 = vmatprep.subr.bf16.mxu0 0
    %3006 = vmatpush1.bf16.msra.mxu0 0
    %3007 = vmatprep.subr.bf16.mxu0 0
    %3008 = vmatpush1.bf16.msra.mxu0 0
    %3009 = vmatprep.subr.bf16.mxu0 0
    %3010 = vmatpush1.bf16.msra.mxu0 0
    %3011 = vmatprep.subr.bf16.mxu0 0
    %3012 = vmatpush1.bf16.msra.mxu0 0
    %3013 = vmatprep.subr.bf16.mxu0 0
    %3014 = vmatpush1.bf16.msra.mxu0 0
    %3015 = vmatprep.subr.bf16.mxu0 0
    %3016 = vmatpush1.bf16.msra.mxu0 0
    %3017 = vmatprep.subr.bf16.mxu0 0
    %3018 = vmatpush1.bf16.msra.mxu0 0
    %3019 = vmatprep.subr.bf16.mxu0 0
    %3020 = vmatpush1.bf16.msra.mxu0 0
    %3021 = vmatprep.subr.bf16.mxu0 0
    %3022 = vmatpush1.bf16.msra.mxu0 0
    %3023 = vmatprep.subr.bf16.mxu0 0
    %3024 = vmatpush1.bf16.msra.mxu0 0
    %3025 = vmatprep.subr.bf16.mxu0 0
    %3026 = vmatpush1.bf16.msra.mxu0 0
    %3027 = vmatprep.subr.bf16.mxu0 0
    %3028 = vmatpush1.bf16.msra.mxu0 0
    %3029 = vmatprep.subr.bf16.mxu0 0
    %3030 = vmatpush1.bf16.msra.mxu0 0
    %3031 = vmatprep.mubr.bf16.mxu0 0
    %3032 = vmatmul.mubr.bf16.gmra.mrb[0].mxu0 %v2997
    %v3033 = vpop.f32.mrb[0].mxu0
    %v3034 = vadd.f32 0.0, %v3033
    %v3035 = vpop.f32.mrb[0].mxu0
    %v3036 = vpop.f32.mrb[0].mxu0
    %v3037 = vpop.f32.mrb[0].mxu0
    %3038 = vdwg.mxu0
    %v3039 = vpack.c.bf16 %v3034, %v2988
    %v3044 = vunpack.c.l.b16 %v1989
    %v3045 = vunpack.c.l.b16 %v1990
    %v3046 = vunpack.c.l.b16 %v1991
    %v3047 = vunpack.c.l.b16 %v1992
    %v3048 = vpack.c.b16 %v3045, %v3044
    %v3049 = vpack.c.b16 %v3047, %v3046
    %v3053 = vsel %vm467, %v3039, 0
    %3055 = vmatprep.subr.bf16.mxu0 0
    %3056 = vmatpush1.bf16.msra.mxu0 %v3048
    %3057 = vmatprep.subr.bf16.mxu0 0
    %3058 = vmatpush1.bf16.msra.mxu0 %v3049
    %3059 = vmatprep.subr.bf16.mxu0 0
    %3060 = vmatpush1.bf16.msra.mxu0 0
    %3061 = vmatprep.subr.bf16.mxu0 0
    %3062 = vmatpush1.bf16.msra.mxu0 0
    %3063 = vmatprep.subr.bf16.mxu0 0
    %3064 = vmatpush1.bf16.msra.mxu0 0
    %3065 = vmatprep.subr.bf16.mxu0 0
    %3066 = vmatpush1.bf16.msra.mxu0 0
    %3067 = vmatprep.subr.bf16.mxu0 0
    %3068 = vmatpush1.bf16.msra.mxu0 0
    %3069 = vmatprep.subr.bf16.mxu0 0
    %3070 = vmatpush1.bf16.msra.mxu0 0
    %3071 = vmatprep.subr.bf16.mxu0 0
    %3072 = vmatpush1.bf16.msra.mxu0 0
    %3073 = vmatprep.subr.bf16.mxu0 0
    %3074 = vmatpush1.bf16.msra.mxu0 0
    %3075 = vmatprep.subr.bf16.mxu0 0
    %3076 = vmatpush1.bf16.msra.mxu0 0
    %3077 = vmatprep.subr.bf16.mxu0 0
    %3078 = vmatpush1.bf16.msra.mxu0 0
    %3079 = vmatprep.subr.bf16.mxu0 0
    %3080 = vmatpush1.bf16.msra.mxu0 0
    %3081 = vmatprep.subr.bf16.mxu0 0
    %3082 = vmatpush1.bf16.msra.mxu0 0
    %3083 = vmatprep.subr.bf16.mxu0 0
    %3084 = vmatpush1.bf16.msra.mxu0 0
    %3085 = vmatprep.subr.bf16.mxu0 0
    %3086 = vmatpush1.bf16.msra.mxu0 0
    %3087 = vmatprep.mubr.bf16.mxu0 0
    %3088 = vmatmul.mubr.bf16.gmra.mrb[0].mxu0 %v3053
    %v3089 = vpop.f32.mrb[0].mxu0
    %v3090 = vadd.f32 0.0, %v3089
    %v3091 = vpop.f32.mrb[0].mxu0
    %v3092 = vpop.f32.mrb[0].mxu0
    %v3093 = vadd.f32 0.0, %v3092
    %v3094 = vpop.f32.mrb[0].mxu0
    %3095 = vdwg.mxu0
    %v3096 = vadd.f32 %v2821, %v3090
    %v3097 = vadd.f32 %v2822, %v3093
    %v3098 = vld [vmem:[%s16] sm:$0x1]
    %v3100 = vlaneseq
    %v3101 = vshrl.u32 %v3100, 7
    %v3102 = vsub.s32 0, %v3101
    %v3103 = vrot.slane %v3098, %v3102
    %v3105 = vadd.f32 %v3096, %v3103
    %v3106 = vadd.f32 %v3097, %v3103
    %v3107 = vadd.f32 %v1670, %v3105
    %v3108 = vadd.f32 %v1671, %v3106
    %v3109 = vld [vmem:[%s17] sm:$0x1]
    %v3110 = vld [vmem:[%s18] sm:$0x1]
    %3111 = vadd.xlane.f32.xlu0 %v3107
    %v3112 = vpop.xlane.xlu0 %3111
    %3113 = vadd.xlane.f32.xlu0 %v3108
    %v3114 = vpop.xlane.xlu0 %3113
    %v3115 = vmul.f32 %v3112, %v1595
    %v3116 = vmul.f32 %v3114, %v1595
    %v3117 = vsub.f32 %v3107, %v3115
    %v3118 = vsub.f32 %v3108, %v3116
    %v3119 = vmul.f32 %v3117, %v3117
    %v3120 = vmul.f32 %v3118, %v3118
    %3121 = vadd.xlane.f32.xlu0 %v3119
    %v3122 = vpop.xlane.xlu0 %3121
    %3123 = vadd.xlane.f32.xlu0 %v3120
    %v3124 = vpop.xlane.xlu0 %3123
    %v3125 = vmul.f32 %v3122, %v1595
    %v3126 = vmul.f32 %v3124, %v1595
    %v3127 = vadd.f32 %v3125, 1e-05
    %v3128 = vadd.f32 %v3126, 1e-05
    %v3129 = vrsqrt.pop %v3127
    %v3130 = vrsqrt.pop %v3128
    %v3131 = vmul.f32 %v3117, %v3129
    %v3132 = vmul.f32 %v3118, %v3130
    %v3134 = vlaneseq
    %v3135 = vshrl.u32 %v3134, 7
    %v3136 = vsub.s32 0, %v3135
    %v3137 = vrot.slane %v3109, %v3136
    %v3139 = vmul.f32 %v3131, %v3137
    %v3140 = vmul.f32 %v3132, %v3137
    %v3142 = vlaneseq
    %v3143 = vshrl.u32 %v3142, 7
    %v3144 = vsub.s32 0, %v3143
    %v3145 = vrot.slane %v3110, %v3144
    %v3147 = vadd.f32 %v3139, %v3145
    %v3148 = vadd.f32 %v3140, %v3145
    %v3149 = vadd.f32 %v1670, %v3147
    %v3150 = vadd.f32 %v1671, %v3148
    %v3151 = vld [vmem:[%s19] sm:$0x1]
    %v3152 = vld [vmem:[%s20] sm:$0x1]
    %3153 = vadd.xlane.f32.xlu0 %v3149
    %v3154 = vpop.xlane.xlu0 %3153
    %3155 = vadd.xlane.f32.xlu0 %v3150
    %v3156 = vpop.xlane.xlu0 %3155
    %v3157 = vmul.f32 %v3154, %v1595
    %v3158 = vmul.f32 %v3156, %v1595
    %v3159 = vsub.f32 %v3149, %v3157
    %v3160 = vsub.f32 %v3150, %v3158
    %v3161 = vmul.f32 %v3159, %v3159
    %v3162 = vmul.f32 %v3160, %v3160
    %3163 = vadd.xlane.f32.xlu0 %v3161
    %v3164 = vpop.xlane.xlu0 %3163
    %3165 = vadd.xlane.f32.xlu0 %v3162
    %v3166 = vpop.xlane.xlu0 %3165
    %v3167 = vmul.f32 %v3164, %v1595
    %v3168 = vmul.f32 %v3166, %v1595
    %v3169 = vadd.f32 %v3167, 1e-05
    %v3170 = vadd.f32 %v3168, 1e-05
    %v3171 = vrsqrt.pop %v3169
    %v3172 = vrsqrt.pop %v3170
    %v3173 = vmul.f32 %v3159, %v3171
    %v3174 = vmul.f32 %v3160, %v3172
    %v3176 = vlaneseq
    %v3177 = vshrl.u32 %v3176, 7
    %v3178 = vsub.s32 0, %v3177
    %v3179 = vrot.slane %v3151, %v3178
    %v3181 = vmul.f32 %v3173, %v3179
    %v3182 = vmul.f32 %v3174, %v3179
    %v3184 = vlaneseq
    %v3185 = vshrl.u32 %v3184, 7
    %v3186 = vsub.s32 0, %v3185
    %v3187 = vrot.slane %v3152, %v3186
    %v3189 = vadd.f32 %v3181, %v3187
    %v3190 = vadd.f32 %v3182, %v3187
    %v3191 = vld [vmem:[#allocation11] sm:$0xff]
    %v3192 = vld [vmem:[#allocation11 + $0x8] sm:$0xff]
    %v3193 = vld [vmem:[#allocation11 + $0x10] sm:$0xff]
    %v3194 = vld [vmem:[#allocation11 + $0x18] sm:$0xff]
    %v3195 = vld [vmem:[#allocation11 + $0x20] sm:$0xff]
    %v3196 = vld [vmem:[#allocation11 + $0x28] sm:$0xff]
    %v3197 = vld [vmem:[#allocation11 + $0x30] sm:$0xff]
    %v3198 = vld [vmem:[#allocation11 + $0x38] sm:$0xff]
    %v3199 = vld [vmem:[#allocation11 + $0x40] sm:$0xff]
    %v3200 = vld [vmem:[#allocation11 + $0x48] sm:$0xff]
    %v3201 = vld [vmem:[#allocation11 + $0x50] sm:$0xff]
    %v3202 = vld [vmem:[#allocation11 + $0x58] sm:$0xff]
    %v3203 = vld [vmem:[#allocation11 + $0x60] sm:$0xff]
    %v3204 = vld [vmem:[#allocation11 + $0x68] sm:$0xff]
    %v3205 = vld [vmem:[#allocation11 + $0x70] sm:$0xff]
    %v3206 = vld [vmem:[#allocation11 + $0x78] sm:$0xff]
    %v3207 = vpack.c.bf16 %v3190, %v3189
    %v3208 = vld [vmem:[%s22] sm:$0x3]
    %v3210 = vlaneseq
    %v3211 = vshrl.u32 %v3210, 7
    %v3212 = vsub.s32 0, %v3211
    %v3213 = vrot.slane %v3208, %v3212
    %v3214 = vlaneseq
    %v3215 = vshrl.u32 %v3214, 7
    %v3216 = vsub.s32 1, %v3215
    %v3217 = vrot.slane %v3208, %v3216
    %v3236 = vunpack.c.l.b16 %v3191
    %v3237 = vunpack.c.h.b16 %v3191
    %v3238 = vunpack.c.l.b16 %v3192
    %v3239 = vunpack.c.h.b16 %v3192
    %v3240 = vunpack.c.l.b16 %v3193
    %v3241 = vunpack.c.h.b16 %v3193
    %v3242 = vunpack.c.l.b16 %v3194
    %v3243 = vunpack.c.h.b16 %v3194
    %v3244 = vunpack.c.l.b16 %v3195
    %v3245 = vunpack.c.h.b16 %v3195
    %v3246 = vunpack.c.l.b16 %v3196
    %v3247 = vunpack.c.h.b16 %v3196
    %v3248 = vunpack.c.l.b16 %v3197
    %v3249 = vunpack.c.h.b16 %v3197
    %v3250 = vunpack.c.l.b16 %v3198
    %v3251 = vunpack.c.h.b16 %v3198
    %v3252 = vunpack.c.l.b16 %v3199
    %v3253 = vunpack.c.h.b16 %v3199
    %v3254 = vunpack.c.l.b16 %v3200
    %v3255 = vunpack.c.h.b16 %v3200
    %v3256 = vunpack.c.l.b16 %v3201
    %v3257 = vunpack.c.h.b16 %v3201
    %v3258 = vunpack.c.l.b16 %v3202
    %v3259 = vunpack.c.h.b16 %v3202
    %v3260 = vunpack.c.l.b16 %v3203
    %v3261 = vunpack.c.h.b16 %v3203
    %v3262 = vunpack.c.l.b16 %v3204
    %v3263 = vunpack.c.h.b16 %v3204
    %v3264 = vunpack.c.l.b16 %v3205
    %v3265 = vunpack.c.h.b16 %v3205
    %v3266 = vunpack.c.l.b16 %v3206
    %v3267 = vunpack.c.h.b16 %v3206
    %v3268 = vpack.c.b16 %v3238, %v3236
    %v3269 = vpack.c.b16 %v3239, %v3237
    %v3270 = vpack.c.b16 %v3242, %v3240
    %v3271 = vpack.c.b16 %v3243, %v3241
    %v3272 = vpack.c.b16 %v3246, %v3244
    %v3273 = vpack.c.b16 %v3247, %v3245
    %v3274 = vpack.c.b16 %v3250, %v3248
    %v3275 = vpack.c.b16 %v3251, %v3249
    %v3276 = vpack.c.b16 %v3254, %v3252
    %v3277 = vpack.c.b16 %v3255, %v3253
    %v3278 = vpack.c.b16 %v3258, %v3256
    %v3279 = vpack.c.b16 %v3259, %v3257
    %v3280 = vpack.c.b16 %v3262, %v3260
    %v3281 = vpack.c.b16 %v3263, %v3261
    %v3282 = vpack.c.b16 %v3266, %v3264
    %v3283 = vpack.c.b16 %v3267, %v3265
    %3300 = vmatprep.subr.bf16.mxu0 %v3269
    %3301 = vmatpush1.bf16.msra.mxu0 %v3268
    %3302 = vmatprep.subr.bf16.mxu0 %v3271
    %3303 = vmatpush1.bf16.msra.mxu0 %v3270
    %3304 = vmatprep.subr.bf16.mxu0 %v3273
    %3305 = vmatpush1.bf16.msra.mxu0 %v3272
    %3306 = vmatprep.subr.bf16.mxu0 %v3275
    %3307 = vmatpush1.bf16.msra.mxu0 %v3274
    %3308 = vmatprep.subr.bf16.mxu0 %v3277
    %3309 = vmatpush1.bf16.msra.mxu0 %v3276
    %3310 = vmatprep.subr.bf16.mxu0 %v3279
    %3311 = vmatpush1.bf16.msra.mxu0 %v3278
    %3312 = vmatprep.subr.bf16.mxu0 %v3281
    %3313 = vmatpush1.bf16.msra.mxu0 %v3280
    %3314 = vmatprep.subr.bf16.mxu0 %v3283
    %3315 = vmatpush1.bf16.msra.mxu0 %v3282
    %3316 = vmatprep.subr.bf16.mxu0 0
    %3317 = vmatpush1.bf16.msra.mxu0 0
    %3318 = vmatprep.subr.bf16.mxu0 0
    %3319 = vmatpush1.bf16.msra.mxu0 0
    %3320 = vmatprep.subr.bf16.mxu0 0
    %3321 = vmatpush1.bf16.msra.mxu0 0
    %3322 = vmatprep.subr.bf16.mxu0 0
    %3323 = vmatpush1.bf16.msra.mxu0 0
    %3324 = vmatprep.subr.bf16.mxu0 0
    %3325 = vmatpush1.bf16.msra.mxu0 0
    %3326 = vmatprep.subr.bf16.mxu0 0
    %3327 = vmatpush1.bf16.msra.mxu0 0
    %3328 = vmatprep.subr.bf16.mxu0 0
    %3329 = vmatpush1.bf16.msra.mxu0 0
    %3330 = vmatprep.subr.bf16.mxu0 0
    %3331 = vmatpush1.bf16.msra.mxu0 0
    %3332 = vmatprep.mubr.bf16.mxu0 0
    %3333 = vmatmul.mubr.bf16.gmra.mrb[0].mxu0 %v3207
    %v3334 = vpop.f32.mrb[0].mxu0
    %v3335 = vadd.f32 %v3213, %v3334
    %v3336 = vpop.f32.mrb[0].mxu0
    %v3337 = vadd.f32 %v3217, %v3336
    %v3338 = vpop.f32.mrb[0].mxu0
    %v3339 = vadd.f32 %v3213, %v3338
    %v3340 = vpop.f32.mrb[0].mxu0
    %v3341 = vadd.f32 %v3217, %v3340
    %3342 = vdwg.mxu0
    %v3343 = vmax.f32 %v3335, 0.0
    %v3344 = vmax.f32 %v3337, 0.0
    %v3345 = vmax.f32 %v3339, 0.0
    %v3346 = vmax.f32 %v3341, 0.0
    %v3347 = vld [vmem:[#allocation13] sm:$0xf]
    %v3348 = vld [vmem:[#allocation13 + $0x4] sm:$0xf]
    %v3349 = vld [vmem:[#allocation13 + $0x8] sm:$0xf]
    %v3350 = vld [vmem:[#allocation13 + $0xc] sm:$0xf]
    %v3351 = vld [vmem:[#allocation13 + $0x10] sm:$0xf]
    %v3352 = vld [vmem:[#allocation13 + $0x14] sm:$0xf]
    %v3353 = vld [vmem:[#allocation13 + $0x18] sm:$0xf]
    %v3354 = vld [vmem:[#allocation13 + $0x1c] sm:$0xf]
    %v3355 = vld [vmem:[#allocation13 + $0x20] sm:$0xf]
    %v3356 = vld [vmem:[#allocation13 + $0x24] sm:$0xf]
    %v3357 = vld [vmem:[#allocation13 + $0x28] sm:$0xf]
    %v3358 = vld [vmem:[#allocation13 + $0x2c] sm:$0xf]
    %v3359 = vld [vmem:[#allocation13 + $0x30] sm:$0xf]
    %v3360 = vld [vmem:[#allocation13 + $0x34] sm:$0xf]
    %v3361 = vld [vmem:[#allocation13 + $0x38] sm:$0xf]
    %v3362 = vld [vmem:[#allocation13 + $0x3c] sm:$0xf]
    %v3363 = vld [vmem:[#allocation13 + $0x40] sm:$0xf]
    %v3364 = vld [vmem:[#allocation13 + $0x44] sm:$0xf]
    %v3365 = vld [vmem:[#allocation13 + $0x48] sm:$0xf]
    %v3366 = vld [vmem:[#allocation13 + $0x4c] sm:$0xf]
    %v3367 = vld [vmem:[#allocation13 + $0x50] sm:$0xf]
    %v3368 = vld [vmem:[#allocation13 + $0x54] sm:$0xf]
    %v3369 = vld [vmem:[#allocation13 + $0x58] sm:$0xf]
    %v3370 = vld [vmem:[#allocation13 + $0x5c] sm:$0xf]
    %v3371 = vld [vmem:[#allocation13 + $0x60] sm:$0xf]
    %v3372 = vld [vmem:[#allocation13 + $0x64] sm:$0xf]
    %v3373 = vld [vmem:[#allocation13 + $0x68] sm:$0xf]
    %v3374 = vld [vmem:[#allocation13 + $0x6c] sm:$0xf]
    %v3375 = vld [vmem:[#allocation13 + $0x70] sm:$0xf]
    %v3376 = vld [vmem:[#allocation13 + $0x74] sm:$0xf]
    %v3377 = vld [vmem:[#allocation13 + $0x78] sm:$0xf]
    %v3378 = vld [vmem:[#allocation13 + $0x7c] sm:$0xf]
    %v3379 = vpack.c.bf16 %v3345, %v3343
    %v3380 = vpack.c.bf16 %v3346, %v3344
    %v3381 = vld [vmem:[%s24] sm:$0x1]
    %v3383 = vlaneseq
    %v3384 = vshrl.u32 %v3383, 7
    %v3385 = vsub.s32 0, %v3384
    %v3386 = vrot.slane %v3381, %v3385
    %v3420 = vunpack.c.l.b16 %v3347
    %v3421 = vunpack.c.l.b16 %v3348
    %v3422 = vunpack.c.l.b16 %v3349
    %v3423 = vunpack.c.l.b16 %v3350
    %v3424 = vunpack.c.l.b16 %v3351
    %v3425 = vunpack.c.l.b16 %v3352
    %v3426 = vunpack.c.l.b16 %v3353
    %v3427 = vunpack.c.l.b16 %v3354
    %v3428 = vunpack.c.l.b16 %v3355
    %v3429 = vunpack.c.l.b16 %v3356
    %v3430 = vunpack.c.l.b16 %v3357
    %v3431 = vunpack.c.l.b16 %v3358
    %v3432 = vunpack.c.l.b16 %v3359
    %v3433 = vunpack.c.l.b16 %v3360
    %v3434 = vunpack.c.l.b16 %v3361
    %v3435 = vunpack.c.l.b16 %v3362
    %v3436 = vunpack.c.l.b16 %v3363
    %v3437 = vunpack.c.l.b16 %v3364
    %v3438 = vunpack.c.l.b16 %v3365
    %v3439 = vunpack.c.l.b16 %v3366
    %v3440 = vunpack.c.l.b16 %v3367
    %v3441 = vunpack.c.l.b16 %v3368
    %v3442 = vunpack.c.l.b16 %v3369
    %v3443 = vunpack.c.l.b16 %v3370
    %v3444 = vunpack.c.l.b16 %v3371
    %v3445 = vunpack.c.l.b16 %v3372
    %v3446 = vunpack.c.l.b16 %v3373
    %v3447 = vunpack.c.l.b16 %v3374
    %v3448 = vunpack.c.l.b16 %v3375
    %v3449 = vunpack.c.l.b16 %v3376
    %v3450 = vunpack.c.l.b16 %v3377
    %v3451 = vunpack.c.l.b16 %v3378
    %v3452 = vpack.c.b16 %v3421, %v3420
    %v3453 = vpack.c.b16 %v3423, %v3422
    %v3454 = vpack.c.b16 %v3425, %v3424
    %v3455 = vpack.c.b16 %v3427, %v3426
    %v3456 = vpack.c.b16 %v3429, %v3428
    %v3457 = vpack.c.b16 %v3431, %v3430
    %v3458 = vpack.c.b16 %v3433, %v3432
    %v3459 = vpack.c.b16 %v3435, %v3434
    %v3460 = vpack.c.b16 %v3437, %v3436
    %v3461 = vpack.c.b16 %v3439, %v3438
    %v3462 = vpack.c.b16 %v3441, %v3440
    %v3463 = vpack.c.b16 %v3443, %v3442
    %v3464 = vpack.c.b16 %v3445, %v3444
    %v3465 = vpack.c.b16 %v3447, %v3446
    %v3466 = vpack.c.b16 %v3449, %v3448
    %v3467 = vpack.c.b16 %v3451, %v3450
    %3484 = vmatprep.subr.bf16.mxu0 0
    %3485 = vmatpush1.bf16.msra.mxu0 %v3452
    %3486 = vmatprep.subr.bf16.mxu0 0
    %3487 = vmatpush1.bf16.msra.mxu0 %v3453
    %3488 = vmatprep.subr.bf16.mxu0 0
    %3489 = vmatpush1.bf16.msra.mxu0 %v3454
    %3490 = vmatprep.subr.bf16.mxu0 0
    %3491 = vmatpush1.bf16.msra.mxu0 %v3455
    %3492 = vmatprep.subr.bf16.mxu0 0
    %3493 = vmatpush1.bf16.msra.mxu0 %v3456
    %3494 = vmatprep.subr.bf16.mxu0 0
    %3495 = vmatpush1.bf16.msra.mxu0 %v3457
    %3496 = vmatprep.subr.bf16.mxu0 0
    %3497 = vmatpush1.bf16.msra.mxu0 %v3458
    %3498 = vmatprep.subr.bf16.mxu0 0
    %3499 = vmatpush1.bf16.msra.mxu0 %v3459
    %3500 = vmatprep.subr.bf16.mxu0 0
    %3501 = vmatpush1.bf16.msra.mxu0 %v3460
    %3502 = vmatprep.subr.bf16.mxu0 0
    %3503 = vmatpush1.bf16.msra.mxu0 %v3461
    %3504 = vmatprep.subr.bf16.mxu0 0
    %3505 = vmatpush1.bf16.msra.mxu0 %v3462
    %3506 = vmatprep.subr.bf16.mxu0 0
    %3507 = vmatpush1.bf16.msra.mxu0 %v3463
    %3508 = vmatprep.subr.bf16.mxu0 0
    %3509 = vmatpush1.bf16.msra.mxu0 %v3464
    %3510 = vmatprep.subr.bf16.mxu0 0
    %3511 = vmatpush1.bf16.msra.mxu0 %v3465
    %3512 = vmatprep.subr.bf16.mxu0 0
    %3513 = vmatpush1.bf16.msra.mxu0 %v3466
    %3514 = vmatprep.subr.bf16.mxu0 0
    %3515 = vmatpush1.bf16.msra.mxu0 %v3467
    %3516 = vmatprep.mubr.bf16.mxu0 %v3380
    %3517 = vmatmul.mubr.bf16.gmra.mrb[0].mxu0 %v3379
    %v3518 = vpop.f32.mrb[0].mxu0
    %v3519 = vadd.f32 %v3386, %v3518
    %v3520 = vpop.f32.mrb[0].mxu0
    %v3521 = vpop.f32.mrb[0].mxu0
    %v3522 = vadd.f32 %v3386, %v3521
    %v3523 = vpop.f32.mrb[0].mxu0
    %3524 = vdwg.mxu0
    %v3525 = vadd.f32 %v3189, %v3519
    %v3526 = vadd.f32 %v3190, %v3522
    %v3527 = vld [vmem:[%s25] sm:$0x1]
    %v3528 = vld [vmem:[%s26] sm:$0x1]
    %3529 = vadd.xlane.f32.xlu0 %v3525
    %v3530 = vpop.xlane.xlu0 %3529
    %3531 = vadd.xlane.f32.xlu0 %v3526
    %v3532 = vpop.xlane.xlu0 %3531
    %v3533 = vmul.f32 %v3530, %v1595
    %v3534 = vmul.f32 %v3532, %v1595
    %v3535 = vsub.f32 %v3525, %v3533
    %v3536 = vsub.f32 %v3526, %v3534
    %v3537 = vmul.f32 %v3535, %v3535
    %v3538 = vmul.f32 %v3536, %v3536
    %3539 = vadd.xlane.f32.xlu0 %v3537
    %v3540 = vpop.xlane.xlu0 %3539
    %3541 = vadd.xlane.f32.xlu0 %v3538
    %v3542 = vpop.xlane.xlu0 %3541
    %v3543 = vmul.f32 %v3540, %v1595
    %v3544 = vmul.f32 %v3542, %v1595
    %v3545 = vadd.f32 %v3543, 1e-05
    %v3546 = vadd.f32 %v3544, 1e-05
    %v3547 = vrsqrt.pop %v3545
    %v3548 = vrsqrt.pop %v3546
    %v3549 = vmul.f32 %v3535, %v3547
    %v3550 = vmul.f32 %v3536, %v3548
    %v3552 = vlaneseq
    %v3553 = vshrl.u32 %v3552, 7
    %v3554 = vsub.s32 0, %v3553
    %v3555 = vrot.slane %v3527, %v3554
    %v3557 = vmul.f32 %v3549, %v3555
    %v3558 = vmul.f32 %v3550, %v3555
    %v3560 = vlaneseq
    %v3561 = vshrl.u32 %v3560, 7
    %v3562 = vsub.s32 0, %v3561
    %v3563 = vrot.slane %v3528, %v3562
    %v3565 = vadd.f32 %v3557, %v3563
    %v3566 = vadd.f32 %v3558, %v3563
    %3567 = vst [vmem:[#allocation14] sm:$0xff] %v3565
    %3568 = vst [vmem:[#allocation14 + $0x8] sm:$0xff] %v3566
    // Predicated region
    $region138: #{decoder_layer_forward.1} parent=1 // pred_check
      _
    $region139: #{decoder_layer_forward.1} parent=1 // pred_check_branch
      %3570 = sbr.rel (0) target = $region141
    $region140: #{decoder_layer_forward.1} parent=1 // pred_region
      %s3572 = ssub.s32 256, 256
      %3573 = vsyncadd [#allocation4], %s3572
      %s3574 = sshll.u32 [#allocation14], 4
      %s3575 = int_to_ptr.vmem [resolvable:$true] %s3574
      %3580 = dma.vmem_to_hbm [thread:$0]  %s3575, 256, %s27, [#allocation4], 128, 128, 8
    $region141: #{decoder_layer_forward.1} parent=1 // pred_fallthru
      _
    // Predicated region
    $region142: #{decoder_layer_forward.1} parent=1 // pred_check
      _
    $region143: #{decoder_layer_forward.1} parent=1 // pred_check_branch
      %3582 = sbr.rel (0) target = $region145
    $region144: #{decoder_layer_forward.1} parent=1 // pred_region
      %3583 = dma.done [#allocation4], 256
    $region145: #{decoder_layer_forward.1} parent=1 // pred_fallthru
      _
    %3584 = vsyncpa [#allocation3], 1
    %3585 = vsyncpa [#allocation6], 1
    %3586 = vsyncpa [#allocation9], 1
    %3587 = vsyncpa [#allocation12], 1
    %3588 = vsyncpa [#allocation4], 1

</llo_original>
